<compile_context>
chip_gen: v7x
topology: tpu7x:2x2x1
jax: 0.10.0
libtpu: 0.0.40
codegen_flags: <defaults>
</compile_context>

<pallas_src>
import functools

import jax
import jax.numpy as jnp
from jax import lax
from jax.experimental import pallas as pl
from jax.experimental.pallas import tpu as pltpu

NUM_CLASSES = 10          # "known classes" (small, synthetic)
FEAT_DIM = 32             # synthetic-backbone out-channels == self.feat_dim (embed_dim=None)
COSINE_WEIGHT = 1.0
SCALED = True


# ----------------------------------------------------------------------------
# Fused Pallas kernel: conv3x3 + bias + ReLU + GAP + ReLU + distance head
# ----------------------------------------------------------------------------
def _dfp_fused_kernel(x_ref, w_ref, b_ref, mask_ref, cen_ref,
                      feat_ref, gap_ref, dfc_ref, dcc_ref,
                      *, H, W, cosine_weight, scaled):
    """One grid step == one batch element.

    x_ref    : [(H+3)*(W+2), Cin]  zero-padded image, spatial flattened, channels last
    w_ref    : [9, Cin, Cout]      conv weights, tap-major
    b_ref    : [1, Cout]           conv bias
    mask_ref : [1, H*(W+2)]        1.0 on valid (non-pad) output columns, 0.0 elsewhere
    cen_ref  : [K, D]              raw centroids (D == Cout == feat_dim)
    feat_ref : [H*(W+2), Cout]     "wide" conv output (2 garbage cols per row, sliced off in glue)
    gap_ref  : [1, Cout]           ReLU(GAP(ReLU(conv)))
    dfc_ref  : [1, K]              cosine distance fea -> centroids
    dcc_ref  : [K, K]              scaled L2 distance between normalized centroids
    """
    P = W + 2
    M = H * P
    Cin = x_ref.shape[-1]
    Cout = w_ref.shape[-1]

    # --- 3x3 same-padding conv as 9 shifted matmuls, f32 accumulation (im2col-free) ---
    acc = jnp.zeros((M, Cout), jnp.float32)
    for ki in range(3):
        for kj in range(3):
            t = ki * 3 + kj
            off = ki * P + kj
            lhs = x_ref[pl.ds(off, M), :]                    # [M, Cin] shifted row window
            acc = acc + jnp.dot(lhs, w_ref[t],               # [Cin, Cout]
                                preferred_element_type=jnp.float32)
    acc = jnp.maximum(acc + b_ref[...], 0.0)                 # bias + ReLU
    feat_ref[...] = acc

    # --- global average pool over the H*W valid positions (mask kills the 2 pad cols/row),
    #     done as a single [1,M]@[M,Cout] matmul, followed by ReLU ---
    g = jnp.dot(mask_ref[...], acc, preferred_element_type=jnp.float32) * (1.0 / float(H * W))
    g = jnp.maximum(g, 0.0)                                  # [1, Cout]
    gap_ref[...] = g

    # --- distance head (tiny; recomputed per batch element, which is cheaper than extra
    #     kernel launches / HBM round trips at these sizes) ---
    c = cen_ref[...]                                         # [K, D]
    D = c.shape[-1]
    cnorm = jnp.sqrt(jnp.sum(c * c, axis=1, keepdims=True))  # [K, 1]
    cn = c / jnp.maximum(cnorm, 1e-12)                       # F.normalize(centroids, dim=1, p=2)

    # cosine distance: cw * (1 - <g, cn> / max(||g||, eps)); ||cn|| == 1 drops out of the denom.
    gnorm = jnp.sqrt(jnp.sum(g * g, axis=1, keepdims=True))  # [1, 1]
    sim = lax.dot_general(g, cn, (((1,), (1,)), ((), ())),   # [1, K]
                          preferred_element_type=jnp.float32)
    dfc_ref[...] = cosine_weight * (1.0 - sim / jnp.maximum(gnorm, 1e-8))

    # L2 between unit-norm centroids: ||a-b||^2 = 2 - 2 a.b (scaled by feat dim).
    cc = lax.dot_general(cn, cn, (((1,), (1,)), ((), ())),   # [K, K]
                         preferred_element_type=jnp.float32)
    d = 2.0 - 2.0 * cc
    if scaled:
        d = d / float(D)
    dcc_ref[...] = d


# ----------------------------------------------------------------------------
# Wrapper (glue: one cheap zero-pad + flatten, one pallas_call, cheap slices)
# ----------------------------------------------------------------------------
def _dfp_fused(x_nhwc, conv_w, conv_b, centroids):
    B, H, W, Cin = x_nhwc.shape
    Cout = conv_w.shape[-1]
    K, D = centroids.shape
    P = W + 2                      # padded width
    M = H * P                      # wide output rows per batch element
    Min = (H + 3) * P              # padded+flattened input rows (extra bottom row covers
                                   # the max tap offset 2*P+2 in the flattened layout)

    xp = jnp.pad(x_nhwc, ((0, 0), (1, 2), (1, 1), (0, 0)))   # [B, H+3, P, Cin]
    xf = xp.reshape(B, Min, Cin)
    w3 = conv_w.reshape(9, Cin, Cout)                        # tap-major weights
    b2 = conv_b.reshape(1, Cout)
    cols = jnp.arange(M, dtype=jnp.int32) % P
    valid_mask = (cols < W).astype(jnp.float32).reshape(1, M)

    kernel = functools.partial(_dfp_fused_kernel, H=H, W=W,
                               cosine_weight=COSINE_WEIGHT, scaled=SCALED)

    feat_wide, gap3, dfc3, dcc = pl.pallas_call(
        kernel,
        out_shape=(jax.ShapeDtypeStruct((B, M, Cout), jnp.float32),   # wide conv feature
                   jax.ShapeDtypeStruct((B, 1, Cout), jnp.float32),   # gap
                   jax.ShapeDtypeStruct((B, 1, K), jnp.float32),      # dist fea->cen
                   jax.ShapeDtypeStruct((B, K, K), jnp.float32)),     # dist cen->cen (per b)
        grid=(B,),
        in_specs=[pl.BlockSpec((None, Min, Cin), lambda bi: (bi, 0, 0)),
                  pl.BlockSpec((9, Cin, Cout), lambda bi: (0, 0, 0)),
                  pl.BlockSpec((1, Cout), lambda bi: (0, 0)),
                  pl.BlockSpec((1, M), lambda bi: (0, 0)),
                  pl.BlockSpec((K, D), lambda bi: (0, 0))],
        out_specs=(pl.BlockSpec((None, M, Cout), lambda bi: (bi, 0, 0)),
                   pl.BlockSpec((None, 1, Cout), lambda bi: (bi, 0, 0)),
                   pl.BlockSpec((None, 1, K), lambda bi: (bi, 0, 0)),
                   pl.BlockSpec((None, K, K), lambda bi: (bi, 0, 0))),
        compiler_params=pltpu.CompilerParams(
            dimension_semantics=("parallel",),        # batch axis -> megacore / dual TC
            vmem_limit_bytes=32 * 1024 * 1024),
    )(xf, w3, b2, valid_mask, centroids)

    feat_nhwc = feat_wide.reshape(B, H, P, Cout)[:, :, :W, :]   # drop the 2 garbage columns
    gap = gap3[:, 0, :]
    dist_fea2cen = dfc3[:, 0, :]
    dist_cen2cen = dcc[0]                                        # identical for every b
    return feat_nhwc, gap, dist_fea2cen, dist_cen2cen


def dfpnet_forward(x_nchw, params):
    """DFPNet.forward with default args (embed_dim=None, distance='cosine', thresholds=None)."""
    x_nhwc = jnp.transpose(x_nchw, (0, 2, 3, 1))                       # NCHW -> NHWC
    feat_nhwc, gap, dist_fea2cen, dist_cen2cen = _dfp_fused(
        x_nhwc, params["conv_w"], params["conv_b"], params["centroids"])
    backbone_fea = jnp.transpose(feat_nhwc, (0, 3, 1, 2))              # back to NCHW (PyTorch)
    embed_fea = gap                                                    # embed_dim=None -> no embeddingLayer
    return {"backbone_fea": backbone_fea,
            "embed_fea": embed_fea,
            "dist_fea2cen": dist_fea2cen,
            "dist_cen2cen": dist_cen2cen,
            "dist_gen2cen": None}                                      # thresholds buffer is None


if __name__ == "__main__":
    key = jax.random.PRNGKey(0)
    k_x, k_w, k_b, k_c = jax.random.split(key, 4)

    # input in PyTorch NCHW convention
    x = jax.random.normal(k_x, (2, 4, 16, 16), dtype=jnp.float32)

    params = {
        "conv_w": 0.1 * jax.random.normal(k_w, (3, 3, 4, FEAT_DIM), dtype=jnp.float32),
        "conv_b": 0.01 * jax.random.normal(k_b, (FEAT_DIM,), dtype=jnp.float32),
        # nn.init.normal_(self.centroids, mean=0.0, std=2.0), shape (num_classes+1, feat_dim)
        "centroids": 2.0 * jax.random.normal(k_c, (NUM_CLASSES + 1, FEAT_DIM), dtype=jnp.float32),
    }

    out = jax.jit(dfpnet_forward)(x, params)
    for k, v in out.items():
        if v is not None:
            jax.block_until_ready(v)
    print("KERNEL_OK")
</pallas_src>

<mosaic_0001>
module attributes {stable_mosaic.version = 11 : i64} {
  func.func @_dfp_fused_kernel(%arg0: i32, %arg1: memref<1x342x4xf32, #tpu.memory_space<vmem>>, %arg2: memref<9x4x32xf32, #tpu.memory_space<vmem>>, %arg3: memref<1x32xf32, #tpu.memory_space<vmem>>, %arg4: memref<1x288xf32, #tpu.memory_space<vmem>>, %arg5: memref<11x32xf32, #tpu.memory_space<vmem>>, %arg6: memref<1x288x32xf32, #tpu.memory_space<vmem>>, %arg7: memref<1x1x32xf32, #tpu.memory_space<vmem>>, %arg8: memref<1x1x11xf32, #tpu.memory_space<vmem>>, %arg9: memref<1x11x11xf32, #tpu.memory_space<vmem>>) attributes {dimension_semantics = [#tpu.dimension_semantics<parallel>], iteration_bounds = array<i64: 2>, scalar_prefetch = 0 : i64, scratch_operands = 0 : i64, tpu.core_type = #tpu.core_type<tc>, window_params = [{transform_indices = @transform_0, window_bounds = array<i64: 1, 342, 4>}, {pipeline_mode = #tpu.pipeline_mode<synchronous>, transform_indices = @transform_1, window_bounds = array<i64: 9, 4, 32>}, {pipeline_mode = #tpu.pipeline_mode<synchronous>, transform_indices = @transform_2, window_bounds = array<i64: 1, 32>}, {pipeline_mode = #tpu.pipeline_mode<synchronous>, transform_indices = @transform_3, window_bounds = array<i64: 1, 288>}, {pipeline_mode = #tpu.pipeline_mode<synchronous>, transform_indices = @transform_4, window_bounds = array<i64: 11, 32>}, {transform_indices = @transform_5, window_bounds = array<i64: 1, 288, 32>}, {transform_indices = @transform_6, window_bounds = array<i64: 1, 1, 32>}, {transform_indices = @transform_7, window_bounds = array<i64: 1, 1, 11>}, {transform_indices = @transform_8, window_bounds = array<i64: 1, 11, 11>}]} {
    %cst = arith.constant 0.000000e+00 : f32
    %0 = vector.broadcast %cst : f32 to vector<288x32xf32>
    %c0 = arith.constant 0 : index
    %c0_0 = arith.constant 0 : index
    %c0_1 = arith.constant 0 : index
    %1 = vector.load %arg1[%c0, %c0_0, %c0_1] : memref<1x342x4xf32, #tpu.memory_space<vmem>>, vector<1x288x4xf32>
    %2 = vector.shape_cast %1 : vector<1x288x4xf32> to vector<288x4xf32>
    %c0_2 = arith.constant 0 : index
    %c0_3 = arith.constant 0 : index
    %c0_4 = arith.constant 0 : index
    %3 = vector.load %arg2[%c0_2, %c0_3, %c0_4] : memref<9x4x32xf32, #tpu.memory_space<vmem>>, vector<1x4x32xf32>
    %4 = vector.shape_cast %3 : vector<1x4x32xf32> to vector<4x32xf32>
    %cst_5 = arith.constant dense<0.000000e+00> : vector<288x32xf32>
    %5 = tpu.matmul %2, %4, %cst_5 {dimension_numbers = #tpu.dot_dimension_numbers<[1], [0], [0], [1], [0, 0, 1, 1], [], []>} : vector<288x4xf32>, vector<4x32xf32>, vector<288x32xf32> -> vector<288x32xf32>
    %6 = arith.addf %0, %5 : vector<288x32xf32>
    %c0_6 = arith.constant 0 : index
    %c1 = arith.constant 1 : index
    %c0_7 = arith.constant 0 : index
    %7 = vector.load %arg1[%c0_6, %c1, %c0_7] : memref<1x342x4xf32, #tpu.memory_space<vmem>>, vector<1x288x4xf32>
    %8 = vector.shape_cast %7 : vector<1x288x4xf32> to vector<288x4xf32>
    %c1_8 = arith.constant 1 : index
    %c0_9 = arith.constant 0 : index
    %c0_10 = arith.constant 0 : index
    %9 = vector.load %arg2[%c1_8, %c0_9, %c0_10] : memref<9x4x32xf32, #tpu.memory_space<vmem>>, vector<1x4x32xf32>
    %10 = vector.shape_cast %9 : vector<1x4x32xf32> to vector<4x32xf32>
    %cst_11 = arith.constant dense<0.000000e+00> : vector<288x32xf32>
    %11 = tpu.matmul %8, %10, %cst_11 {dimension_numbers = #tpu.dot_dimension_numbers<[1], [0], [0], [1], [0, 0, 1, 1], [], []>} : vector<288x4xf32>, vector<4x32xf32>, vector<288x32xf32> -> vector<288x32xf32>
    %12 = arith.addf %6, %11 : vector<288x32xf32>
    %c0_12 = arith.constant 0 : index
    %c2 = arith.constant 2 : index
    %c0_13 = arith.constant 0 : index
    %13 = vector.load %arg1[%c0_12, %c2, %c0_13] : memref<1x342x4xf32, #tpu.memory_space<vmem>>, vector<1x288x4xf32>
    %14 = vector.shape_cast %13 : vector<1x288x4xf32> to vector<288x4xf32>
    %c2_14 = arith.constant 2 : index
    %c0_15 = arith.constant 0 : index
    %c0_16 = arith.constant 0 : index
    %15 = vector.load %arg2[%c2_14, %c0_15, %c0_16] : memref<9x4x32xf32, #tpu.memory_space<vmem>>, vector<1x4x32xf32>
    %16 = vector.shape_cast %15 : vector<1x4x32xf32> to vector<4x32xf32>
    %cst_17 = arith.constant dense<0.000000e+00> : vector<288x32xf32>
    %17 = tpu.matmul %14, %16, %cst_17 {dimension_numbers = #tpu.dot_dimension_numbers<[1], [0], [0], [1], [0, 0, 1, 1], [], []>} : vector<288x4xf32>, vector<4x32xf32>, vector<288x32xf32> -> vector<288x32xf32>
    %18 = arith.addf %12, %17 : vector<288x32xf32>
    %c0_18 = arith.constant 0 : index
    %c18 = arith.constant 18 : index
    %c0_19 = arith.constant 0 : index
    %19 = vector.load %arg1[%c0_18, %c18, %c0_19] : memref<1x342x4xf32, #tpu.memory_space<vmem>>, vector<1x288x4xf32>
    %20 = vector.shape_cast %19 : vector<1x288x4xf32> to vector<288x4xf32>
    %c3 = arith.constant 3 : index
    %c0_20 = arith.constant 0 : index
    %c0_21 = arith.constant 0 : index
    %21 = vector.load %arg2[%c3, %c0_20, %c0_21] : memref<9x4x32xf32, #tpu.memory_space<vmem>>, vector<1x4x32xf32>
    %22 = vector.shape_cast %21 : vector<1x4x32xf32> to vector<4x32xf32>
    %cst_22 = arith.constant dense<0.000000e+00> : vector<288x32xf32>
    %23 = tpu.matmul %20, %22, %cst_22 {dimension_numbers = #tpu.dot_dimension_numbers<[1], [0], [0], [1], [0, 0, 1, 1], [], []>} : vector<288x4xf32>, vector<4x32xf32>, vector<288x32xf32> -> vector<288x32xf32>
    %24 = arith.addf %18, %23 : vector<288x32xf32>
    %c0_23 = arith.constant 0 : index
    %c19 = arith.constant 19 : index
    %c0_24 = arith.constant 0 : index
    %25 = vector.load %arg1[%c0_23, %c19, %c0_24] : memref<1x342x4xf32, #tpu.memory_space<vmem>>, vector<1x288x4xf32>
    %26 = vector.shape_cast %25 : vector<1x288x4xf32> to vector<288x4xf32>
    %c4 = arith.constant 4 : index
    %c0_25 = arith.constant 0 : index
    %c0_26 = arith.constant 0 : index
    %27 = vector.load %arg2[%c4, %c0_25, %c0_26] : memref<9x4x32xf32, #tpu.memory_space<vmem>>, vector<1x4x32xf32>
    %28 = vector.shape_cast %27 : vector<1x4x32xf32> to vector<4x32xf32>
    %cst_27 = arith.constant dense<0.000000e+00> : vector<288x32xf32>
    %29 = tpu.matmul %26, %28, %cst_27 {dimension_numbers = #tpu.dot_dimension_numbers<[1], [0], [0], [1], [0, 0, 1, 1], [], []>} : vector<288x4xf32>, vector<4x32xf32>, vector<288x32xf32> -> vector<288x32xf32>
    %30 = arith.addf %24, %29 : vector<288x32xf32>
    %c0_28 = arith.constant 0 : index
    %c20 = arith.constant 20 : index
    %c0_29 = arith.constant 0 : index
    %31 = vector.load %arg1[%c0_28, %c20, %c0_29] : memref<1x342x4xf32, #tpu.memory_space<vmem>>, vector<1x288x4xf32>
    %32 = vector.shape_cast %31 : vector<1x288x4xf32> to vector<288x4xf32>
    %c5 = arith.constant 5 : index
    %c0_30 = arith.constant 0 : index
    %c0_31 = arith.constant 0 : index
    %33 = vector.load %arg2[%c5, %c0_30, %c0_31] : memref<9x4x32xf32, #tpu.memory_space<vmem>>, vector<1x4x32xf32>
    %34 = vector.shape_cast %33 : vector<1x4x32xf32> to vector<4x32xf32>
    %cst_32 = arith.constant dense<0.000000e+00> : vector<288x32xf32>
    %35 = tpu.matmul %32, %34, %cst_32 {dimension_numbers = #tpu.dot_dimension_numbers<[1], [0], [0], [1], [0, 0, 1, 1], [], []>} : vector<288x4xf32>, vector<4x32xf32>, vector<288x32xf32> -> vector<288x32xf32>
    %36 = arith.addf %30, %35 : vector<288x32xf32>
    %c0_33 = arith.constant 0 : index
    %c36 = arith.constant 36 : index
    %c0_34 = arith.constant 0 : index
    %37 = vector.load %arg1[%c0_33, %c36, %c0_34] : memref<1x342x4xf32, #tpu.memory_space<vmem>>, vector<1x288x4xf32>
    %38 = vector.shape_cast %37 : vector<1x288x4xf32> to vector<288x4xf32>
    %c6 = arith.constant 6 : index
    %c0_35 = arith.constant 0 : index
    %c0_36 = arith.constant 0 : index
    %39 = vector.load %arg2[%c6, %c0_35, %c0_36] : memref<9x4x32xf32, #tpu.memory_space<vmem>>, vector<1x4x32xf32>
    %40 = vector.shape_cast %39 : vector<1x4x32xf32> to vector<4x32xf32>
    %cst_37 = arith.constant dense<0.000000e+00> : vector<288x32xf32>
    %41 = tpu.matmul %38, %40, %cst_37 {dimension_numbers = #tpu.dot_dimension_numbers<[1], [0], [0], [1], [0, 0, 1, 1], [], []>} : vector<288x4xf32>, vector<4x32xf32>, vector<288x32xf32> -> vector<288x32xf32>
    %42 = arith.addf %36, %41 : vector<288x32xf32>
    %c0_38 = arith.constant 0 : index
    %c37 = arith.constant 37 : index
    %c0_39 = arith.constant 0 : index
    %43 = vector.load %arg1[%c0_38, %c37, %c0_39] : memref<1x342x4xf32, #tpu.memory_space<vmem>>, vector<1x288x4xf32>
    %44 = vector.shape_cast %43 : vector<1x288x4xf32> to vector<288x4xf32>
    %c7 = arith.constant 7 : index
    %c0_40 = arith.constant 0 : index
    %c0_41 = arith.constant 0 : index
    %45 = vector.load %arg2[%c7, %c0_40, %c0_41] : memref<9x4x32xf32, #tpu.memory_space<vmem>>, vector<1x4x32xf32>
    %46 = vector.shape_cast %45 : vector<1x4x32xf32> to vector<4x32xf32>
    %cst_42 = arith.constant dense<0.000000e+00> : vector<288x32xf32>
    %47 = tpu.matmul %44, %46, %cst_42 {dimension_numbers = #tpu.dot_dimension_numbers<[1], [0], [0], [1], [0, 0, 1, 1], [], []>} : vector<288x4xf32>, vector<4x32xf32>, vector<288x32xf32> -> vector<288x32xf32>
    %48 = arith.addf %42, %47 : vector<288x32xf32>
    %c0_43 = arith.constant 0 : index
    %c38 = arith.constant 38 : index
    %c0_44 = arith.constant 0 : index
    %49 = vector.load %arg1[%c0_43, %c38, %c0_44] : memref<1x342x4xf32, #tpu.memory_space<vmem>>, vector<1x288x4xf32>
    %50 = vector.shape_cast %49 : vector<1x288x4xf32> to vector<288x4xf32>
    %c8 = arith.constant 8 : index
    %c0_45 = arith.constant 0 : index
    %c0_46 = arith.constant 0 : index
    %51 = vector.load %arg2[%c8, %c0_45, %c0_46] : memref<9x4x32xf32, #tpu.memory_space<vmem>>, vector<1x4x32xf32>
    %52 = vector.shape_cast %51 : vector<1x4x32xf32> to vector<4x32xf32>
    %cst_47 = arith.constant dense<0.000000e+00> : vector<288x32xf32>
    %53 = tpu.matmul %50, %52, %cst_47 {dimension_numbers = #tpu.dot_dimension_numbers<[1], [0], [0], [1], [0, 0, 1, 1], [], []>} : vector<288x4xf32>, vector<4x32xf32>, vector<288x32xf32> -> vector<288x32xf32>
    %54 = arith.addf %48, %53 : vector<288x32xf32>
    %c0_48 = arith.constant 0 : index
    %c0_49 = arith.constant 0 : index
    %55 = vector.load %arg3[%c0_48, %c0_49] : memref<1x32xf32, #tpu.memory_space<vmem>>, vector<1x32xf32>
    %56 = vector.broadcast %55 : vector<1x32xf32> to vector<288x32xf32>
    %57 = arith.addf %54, %56 : vector<288x32xf32>
    %cst_50 = arith.constant 0.000000e+00 : f32
    %58 = vector.broadcast %cst_50 : f32 to vector<288x32xf32>
    %59 = arith.maximumf %57, %58 : vector<288x32xf32>
    %c0_51 = arith.constant 0 : index
    %c0_52 = arith.constant 0 : index
    %c0_53 = arith.constant 0 : index
    %60 = vector.load %arg6[%c0_51, %c0_52, %c0_53] : memref<1x288x32xf32, #tpu.memory_space<vmem>>, vector<1x288x32xf32>
    %61 = vector.shape_cast %60 : vector<1x288x32xf32> to vector<288x32xf32>
    %62 = vector.shape_cast %59 : vector<288x32xf32> to vector<1x288x32xf32>
    tpu.vector_store %arg6[%c0_51, %c0_52, %c0_53], %62 {strides = array<i32>} : memref<1x288x32xf32, #tpu.memory_space<vmem>>, vector<1x288x32xf32>,
    %c0_54 = arith.constant 0 : index
    %c0_55 = arith.constant 0 : index
    %63 = vector.load %arg4[%c0_54, %c0_55] : memref<1x288xf32, #tpu.memory_space<vmem>>, vector<1x288xf32>
    %cst_56 = arith.constant dense<0.000000e+00> : vector<1x32xf32>
    %64 = tpu.matmul %63, %59, %cst_56 {dimension_numbers = #tpu.dot_dimension_numbers<[1], [0], [0], [1], [0, 0, 1, 1], [], []>} : vector<1x288xf32>, vector<288x32xf32>, vector<1x32xf32> -> vector<1x32xf32>
    %cst_57 = arith.constant 3.906250e-03 : f32
    %65 = vector.broadcast %cst_57 : f32 to vector<1x32xf32>
    %66 = arith.mulf %64, %65 : vector<1x32xf32>
    %cst_58 = arith.constant 0.000000e+00 : f32
    %67 = vector.broadcast %cst_58 : f32 to vector<1x32xf32>
    %68 = arith.maximumf %66, %67 : vector<1x32xf32>
    %c0_59 = arith.constant 0 : index
    %c0_60 = arith.constant 0 : index
    %c0_61 = arith.constant 0 : index
    %69 = vector.load %arg7[%c0_59, %c0_60, %c0_61] : memref<1x1x32xf32, #tpu.memory_space<vmem>>, vector<1x1x32xf32>
    %70 = vector.shape_cast %69 : vector<1x1x32xf32> to vector<1x32xf32>
    %71 = vector.shape_cast %68 : vector<1x32xf32> to vector<1x1x32xf32>
    tpu.vector_store %arg7[%c0_59, %c0_60, %c0_61], %71 {strides = array<i32>} : memref<1x1x32xf32, #tpu.memory_space<vmem>>, vector<1x1x32xf32>,
    %c0_62 = arith.constant 0 : index
    %c0_63 = arith.constant 0 : index
    %72 = vector.load %arg5[%c0_62, %c0_63] : memref<11x32xf32, #tpu.memory_space<vmem>>, vector<11x32xf32>
    %73 = arith.mulf %72, %72 : vector<11x32xf32>
    %cst_64 = arith.constant dense<0.000000e+00> : vector<11xf32>
    %74 = vector.multi_reduction <add>, %73, %cst_64 [1] : vector<11x32xf32> to vector<11xf32>
    %75 = vector.shape_cast %74 : vector<11xf32> to vector<11x1xf32>
    %76 = math.sqrt %75 : vector<11x1xf32>
    %cst_65 = arith.constant 9.99999996E-13 : f32
    %77 = vector.broadcast %cst_65 : f32 to vector<11x1xf32>
    %78 = arith.maximumf %76, %77 : vector<11x1xf32>
    %79 = vector.broadcast %78 : vector<11x1xf32> to vector<11x32xf32>
    %80 = arith.divf %72, %79 : vector<11x32xf32>
    %81 = arith.mulf %68, %68 : vector<1x32xf32>
    %cst_66 = arith.constant dense<0.000000e+00> : vector<1xf32>
    %82 = vector.multi_reduction <add>, %81, %cst_66 [1] : vector<1x32xf32> to vector<1xf32>
    %83 = vector.shape_cast %82 : vector<1xf32> to vector<1x1xf32>
    %84 = math.sqrt %83 : vector<1x1xf32>
    %cst_67 = arith.constant dense<0.000000e+00> : vector<1x11xf32>
    %85 = tpu.matmul %68, %80, %cst_67 {dimension_numbers = #tpu.dot_dimension_numbers<[1], [1], [0], [0], [0, 0, 1, 0], [], []>} : vector<1x32xf32>, vector<11x32xf32>, vector<1x11xf32> -> vector<1x11xf32>
    %cst_68 = arith.constant 9.99999993E-9 : f32
    %86 = vector.broadcast %cst_68 : f32 to vector<1x1xf32>
    %87 = arith.maximumf %84, %86 : vector<1x1xf32>
    %88 = vector.broadcast %87 : vector<1x1xf32> to vector<1x11xf32>
    %89 = arith.divf %85, %88 : vector<1x11xf32>
    %cst_69 = arith.constant 1.000000e+00 : f32
    %90 = vector.broadcast %cst_69 : f32 to vector<1x11xf32>
    %91 = arith.subf %90, %89 : vector<1x11xf32>
    %cst_70 = arith.constant 1.000000e+00 : f32
    %92 = vector.broadcast %cst_70 : f32 to vector<1x11xf32>
    %93 = arith.mulf %92, %91 : vector<1x11xf32>
    %c0_71 = arith.constant 0 : index
    %c0_72 = arith.constant 0 : index
    %c0_73 = arith.constant 0 : index
    %94 = vector.load %arg8[%c0_71, %c0_72, %c0_73] : memref<1x1x11xf32, #tpu.memory_space<vmem>>, vector<1x1x11xf32>
    %95 = vector.shape_cast %94 : vector<1x1x11xf32> to vector<1x11xf32>
    %96 = vector.shape_cast %93 : vector<1x11xf32> to vector<1x1x11xf32>
    tpu.vector_store %arg8[%c0_71, %c0_72, %c0_73], %96 {strides = array<i32>} : memref<1x1x11xf32, #tpu.memory_space<vmem>>, vector<1x1x11xf32>,
    %cst_74 = arith.constant dense<0.000000e+00> : vector<11x11xf32>
    %97 = tpu.matmul %80, %80, %cst_74 {dimension_numbers = #tpu.dot_dimension_numbers<[1], [1], [0], [0], [0, 0, 1, 0], [], []>} : vector<11x32xf32>, vector<11x32xf32>, vector<11x11xf32> -> vector<11x11xf32>
    %cst_75 = arith.constant 2.000000e+00 : f32
    %98 = vector.broadcast %cst_75 : f32 to vector<11x11xf32>
    %99 = arith.mulf %98, %97 : vector<11x11xf32>
    %cst_76 = arith.constant 2.000000e+00 : f32
    %100 = vector.broadcast %cst_76 : f32 to vector<11x11xf32>
    %101 = arith.subf %100, %99 : vector<11x11xf32>
    %cst_77 = arith.constant 3.200000e+01 : f32
    %102 = vector.broadcast %cst_77 : f32 to vector<11x11xf32>
    %103 = arith.divf %101, %102 : vector<11x11xf32>
    %c0_78 = arith.constant 0 : index
    %c0_79 = arith.constant 0 : index
    %c0_80 = arith.constant 0 : index
    %104 = vector.load %arg9[%c0_78, %c0_79, %c0_80] : memref<1x11x11xf32, #tpu.memory_space<vmem>>, vector<1x11x11xf32>
    %105 = vector.shape_cast %104 : vector<1x11x11xf32> to vector<11x11xf32>
    %106 = vector.shape_cast %103 : vector<11x11xf32> to vector<1x11x11xf32>
    tpu.vector_store %arg9[%c0_78, %c0_79, %c0_80], %106 {strides = array<i32>} : memref<1x11x11xf32, #tpu.memory_space<vmem>>, vector<1x11x11xf32>,
    return
  }
  func.func @transform_0(%arg0: i32) -> (i32, i32, i32) {
    %c0_i32 = arith.constant 0 : i32
    %c0_i32_0 = arith.constant 0 : i32
    %c0_i32_1 = arith.constant 0 : i32
    return %arg0, %c0_i32, %c0_i32_0 : i32, i32, i32
  }
  func.func @transform_1(%arg0: i32) -> (i32, i32, i32) {
    %c0_i32 = arith.constant 0 : i32
    %c0_i32_0 = arith.constant 0 : i32
    %c0_i32_1 = arith.constant 0 : i32
    %c0_i32_2 = arith.constant 0 : i32
    return %c0_i32, %c0_i32_0, %c0_i32_1 : i32, i32, i32
  }
  func.func @transform_2(%arg0: i32) -> (i32, i32) {
    %c0_i32 = arith.constant 0 : i32
    %c0_i32_0 = arith.constant 0 : i32
    %c0_i32_1 = arith.constant 0 : i32
    return %c0_i32, %c0_i32_0 : i32, i32
  }
  func.func @transform_3(%arg0: i32) -> (i32, i32) {
    %c0_i32 = arith.constant 0 : i32
    %c0_i32_0 = arith.constant 0 : i32
    %c0_i32_1 = arith.constant 0 : i32
    return %c0_i32, %c0_i32_0 : i32, i32
  }
  func.func @transform_4(%arg0: i32) -> (i32, i32) {
    %c0_i32 = arith.constant 0 : i32
    %c0_i32_0 = arith.constant 0 : i32
    %c0_i32_1 = arith.constant 0 : i32
    return %c0_i32, %c0_i32_0 : i32, i32
  }
  func.func @transform_5(%arg0: i32) -> (i32, i32, i32) {
    %c0_i32 = arith.constant 0 : i32
    %c0_i32_0 = arith.constant 0 : i32
    %c0_i32_1 = arith.constant 0 : i32
    return %arg0, %c0_i32, %c0_i32_0 : i32, i32, i32
  }
  func.func @transform_6(%arg0: i32) -> (i32, i32, i32) {
    %c0_i32 = arith.constant 0 : i32
    %c0_i32_0 = arith.constant 0 : i32
    %c0_i32_1 = arith.constant 0 : i32
    return %arg0, %c0_i32, %c0_i32_0 : i32, i32, i32
  }
  func.func @transform_7(%arg0: i32) -> (i32, i32, i32) {
    %c0_i32 = arith.constant 0 : i32
    %c0_i32_0 = arith.constant 0 : i32
    %c0_i32_1 = arith.constant 0 : i32
    return %arg0, %c0_i32, %c0_i32_0 : i32, i32, i32
  }
  func.func @transform_8(%arg0: i32) -> (i32, i32, i32) {
    %c0_i32 = arith.constant 0 : i32
    %c0_i32_0 = arith.constant 0 : i32
    %c0_i32_1 = arith.constant 0 : i32
    return %arg0, %c0_i32, %c0_i32_0 : i32, i32, i32
  }
}

</mosaic_0001>

<llo_original>
// kernel: dfpnet_forward.1
$region0: #{dfpnet_forward.1}
  #allocation0 [shape = 'u32[]', space=smem, size = 0x4, offset = 0x4, fixed_abs, tag = 'smem constant byte address 0x4 - core index']
  #allocation1 [shape = 'u32[144,128]{1,0:T(1,128)}', space=vmem, size = 0x12000, scoped, tag = 'internal scratch']
  %s0 = inlined_call_operand.vmem [shape: f32[2,342,4], index: 0, kind: input, shape index: {}]
  %s1 = inlined_call_operand.vmem [shape: f32[9,4,32], index: 1, kind: input, shape index: {}]
  %s2 = inlined_call_operand.vmem [shape: f32[1,32], index: 2, kind: input, shape index: {}]
  %s3 = inlined_call_operand.vmem [shape: f32[1,288], index: 3, kind: input, shape index: {}]
  %s4 = inlined_call_operand.vmem [shape: f32[11,32], index: 4, kind: input, shape index: {}]
  %s5 = inlined_call_operand.vmem [shape: f32[2,288,32], index: 5, kind: output, shape index: {0}]
  %s6 = inlined_call_operand.hbm [shape: f32[2,1,32], index: 6, kind: output, shape index: {1}]
  %s7 = inlined_call_operand.hbm [shape: f32[2,1,11], index: 7, kind: output, shape index: {2}]
  %s8 = inlined_call_operand.vmem [shape: f32[2,11,11], index: 8, kind: output, shape index: {3}]
  %9 = xla_tuple %s5, %s6, %s7, %s8
  %s10 = sld [smem:[#allocation0]]
  $region77: #{dfpnet_forward.1} parent=0
    _
  %s12 = ssub.s32 1, %s10
  %s13 = scalar_select 0, %s12, %s10
  $region1: #{dfpnet_forward.1} parent=0
    #allocation2 [shape = 'u8[1024]{0}', space=vmem, size = 0x400, scoped, tag = 'output window, operand 1']
    #allocation3 [shape = 's32[2]{0}', space=sflag, size = 0x8, scoped, tag = 'scoped memory for dfpnet_forward.1']
    #allocation4 [shape = 'u8[1024]{0}', space=vmem, size = 0x400, scoped, tag = 'output window, operand 2']
    #allocation5 [shape = 's32[2]{0}', space=sflag, size = 0x8, scoped, tag = 'scoped memory for dfpnet_forward.1']
    %14 = vsyncpa [#allocation3], 0
    %s15 = scalar_lea.sflag [#allocation3], 1
    %16 = vsyncpa %s15, 0
    %17 = vsyncpa [#allocation5], 0
    %s18 = scalar_lea.sflag [#allocation5], 1
    %19 = vsyncpa %s18, 0
    loop: start=0, step=1, limit=4
    $region2: #{dfpnet_forward.1} parent=1 // loop_pre_header
      _
    $region3: #{dfpnet_forward.1} parent=1 // loop_header
      %s21 = sphi 0, %s25
      %p22 = scmp.ge.s32.totalorder %s21, 4
      %s31 = sphi 0, %s33
      %s34 = sphi 0, %s31
      %s35 = sphi 0, %s34
      %s51 = sphi 0, %s35
      %s55 = sphi 0, %s55
      %s57 = sphi 0, %s55
      %s58 = sphi 0, %s57
      %s72 = sphi 0, %s58
      %s76 = sphi 0, %s76
      %s78 = sphi 0, %s76
      %s79 = sphi 0, %s78
      %s93 = sphi 0, %s79
      %s97 = sphi 0, %s97
      %s99 = sphi 0, %s97
      %s100 = sphi 0, %s99
      %s114 = sphi 0, %s100
      %s118 = sphi 0, %s118
      %s120 = sphi 0, %s118
      %s121 = sphi 0, %s120
      %s135 = sphi 0, %s121
      %s141 = sphi 0, %s143
      %s144 = sphi 0, %s141
      %s145 = sphi 0, %s144
      %s161 = sphi 0, %s145
      %s167 = sphi 0, %s169
      %s170 = sphi 0, %s167
      %s171 = sphi 0, %s170
      %s187 = sphi 0, %s171
      %s193 = sphi 0, %s195
      %s196 = sphi 0, %s193
      %s197 = sphi 0, %s196
      %s213 = sphi 0, %s197
      %s219 = sphi 0, %s221
      %s222 = sphi 0, %s219
      %s223 = sphi 0, %s222
      %s239 = sphi 0, %s223
    $region4: #{dfpnet_forward.1} parent=1 // loop_header_branch
      %24 = sbr.rel (%p22) target = $region8
    $region5: #{dfpnet_forward.1} parent=1 // loop_body
      %s26 = ssub.s32 %s21, 1
      %s27 = ssub.s32 %s21, 2
      %s28 = sadd.s32 %s21, 1
      %s29 = ssub.s32 %s21, %s28
      %p30 = scmp.eq.s32.totalorder %s29, 0
      %s32 = sadd.s32 %s31, 1
      %s33 = scalar_select %p30, %s31, %s32
      %p36 = pneg %p30
      %p37 = scmp.eq.s32.totalorder %s21, 1
      %p38 = por %p36, %p37
      %p39 = scmp.ne.s32.totalorder %s31, %s34
      %p40 = scmp.eq.s32.totalorder %s21, 0
      %p41 = por %p39, %p40
      %p42 = scmp.ne.s32.totalorder %s31, %s34
      %p43 = scmp.eq.s32.totalorder %s26, 1
      %p44 = por %p42, %p43
      %p45 = scmp.ne.s32.totalorder %s34, %s35
      %p46 = scmp.eq.s32.totalorder %s26, 0
      %p47 = por %p45, %p46
      %p48 = scmp.ne.s32.totalorder %s34, %s35
      %p49 = scmp.eq.s32.totalorder %s27, 1
      %p50 = por %p48, %p49
      %p52 = scmp.ne.s32.totalorder %s35, %s51
      %p53 = scmp.eq.s32.totalorder %s27, 0
      %p54 = por %p52, %p53
      %s56 = sadd.s32 %s55, 1
      %p59 = scmp.eq.s32.totalorder %s21, 1
      %p60 = scmp.ne.s32.totalorder %s55, %s57
      %p61 = scmp.eq.s32.totalorder %s21, 0
      %p62 = por %p60, %p61
      %p63 = scmp.ne.s32.totalorder %s55, %s57
      %p64 = scmp.eq.s32.totalorder %s26, 1
      %p65 = por %p63, %p64
      %p66 = scmp.ne.s32.totalorder %s57, %s58
      %p67 = scmp.eq.s32.totalorder %s26, 0
      %p68 = por %p66, %p67
      %p69 = scmp.ne.s32.totalorder %s57, %s58
      %p70 = scmp.eq.s32.totalorder %s27, 1
      %p71 = por %p69, %p70
      %p73 = scmp.ne.s32.totalorder %s58, %s72
      %p74 = scmp.eq.s32.totalorder %s27, 0
      %p75 = por %p73, %p74
      %s77 = sadd.s32 %s76, 1
      %p80 = scmp.eq.s32.totalorder %s21, 1
      %p81 = scmp.ne.s32.totalorder %s76, %s78
      %p82 = scmp.eq.s32.totalorder %s21, 0
      %p83 = por %p81, %p82
      %p84 = scmp.ne.s32.totalorder %s76, %s78
      %p85 = scmp.eq.s32.totalorder %s26, 1
      %p86 = por %p84, %p85
      %p87 = scmp.ne.s32.totalorder %s78, %s79
      %p88 = scmp.eq.s32.totalorder %s26, 0
      %p89 = por %p87, %p88
      %p90 = scmp.ne.s32.totalorder %s78, %s79
      %p91 = scmp.eq.s32.totalorder %s27, 1
      %p92 = por %p90, %p91
      %p94 = scmp.ne.s32.totalorder %s79, %s93
      %p95 = scmp.eq.s32.totalorder %s27, 0
      %p96 = por %p94, %p95
      %s98 = sadd.s32 %s97, 1
      %p101 = scmp.eq.s32.totalorder %s21, 1
      %p102 = scmp.ne.s32.totalorder %s97, %s99
      %p103 = scmp.eq.s32.totalorder %s21, 0
      %p104 = por %p102, %p103
      %p105 = scmp.ne.s32.totalorder %s97, %s99
      %p106 = scmp.eq.s32.totalorder %s26, 1
      %p107 = por %p105, %p106
      %p108 = scmp.ne.s32.totalorder %s99, %s100
      %p109 = scmp.eq.s32.totalorder %s26, 0
      %p110 = por %p108, %p109
      %p111 = scmp.ne.s32.totalorder %s99, %s100
      %p112 = scmp.eq.s32.totalorder %s27, 1
      %p113 = por %p111, %p112
      %p115 = scmp.ne.s32.totalorder %s100, %s114
      %p116 = scmp.eq.s32.totalorder %s27, 0
      %p117 = por %p115, %p116
      %s119 = sadd.s32 %s118, 1
      %p122 = scmp.eq.s32.totalorder %s21, 1
      %p123 = scmp.ne.s32.totalorder %s118, %s120
      %p124 = scmp.eq.s32.totalorder %s21, 0
      %p125 = por %p123, %p124
      %p126 = scmp.ne.s32.totalorder %s118, %s120
      %p127 = scmp.eq.s32.totalorder %s26, 1
      %p128 = por %p126, %p127
      %p129 = scmp.ne.s32.totalorder %s120, %s121
      %p130 = scmp.eq.s32.totalorder %s26, 0
      %p131 = por %p129, %p130
      %p132 = scmp.ne.s32.totalorder %s120, %s121
      %p133 = scmp.eq.s32.totalorder %s27, 1
      %p134 = por %p132, %p133
      %p136 = scmp.ne.s32.totalorder %s121, %s135
      %p137 = scmp.eq.s32.totalorder %s27, 0
      %p138 = por %p136, %p137
      %s139 = ssub.s32 %s21, %s28
      %p140 = scmp.eq.s32.totalorder %s139, 0
      %s142 = sadd.s32 %s141, 1
      %s143 = scalar_select %p140, %s141, %s142
      %p146 = pneg %p140
      %p147 = scmp.eq.s32.totalorder %s21, 1
      %p148 = por %p146, %p147
      %p149 = scmp.ne.s32.totalorder %s141, %s144
      %p150 = scmp.eq.s32.totalorder %s21, 0
      %p151 = por %p149, %p150
      %p152 = scmp.ne.s32.totalorder %s141, %s144
      %p153 = scmp.eq.s32.totalorder %s26, 1
      %p154 = por %p152, %p153
      %p155 = scmp.ne.s32.totalorder %s144, %s145
      %p156 = scmp.eq.s32.totalorder %s26, 0
      %p157 = por %p155, %p156
      %p158 = scmp.ne.s32.totalorder %s144, %s145
      %p159 = scmp.eq.s32.totalorder %s27, 1
      %p160 = por %p158, %p159
      %p162 = scmp.ne.s32.totalorder %s145, %s161
      %p163 = scmp.eq.s32.totalorder %s27, 0
      %p164 = por %p162, %p163
      %s165 = ssub.s32 %s21, %s28
      %p166 = scmp.eq.s32.totalorder %s165, 0
      %s168 = sadd.s32 %s167, 1
      %s169 = scalar_select %p166, %s167, %s168
      %p172 = pneg %p166
      %p173 = scmp.eq.s32.totalorder %s21, 1
      %p174 = por %p172, %p173
      %p175 = scmp.ne.s32.totalorder %s167, %s170
      %p176 = scmp.eq.s32.totalorder %s21, 0
      %p177 = por %p175, %p176
      %p178 = scmp.ne.s32.totalorder %s167, %s170
      %p179 = scmp.eq.s32.totalorder %s26, 1
      %p180 = por %p178, %p179
      %p181 = scmp.ne.s32.totalorder %s170, %s171
      %p182 = scmp.eq.s32.totalorder %s26, 0
      %p183 = por %p181, %p182
      %p184 = scmp.ne.s32.totalorder %s170, %s171
      %p185 = scmp.eq.s32.totalorder %s27, 1
      %p186 = por %p184, %p185
      %p188 = scmp.ne.s32.totalorder %s171, %s187
      %p189 = scmp.eq.s32.totalorder %s27, 0
      %p190 = por %p188, %p189
      %s191 = ssub.s32 %s21, %s28
      %p192 = scmp.eq.s32.totalorder %s191, 0
      %s194 = sadd.s32 %s193, 1
      %s195 = scalar_select %p192, %s193, %s194
      %p198 = pneg %p192
      %p199 = scmp.eq.s32.totalorder %s21, 1
      %p200 = por %p198, %p199
      %p201 = scmp.ne.s32.totalorder %s193, %s196
      %p202 = scmp.eq.s32.totalorder %s21, 0
      %p203 = por %p201, %p202
      %p204 = scmp.ne.s32.totalorder %s193, %s196
      %p205 = scmp.eq.s32.totalorder %s26, 1
      %p206 = por %p204, %p205
      %p207 = scmp.ne.s32.totalorder %s196, %s197
      %p208 = scmp.eq.s32.totalorder %s26, 0
      %p209 = por %p207, %p208
      %p210 = scmp.ne.s32.totalorder %s196, %s197
      %p211 = scmp.eq.s32.totalorder %s27, 1
      %p212 = por %p210, %p211
      %p214 = scmp.ne.s32.totalorder %s197, %s213
      %p215 = scmp.eq.s32.totalorder %s27, 0
      %p216 = por %p214, %p215
      %s217 = ssub.s32 %s21, %s28
      %p218 = scmp.eq.s32.totalorder %s217, 0
      %s220 = sadd.s32 %s219, 1
      %s221 = scalar_select %p218, %s219, %s220
      %p224 = pneg %p218
      %p225 = scmp.eq.s32.totalorder %s21, 1
      %p226 = por %p224, %p225
      %p227 = scmp.ne.s32.totalorder %s219, %s222
      %p228 = scmp.eq.s32.totalorder %s21, 0
      %p229 = por %p227, %p228
      %p230 = scmp.ne.s32.totalorder %s219, %s222
      %p231 = scmp.eq.s32.totalorder %s26, 1
      %p232 = por %p230, %p231
      %p233 = scmp.ne.s32.totalorder %s222, %s223
      %p234 = scmp.eq.s32.totalorder %s26, 0
      %p235 = por %p233, %p234
      %p236 = scmp.ne.s32.totalorder %s222, %s223
      %p237 = scmp.eq.s32.totalorder %s27, 1
      %p238 = por %p236, %p237
      %p240 = scmp.ne.s32.totalorder %s223, %s239
      %p241 = scmp.eq.s32.totalorder %s27, 0
      %p242 = por %p240, %p241
      %p243 = scmp.le.s32.totalorder 1, %s21
      %p244 = scmp.lt.s32.totalorder %s21, 3
      %p245 = pnand %p243, %p244
      %p246 = pneg %p245
      // Predicated region
      $region9: #{dfpnet_forward.1} parent=5 // pred_check
        _
      $region10: #{dfpnet_forward.1} parent=5 // pred_check_branch
        %248 = sbr.rel (%p245) target = $region12
      $region11: #{dfpnet_forward.1} parent=5 // pred_region
        %s249 = ssub.s32 %s21, 1
        // Predicated region
        $region13: #{dfpnet_forward.1} parent=11 // pred_check
          %p250 = pneg %p68
        $region14: #{dfpnet_forward.1} parent=11 // pred_check_branch
          %252 = sbr.rel (%p250) target = $region16
        $region15: #{dfpnet_forward.1} parent=11 // pred_region
          _
        $region16: #{dfpnet_forward.1} parent=11 // pred_fallthru
          _
        // Predicated region
        $region17: #{dfpnet_forward.1} parent=11 // pred_check
          %p253 = pneg %p89
        $region18: #{dfpnet_forward.1} parent=11 // pred_check_branch
          %255 = sbr.rel (%p253) target = $region20
        $region19: #{dfpnet_forward.1} parent=11 // pred_region
          _
        $region20: #{dfpnet_forward.1} parent=11 // pred_fallthru
          _
        // Predicated region
        $region21: #{dfpnet_forward.1} parent=11 // pred_check
          %p256 = pneg %p110
        $region22: #{dfpnet_forward.1} parent=11 // pred_check_branch
          %258 = sbr.rel (%p256) target = $region24
        $region23: #{dfpnet_forward.1} parent=11 // pred_region
          _
        $region24: #{dfpnet_forward.1} parent=11 // pred_fallthru
          _
        // Predicated region
        $region25: #{dfpnet_forward.1} parent=11 // pred_check
          %p259 = pneg %p131
        $region26: #{dfpnet_forward.1} parent=11 // pred_check_branch
          %261 = sbr.rel (%p259) target = $region28
        $region27: #{dfpnet_forward.1} parent=11 // pred_region
          _
        $region28: #{dfpnet_forward.1} parent=11 // pred_fallthru
          _
      $region12: #{dfpnet_forward.1} parent=5 // pred_fallthru
        _
      %p262 = scmp.lt.s32.totalorder %s21, 2
      // Predicated region
      $region29: #{dfpnet_forward.1} parent=5 // pred_check
        %p263 = pneg %p262
      $region30: #{dfpnet_forward.1} parent=5 // pred_check_branch
        %265 = sbr.rel (%p263) target = $region32
      $region31: #{dfpnet_forward.1} parent=5 // pred_region
        // Predicated region
        $region33: #{dfpnet_forward.1} parent=31 // pred_check
          %p266 = pneg %p41
        $region34: #{dfpnet_forward.1} parent=31 // pred_check_branch
          %268 = sbr.rel (%p266) target = $region36
        $region35: #{dfpnet_forward.1} parent=31 // pred_region
          %p269 = scmp.lt.s32.totalorder %s21, 1
          %s270 = scalar_select %p269, %s21, 1
          %s271 = smul.addr %s270, 43
          %s272 = smul.addr %s271, 8
          %s273 = scalar_lea.vmem %s0, %s272
        $region36: #{dfpnet_forward.1} parent=31 // pred_fallthru
          _
      $region32: #{dfpnet_forward.1} parent=5 // pred_fallthru
        _
      %p274 = scmp.le.s32.totalorder 1, %s21
      %p275 = scmp.lt.s32.totalorder %s21, 3
      %p276 = pnand %p274, %p275
      %p277 = pneg %p276
      // Predicated region
      $region37: #{dfpnet_forward.1} parent=5 // pred_check
        _
      $region38: #{dfpnet_forward.1} parent=5 // pred_check_branch
        %279 = sbr.rel (%p276) target = $region40
      $region39: #{dfpnet_forward.1} parent=5 // pred_region
        %s280 = ssub.s32 %s21, 1
        %p281 = scmp.lt.s32.totalorder %s26, 1
        %s282 = scalar_select %p281, %s26, 1
        %s283 = smul.addr %s282, 43
        %s284 = smul.addr %s283, 8
        %s285 = scalar_lea.vmem %s0, %s284
        %p286 = pneg %p47
        %p287 = pneg %p44
        %p288 = pneg %p68
        %p289 = pneg %p65
        %p290 = pneg %p89
        %p291 = pneg %p86
        %p292 = pneg %p110
        %p293 = pneg %p107
        %p294 = pneg %p131
        %p295 = pneg %p128
        %p296 = pneg %p157
        %p297 = pneg %p154
        %p298 = scmp.lt.s32.totalorder %s26, 1
        %s299 = scalar_select %p298, %s26, 1
        %s300 = smul.addr %s299, 36
        %s301 = smul.addr %s300, 8
        %s302 = scalar_lea.vmem %s5, %s301
        %p303 = pneg %p183
        %p304 = pneg %p180
        %s305 = sand.u32 %s170, 1
        %s306 = scalar_lea.sflag [#allocation3], %s305
        %s307 = sand.u32 %s170, 1
        %s308 = scalar_lea.vmem [#allocation2], %s307
        %p309 = pneg %p209
        %p310 = pneg %p206
        %s311 = sand.u32 %s196, 1
        %s312 = scalar_lea.sflag [#allocation5], %s311
        %s313 = sand.u32 %s196, 1
        %s314 = scalar_lea.vmem [#allocation4], %s313
        %p315 = pneg %p235
        %p316 = pneg %p232
        %p317 = scmp.lt.s32.totalorder %s26, 1
        %s318 = scalar_select %p317, %s26, 1
        %s319 = smul.addr %s318, 2
        %s320 = smul.addr %s319, 8
        %s321 = scalar_lea.vmem %s8, %s320
        %p322 = scmp.lt.s32.totalorder %s26, 1
        %s323 = scalar_select %p322, %s26, 1
        %s324 = smul.addr %s323, 43
        %s325 = smul.addr %s324, 8
        %s326 = scalar_lea.vmem %s0, %s325
        %p327 = scmp.lt.s32.totalorder %s26, 1
        %s328 = scalar_select %p327, %s26, 1
        %s329 = smul.addr %s328, 36
        %s330 = smul.addr %s329, 8
        %s331 = scalar_lea.vmem %s5, %s330
        %p332 = scmp.lt.s32.totalorder %s26, 1
        %s333 = scalar_select %p332, %s26, 1
        %s334 = smul.addr %s333, 2
        %s335 = smul.addr %s334, 8
        %s336 = scalar_lea.vmem %s8, %s335
        %v337 = vld [vmem:[%s326] sm:$0xff]
        %v338 = vld [vmem:[%s326 + $0x8] sm:$0xff]
        %v339 = vld [vmem:[%s326 + $0x10] sm:$0xff]
        %v340 = vld [vmem:[%s326 + $0x18] sm:$0xff]
        %v341 = vld [vmem:[%s326 + $0x20] sm:$0xff]
        %v342 = vld [vmem:[%s326 + $0x28] sm:$0xff]
        %v343 = vld [vmem:[%s326 + $0x30] sm:$0xff]
        %v344 = vld [vmem:[%s326 + $0x38] sm:$0xff]
        %v345 = vld [vmem:[%s326 + $0x40] sm:$0xff]
        %v346 = vld [vmem:[%s326 + $0x48] sm:$0xff]
        %v347 = vld [vmem:[%s326 + $0x50] sm:$0xff]
        %v348 = vld [vmem:[%s326 + $0x58] sm:$0xff]
        %v349 = vld [vmem:[%s326 + $0x60] sm:$0xff]
        %v350 = vld [vmem:[%s326 + $0x68] sm:$0xff]
        %v351 = vld [vmem:[%s326 + $0x70] sm:$0xff]
        %v352 = vld [vmem:[%s326 + $0x78] sm:$0xff]
        %v353 = vld [vmem:[%s326 + $0x80] sm:$0xff]
        %v354 = vld [vmem:[%s326 + $0x88] sm:$0xff]
        %v355 = vld [vmem:[%s326 + $0x90] sm:$0xff]
        %v356 = vld [vmem:[%s326 + $0x98] sm:$0xff]
        %v357 = vld [vmem:[%s326 + $0xa0] sm:$0xff]
        %v358 = vld [vmem:[%s326 + $0xa8] sm:$0xff]
        %v359 = vld [vmem:[%s326 + $0xb0] sm:$0xff]
        %v360 = vld [vmem:[%s326 + $0xb8] sm:$0xff]
        %v361 = vld [vmem:[%s326 + $0xc0] sm:$0xff]
        %v362 = vld [vmem:[%s326 + $0xc8] sm:$0xff]
        %v363 = vld [vmem:[%s326 + $0xd0] sm:$0xff]
        %v364 = vld [vmem:[%s326 + $0xd8] sm:$0xff]
        %v365 = vld [vmem:[%s326 + $0xe0] sm:$0xff]
        %v366 = vld [vmem:[%s326 + $0xe8] sm:$0xff]
        %v367 = vld [vmem:[%s326 + $0xf0] sm:$0xff]
        %v368 = vld [vmem:[%s326 + $0xf8] sm:$0xff]
        %v369 = vld [vmem:[%s326 + $0x100] sm:$0xff]
        %v370 = vld [vmem:[%s326 + $0x108] sm:$0xff]
        %v371 = vld [vmem:[%s326 + $0x110] sm:$0xff]
        %v372 = vld [vmem:[%s326 + $0x118] sm:$0xff]
        %v373 = vld [vmem:[%s1] sm:$0xf]
        %v374 = vld [vmem:[%s326 + $0x1] sm:$0xff]
        %v375 = vld [vmem:[%s326 + $0x9] sm:$0xff]
        %v376 = vld [vmem:[%s326 + $0x11] sm:$0xff]
        %v377 = vld [vmem:[%s326 + $0x19] sm:$0xff]
        %v378 = vld [vmem:[%s326 + $0x21] sm:$0xff]
        %v379 = vld [vmem:[%s326 + $0x29] sm:$0xff]
        %v380 = vld [vmem:[%s326 + $0x31] sm:$0xff]
        %v381 = vld [vmem:[%s326 + $0x39] sm:$0xff]
        %v382 = vld [vmem:[%s326 + $0x41] sm:$0xff]
        %v383 = vld [vmem:[%s326 + $0x49] sm:$0xff]
        %v384 = vld [vmem:[%s326 + $0x51] sm:$0xff]
        %v385 = vld [vmem:[%s326 + $0x59] sm:$0xff]
        %v386 = vld [vmem:[%s326 + $0x61] sm:$0xff]
        %v387 = vld [vmem:[%s326 + $0x69] sm:$0xff]
        %v388 = vld [vmem:[%s326 + $0x71] sm:$0xff]
        %v389 = vld [vmem:[%s326 + $0x79] sm:$0xff]
        %v390 = vld [vmem:[%s326 + $0x81] sm:$0xff]
        %v391 = vld [vmem:[%s326 + $0x89] sm:$0xff]
        %v392 = vld [vmem:[%s326 + $0x91] sm:$0xff]
        %v393 = vld [vmem:[%s326 + $0x99] sm:$0xff]
        %v394 = vld [vmem:[%s326 + $0xa1] sm:$0xff]
        %v395 = vld [vmem:[%s326 + $0xa9] sm:$0xff]
        %v396 = vld [vmem:[%s326 + $0xb1] sm:$0xff]
        %v397 = vld [vmem:[%s326 + $0xb9] sm:$0xff]
        %v398 = vld [vmem:[%s326 + $0xc1] sm:$0xff]
        %v399 = vld [vmem:[%s326 + $0xc9] sm:$0xff]
        %v400 = vld [vmem:[%s326 + $0xd1] sm:$0xff]
        %v401 = vld [vmem:[%s326 + $0xd9] sm:$0xff]
        %v402 = vld [vmem:[%s326 + $0xe1] sm:$0xff]
        %v403 = vld [vmem:[%s326 + $0xe9] sm:$0xff]
        %v404 = vld [vmem:[%s326 + $0xf1] sm:$0xff]
        %v405 = vld [vmem:[%s326 + $0xf9] sm:$0xff]
        %v406 = vld [vmem:[%s326 + $0x101] sm:$0xff]
        %v407 = vld [vmem:[%s326 + $0x109] sm:$0xff]
        %v408 = vld [vmem:[%s326 + $0x111] sm:$0xff]
        %v409 = vld [vmem:[%s326 + $0x119] sm:$0xff]
        %s410 = scalar_lea.vmem %s1, 4
        %v411 = vld [vmem:[%s410] sm:$0xf]
        %vm412 = vcmask 31744
        %v414 = vsel %vm412, %v374, 0
        %v417 = vsel %vm412, %v375, 0
        %v420 = vsel %vm412, %v376, 0
        %v423 = vsel %vm412, %v377, 0
        %v426 = vsel %vm412, %v378, 0
        %v429 = vsel %vm412, %v379, 0
        %v432 = vsel %vm412, %v380, 0
        %v435 = vsel %vm412, %v381, 0
        %v438 = vsel %vm412, %v382, 0
        %v441 = vsel %vm412, %v383, 0
        %v444 = vsel %vm412, %v384, 0
        %v447 = vsel %vm412, %v385, 0
        %v450 = vsel %vm412, %v386, 0
        %v453 = vsel %vm412, %v387, 0
        %v456 = vsel %vm412, %v388, 0
        %v459 = vsel %vm412, %v389, 0
        %v462 = vsel %vm412, %v390, 0
        %v465 = vsel %vm412, %v391, 0
        %v468 = vsel %vm412, %v392, 0
        %v471 = vsel %vm412, %v393, 0
        %v474 = vsel %vm412, %v394, 0
        %v477 = vsel %vm412, %v395, 0
        %v480 = vsel %vm412, %v396, 0
        %v483 = vsel %vm412, %v397, 0
        %v486 = vsel %vm412, %v398, 0
        %v489 = vsel %vm412, %v399, 0
        %v492 = vsel %vm412, %v400, 0
        %v495 = vsel %vm412, %v401, 0
        %v498 = vsel %vm412, %v402, 0
        %v501 = vsel %vm412, %v403, 0
        %v504 = vsel %vm412, %v404, 0
        %v507 = vsel %vm412, %v405, 0
        %v510 = vsel %vm412, %v406, 0
        %v513 = vsel %vm412, %v407, 0
        %v516 = vsel %vm412, %v408, 0
        %v519 = vsel %vm412, %v409, 0
        %vm521 = vcmask 1043456
        %v523 = vsel %vm521, %v411, 0
        %525 = vmatprep.subr.mxu0 0.0
        %526 = vmatpush1.msra.mxu0 %v523
        %527 = vmatprep.subr.mxu0 0.0
        %528 = vmatpush1.msra.mxu0 0.0
        %529 = vmatprep.subr.mxu0 0.0
        %530 = vmatpush1.msra.mxu0 0.0
        %531 = vmatprep.subr.mxu0 0.0
        %532 = vmatpush1.msra.mxu0 0.0
        %533 = vmatprep.subr.mxu0 0.0
        %534 = vmatpush1.msra.mxu0 0.0
        %535 = vmatprep.subr.mxu0 0.0
        %536 = vmatpush1.msra.mxu0 0.0
        %537 = vmatprep.subr.mxu0 0.0
        %538 = vmatpush1.msra.mxu0 0.0
        %539 = vmatprep.subr.mxu0 0.0
        %540 = vmatpush1.msra.mxu0 0.0
        %541 = vmatprep.subr.mxu0 0.0
        %542 = vmatpush1.msra.mxu0 0.0
        %543 = vmatprep.subr.mxu0 0.0
        %544 = vmatpush1.msra.mxu0 0.0
        %545 = vmatprep.subr.mxu0 0.0
        %546 = vmatpush1.msra.mxu0 0.0
        %547 = vmatprep.subr.mxu0 0.0
        %548 = vmatpush1.msra.mxu0 0.0
        %549 = vmatprep.subr.mxu0 0.0
        %550 = vmatpush1.msra.mxu0 0.0
        %551 = vmatprep.subr.mxu0 0.0
        %552 = vmatpush1.msra.mxu0 0.0
        %553 = vmatprep.subr.mxu0 0.0
        %554 = vmatpush1.msra.mxu0 0.0
        %555 = vmatprep.subr.mxu0 0.0
        %556 = vmatpush1.msra.mxu0 0.0
        %557 = vmatprep.subr.mxu0 0.0
        %558 = vmatpush1.msra.mxu0 0.0
        %559 = vmatprep.subr.mxu0 0.0
        %560 = vmatpush1.msra.mxu0 0.0
        %561 = vmatprep.subr.mxu0 0.0
        %562 = vmatpush1.msra.mxu0 0.0
        %563 = vmatprep.subr.mxu0 0.0
        %564 = vmatpush1.msra.mxu0 0.0
        %565 = vmatprep.subr.mxu0 0.0
        %566 = vmatpush1.msra.mxu0 0.0
        %567 = vmatprep.subr.mxu0 0.0
        %568 = vmatpush1.msra.mxu0 0.0
        %569 = vmatprep.subr.mxu0 0.0
        %570 = vmatpush1.msra.mxu0 0.0
        %571 = vmatprep.subr.mxu0 0.0
        %572 = vmatpush1.msra.mxu0 0.0
        %573 = vmatprep.subr.mxu0 0.0
        %574 = vmatpush1.msra.mxu0 0.0
        %575 = vmatprep.subr.mxu0 0.0
        %576 = vmatpush1.msra.mxu0 0.0
        %577 = vmatprep.subr.mxu0 0.0
        %578 = vmatpush1.msra.mxu0 0.0
        %579 = vmatprep.subr.mxu0 0.0
        %580 = vmatpush1.msra.mxu0 0.0
        %581 = vmatprep.subr.mxu0 0.0
        %582 = vmatpush1.msra.mxu0 0.0
        %583 = vmatprep.subr.mxu0 0.0
        %584 = vmatpush1.msra.mxu0 0.0
        %585 = vmatprep.subr.mxu0 0.0
        %586 = vmatpush1.msra.mxu0 0.0
        %587 = vmatprep.subr.mxu0 0.0
        %588 = vmatpush1.msra.mxu0 0.0
        %589 = vmatprep.mubr.f32.mxu0 0.0
        %590 = vmatmul.mubr.f32.gmra.mrb[0].mxu0 %v414
        %v591 = vpop.f32.mrb[0].mxu0
        %v592 = vadd.f32 0.0, %v591
        %v593 = vpop.f32.mrb[0].mxu0
        %594 = vmatprep.mubr.f32.mxu0 0.0
        %595 = vmatmul.mubr.f32.gmra.mrb[0].mxu0 %v417
        %v596 = vpop.f32.mrb[0].mxu0
        %v597 = vadd.f32 0.0, %v596
        %v598 = vpop.f32.mrb[0].mxu0
        %599 = vmatprep.mubr.f32.mxu0 0.0
        %600 = vmatmul.mubr.f32.gmra.mrb[0].mxu0 %v420
        %v601 = vpop.f32.mrb[0].mxu0
        %v602 = vadd.f32 0.0, %v601
        %v603 = vpop.f32.mrb[0].mxu0
        %604 = vmatprep.mubr.f32.mxu0 0.0
        %605 = vmatmul.mubr.f32.gmra.mrb[0].mxu0 %v423
        %v606 = vpop.f32.mrb[0].mxu0
        %v607 = vadd.f32 0.0, %v606
        %v608 = vpop.f32.mrb[0].mxu0
        %609 = vmatprep.mubr.f32.mxu0 0.0
        %610 = vmatmul.mubr.f32.gmra.mrb[0].mxu0 %v426
        %v611 = vpop.f32.mrb[0].mxu0
        %v612 = vadd.f32 0.0, %v611
        %v613 = vpop.f32.mrb[0].mxu0
        %614 = vmatprep.mubr.f32.mxu0 0.0
        %615 = vmatmul.mubr.f32.gmra.mrb[0].mxu0 %v429
        %v616 = vpop.f32.mrb[0].mxu0
        %v617 = vadd.f32 0.0, %v616
        %v618 = vpop.f32.mrb[0].mxu0
        %619 = vmatprep.mubr.f32.mxu0 0.0
        %620 = vmatmul.mubr.f32.gmra.mrb[0].mxu0 %v432
        %v621 = vpop.f32.mrb[0].mxu0
        %v622 = vadd.f32 0.0, %v621
        %v623 = vpop.f32.mrb[0].mxu0
        %624 = vmatprep.mubr.f32.mxu0 0.0
        %625 = vmatmul.mubr.f32.gmra.mrb[0].mxu0 %v435
        %v626 = vpop.f32.mrb[0].mxu0
        %v627 = vadd.f32 0.0, %v626
        %v628 = vpop.f32.mrb[0].mxu0
        %629 = vmatprep.mubr.f32.mxu0 0.0
        %630 = vmatmul.mubr.f32.gmra.mrb[0].mxu0 %v438
        %v631 = vpop.f32.mrb[0].mxu0
        %v632 = vadd.f32 0.0, %v631
        %v633 = vpop.f32.mrb[0].mxu0
        %634 = vmatprep.mubr.f32.mxu0 0.0
        %635 = vmatmul.mubr.f32.gmra.mrb[0].mxu0 %v441
        %v636 = vpop.f32.mrb[0].mxu0
        %v637 = vadd.f32 0.0, %v636
        %v638 = vpop.f32.mrb[0].mxu0
        %639 = vmatprep.mubr.f32.mxu0 0.0
        %640 = vmatmul.mubr.f32.gmra.mrb[0].mxu0 %v444
        %v641 = vpop.f32.mrb[0].mxu0
        %v642 = vadd.f32 0.0, %v641
        %v643 = vpop.f32.mrb[0].mxu0
        %644 = vmatprep.mubr.f32.mxu0 0.0
        %645 = vmatmul.mubr.f32.gmra.mrb[0].mxu0 %v447
        %v646 = vpop.f32.mrb[0].mxu0
        %v647 = vadd.f32 0.0, %v646
        %v648 = vpop.f32.mrb[0].mxu0
        %649 = vmatprep.mubr.f32.mxu0 0.0
        %650 = vmatmul.mubr.f32.gmra.mrb[0].mxu0 %v450
        %v651 = vpop.f32.mrb[0].mxu0
        %v652 = vadd.f32 0.0, %v651
        %v653 = vpop.f32.mrb[0].mxu0
        %654 = vmatprep.mubr.f32.mxu0 0.0
        %655 = vmatmul.mubr.f32.gmra.mrb[0].mxu0 %v453
        %v656 = vpop.f32.mrb[0].mxu0
        %v657 = vadd.f32 0.0, %v656
        %v658 = vpop.f32.mrb[0].mxu0
        %659 = vmatprep.mubr.f32.mxu0 0.0
        %660 = vmatmul.mubr.f32.gmra.mrb[0].mxu0 %v456
        %v661 = vpop.f32.mrb[0].mxu0
        %v662 = vadd.f32 0.0, %v661
        %v663 = vpop.f32.mrb[0].mxu0
        %664 = vmatprep.mubr.f32.mxu0 0.0
        %665 = vmatmul.mubr.f32.gmra.mrb[0].mxu0 %v459
        %v666 = vpop.f32.mrb[0].mxu0
        %v667 = vadd.f32 0.0, %v666
        %v668 = vpop.f32.mrb[0].mxu0
        %669 = vmatprep.mubr.f32.mxu0 0.0
        %670 = vmatmul.mubr.f32.gmra.mrb[0].mxu0 %v462
        %v671 = vpop.f32.mrb[0].mxu0
        %v672 = vadd.f32 0.0, %v671
        %v673 = vpop.f32.mrb[0].mxu0
        %674 = vmatprep.mubr.f32.mxu0 0.0
        %675 = vmatmul.mubr.f32.gmra.mrb[0].mxu0 %v465
        %v676 = vpop.f32.mrb[0].mxu0
        %v677 = vadd.f32 0.0, %v676
        %v678 = vpop.f32.mrb[0].mxu0
        %679 = vmatprep.mubr.f32.mxu0 0.0
        %680 = vmatmul.mubr.f32.gmra.mrb[0].mxu0 %v468
        %v681 = vpop.f32.mrb[0].mxu0
        %v682 = vadd.f32 0.0, %v681
        %v683 = vpop.f32.mrb[0].mxu0
        %684 = vmatprep.mubr.f32.mxu0 0.0
        %685 = vmatmul.mubr.f32.gmra.mrb[0].mxu0 %v471
        %v686 = vpop.f32.mrb[0].mxu0
        %v687 = vadd.f32 0.0, %v686
        %v688 = vpop.f32.mrb[0].mxu0
        %689 = vmatprep.mubr.f32.mxu0 0.0
        %690 = vmatmul.mubr.f32.gmra.mrb[0].mxu0 %v474
        %v691 = vpop.f32.mrb[0].mxu0
        %v692 = vadd.f32 0.0, %v691
        %v693 = vpop.f32.mrb[0].mxu0
        %694 = vmatprep.mubr.f32.mxu0 0.0
        %695 = vmatmul.mubr.f32.gmra.mrb[0].mxu0 %v477
        %v696 = vpop.f32.mrb[0].mxu0
        %v697 = vadd.f32 0.0, %v696
        %v698 = vpop.f32.mrb[0].mxu0
        %699 = vmatprep.mubr.f32.mxu0 0.0
        %700 = vmatmul.mubr.f32.gmra.mrb[0].mxu0 %v480
        %v701 = vpop.f32.mrb[0].mxu0
        %v702 = vadd.f32 0.0, %v701
        %v703 = vpop.f32.mrb[0].mxu0
        %704 = vmatprep.mubr.f32.mxu0 0.0
        %705 = vmatmul.mubr.f32.gmra.mrb[0].mxu0 %v483
        %v706 = vpop.f32.mrb[0].mxu0
        %v707 = vadd.f32 0.0, %v706
        %v708 = vpop.f32.mrb[0].mxu0
        %709 = vmatprep.mubr.f32.mxu0 0.0
        %710 = vmatmul.mubr.f32.gmra.mrb[0].mxu0 %v486
        %v711 = vpop.f32.mrb[0].mxu0
        %v712 = vadd.f32 0.0, %v711
        %v713 = vpop.f32.mrb[0].mxu0
        %714 = vmatprep.mubr.f32.mxu0 0.0
        %715 = vmatmul.mubr.f32.gmra.mrb[0].mxu0 %v489
        %v716 = vpop.f32.mrb[0].mxu0
        %v717 = vadd.f32 0.0, %v716
        %v718 = vpop.f32.mrb[0].mxu0
        %719 = vmatprep.mubr.f32.mxu0 0.0
        %720 = vmatmul.mubr.f32.gmra.mrb[0].mxu0 %v492
        %v721 = vpop.f32.mrb[0].mxu0
        %v722 = vadd.f32 0.0, %v721
        %v723 = vpop.f32.mrb[0].mxu0
        %724 = vmatprep.mubr.f32.mxu0 0.0
        %725 = vmatmul.mubr.f32.gmra.mrb[0].mxu0 %v495
        %v726 = vpop.f32.mrb[0].mxu0
        %v727 = vadd.f32 0.0, %v726
        %v728 = vpop.f32.mrb[0].mxu0
        %729 = vmatprep.mubr.f32.mxu0 0.0
        %730 = vmatmul.mubr.f32.gmra.mrb[0].mxu0 %v498
        %v731 = vpop.f32.mrb[0].mxu0
        %v732 = vadd.f32 0.0, %v731
        %v733 = vpop.f32.mrb[0].mxu0
        %734 = vmatprep.mubr.f32.mxu0 0.0
        %735 = vmatmul.mubr.f32.gmra.mrb[0].mxu0 %v501
        %v736 = vpop.f32.mrb[0].mxu0
        %v737 = vadd.f32 0.0, %v736
        %v738 = vpop.f32.mrb[0].mxu0
        %739 = vmatprep.mubr.f32.mxu0 0.0
        %740 = vmatmul.mubr.f32.gmra.mrb[0].mxu0 %v504
        %v741 = vpop.f32.mrb[0].mxu0
        %v742 = vadd.f32 0.0, %v741
        %v743 = vpop.f32.mrb[0].mxu0
        %744 = vmatprep.mubr.f32.mxu0 0.0
        %745 = vmatmul.mubr.f32.gmra.mrb[0].mxu0 %v507
        %v746 = vpop.f32.mrb[0].mxu0
        %v747 = vadd.f32 0.0, %v746
        %v748 = vpop.f32.mrb[0].mxu0
        %749 = vmatprep.mubr.f32.mxu0 0.0
        %750 = vmatmul.mubr.f32.gmra.mrb[0].mxu0 %v510
        %v751 = vpop.f32.mrb[0].mxu0
        %v752 = vadd.f32 0.0, %v751
        %v753 = vpop.f32.mrb[0].mxu0
        %754 = vmatprep.mubr.f32.mxu0 0.0
        %755 = vmatmul.mubr.f32.gmra.mrb[0].mxu0 %v513
        %v756 = vpop.f32.mrb[0].mxu0
        %v757 = vadd.f32 0.0, %v756
        %v758 = vpop.f32.mrb[0].mxu0
        %759 = vmatprep.mubr.f32.mxu0 0.0
        %760 = vmatmul.mubr.f32.gmra.mrb[0].mxu0 %v516
        %v761 = vpop.f32.mrb[0].mxu0
        %v762 = vadd.f32 0.0, %v761
        %v763 = vpop.f32.mrb[0].mxu0
        %764 = vmatprep.mubr.f32.mxu0 0.0
        %765 = vmatmul.mubr.f32.gmra.mrb[0].mxu0 %v519
        %v766 = vpop.f32.mrb[0].mxu0
        %v767 = vadd.f32 0.0, %v766
        %v768 = vpop.f32.mrb[0].mxu0
        %769 = vdwg.mxu0
        %v771 = vsel %vm412, %v337, 0
        %v774 = vsel %vm412, %v338, 0
        %v777 = vsel %vm412, %v339, 0
        %v780 = vsel %vm412, %v340, 0
        %v783 = vsel %vm412, %v341, 0
        %v786 = vsel %vm412, %v342, 0
        %v789 = vsel %vm412, %v343, 0
        %v792 = vsel %vm412, %v344, 0
        %v795 = vsel %vm412, %v345, 0
        %v798 = vsel %vm412, %v346, 0
        %v801 = vsel %vm412, %v347, 0
        %v804 = vsel %vm412, %v348, 0
        %v807 = vsel %vm412, %v349, 0
        %v810 = vsel %vm412, %v350, 0
        %v813 = vsel %vm412, %v351, 0
        %v816 = vsel %vm412, %v352, 0
        %v819 = vsel %vm412, %v353, 0
        %v822 = vsel %vm412, %v354, 0
        %v825 = vsel %vm412, %v355, 0
        %v828 = vsel %vm412, %v356, 0
        %v831 = vsel %vm412, %v357, 0
        %v834 = vsel %vm412, %v358, 0
        %v837 = vsel %vm412, %v359, 0
        %v840 = vsel %vm412, %v360, 0
        %v843 = vsel %vm412, %v361, 0
        %v846 = vsel %vm412, %v362, 0
        %v849 = vsel %vm412, %v363, 0
        %v852 = vsel %vm412, %v364, 0
        %v855 = vsel %vm412, %v365, 0
        %v858 = vsel %vm412, %v366, 0
        %v861 = vsel %vm412, %v367, 0
        %v864 = vsel %vm412, %v368, 0
        %v867 = vsel %vm412, %v369, 0
        %v870 = vsel %vm412, %v370, 0
        %v873 = vsel %vm412, %v371, 0
        %v876 = vsel %vm412, %v372, 0
        %v879 = vsel %vm521, %v373, 0
        %881 = vmatprep.subr.mxu0 0.0
        %882 = vmatpush1.msra.mxu0 %v879
        %883 = vmatprep.subr.mxu0 0.0
        %884 = vmatpush1.msra.mxu0 0.0
        %885 = vmatprep.subr.mxu0 0.0
        %886 = vmatpush1.msra.mxu0 0.0
        %887 = vmatprep.subr.mxu0 0.0
        %888 = vmatpush1.msra.mxu0 0.0
        %889 = vmatprep.subr.mxu0 0.0
        %890 = vmatpush1.msra.mxu0 0.0
        %891 = vmatprep.subr.mxu0 0.0
        %892 = vmatpush1.msra.mxu0 0.0
        %893 = vmatprep.subr.mxu0 0.0
        %894 = vmatpush1.msra.mxu0 0.0
        %895 = vmatprep.subr.mxu0 0.0
        %896 = vmatpush1.msra.mxu0 0.0
        %897 = vmatprep.subr.mxu0 0.0
        %898 = vmatpush1.msra.mxu0 0.0
        %899 = vmatprep.subr.mxu0 0.0
        %900 = vmatpush1.msra.mxu0 0.0
        %901 = vmatprep.subr.mxu0 0.0
        %902 = vmatpush1.msra.mxu0 0.0
        %903 = vmatprep.subr.mxu0 0.0
        %904 = vmatpush1.msra.mxu0 0.0
        %905 = vmatprep.subr.mxu0 0.0
        %906 = vmatpush1.msra.mxu0 0.0
        %907 = vmatprep.subr.mxu0 0.0
        %908 = vmatpush1.msra.mxu0 0.0
        %909 = vmatprep.subr.mxu0 0.0
        %910 = vmatpush1.msra.mxu0 0.0
        %911 = vmatprep.subr.mxu0 0.0
        %912 = vmatpush1.msra.mxu0 0.0
        %913 = vmatprep.subr.mxu0 0.0
        %914 = vmatpush1.msra.mxu0 0.0
        %915 = vmatprep.subr.mxu0 0.0
        %916 = vmatpush1.msra.mxu0 0.0
        %917 = vmatprep.subr.mxu0 0.0
        %918 = vmatpush1.msra.mxu0 0.0
        %919 = vmatprep.subr.mxu0 0.0
        %920 = vmatpush1.msra.mxu0 0.0
        %921 = vmatprep.subr.mxu0 0.0
        %922 = vmatpush1.msra.mxu0 0.0
        %923 = vmatprep.subr.mxu0 0.0
        %924 = vmatpush1.msra.mxu0 0.0
        %925 = vmatprep.subr.mxu0 0.0
        %926 = vmatpush1.msra.mxu0 0.0
        %927 = vmatprep.subr.mxu0 0.0
        %928 = vmatpush1.msra.mxu0 0.0
        %929 = vmatprep.subr.mxu0 0.0
        %930 = vmatpush1.msra.mxu0 0.0
        %931 = vmatprep.subr.mxu0 0.0
        %932 = vmatpush1.msra.mxu0 0.0
        %933 = vmatprep.subr.mxu0 0.0
        %934 = vmatpush1.msra.mxu0 0.0
        %935 = vmatprep.subr.mxu0 0.0
        %936 = vmatpush1.msra.mxu0 0.0
        %937 = vmatprep.subr.mxu0 0.0
        %938 = vmatpush1.msra.mxu0 0.0
        %939 = vmatprep.subr.mxu0 0.0
        %940 = vmatpush1.msra.mxu0 0.0
        %941 = vmatprep.subr.mxu0 0.0
        %942 = vmatpush1.msra.mxu0 0.0
        %943 = vmatprep.subr.mxu0 0.0
        %944 = vmatpush1.msra.mxu0 0.0
        %945 = vmatprep.mubr.f32.mxu0 0.0
        %946 = vmatmul.mubr.f32.gmra.mrb[0].mxu0 %v771
        %v947 = vpop.f32.mrb[0].mxu0
        %v948 = vadd.f32 %v592, %v947
        %v949 = vpop.f32.mrb[0].mxu0
        %950 = vmatprep.mubr.f32.mxu0 0.0
        %951 = vmatmul.mubr.f32.gmra.mrb[0].mxu0 %v774
        %v952 = vpop.f32.mrb[0].mxu0
        %v953 = vadd.f32 %v597, %v952
        %v954 = vpop.f32.mrb[0].mxu0
        %955 = vmatprep.mubr.f32.mxu0 0.0
        %956 = vmatmul.mubr.f32.gmra.mrb[0].mxu0 %v777
        %v957 = vpop.f32.mrb[0].mxu0
        %v958 = vadd.f32 %v602, %v957
        %v959 = vpop.f32.mrb[0].mxu0
        %960 = vmatprep.mubr.f32.mxu0 0.0
        %961 = vmatmul.mubr.f32.gmra.mrb[0].mxu0 %v780
        %v962 = vpop.f32.mrb[0].mxu0
        %v963 = vadd.f32 %v607, %v962
        %v964 = vpop.f32.mrb[0].mxu0
        %965 = vmatprep.mubr.f32.mxu0 0.0
        %966 = vmatmul.mubr.f32.gmra.mrb[0].mxu0 %v783
        %v967 = vpop.f32.mrb[0].mxu0
        %v968 = vadd.f32 %v612, %v967
        %v969 = vpop.f32.mrb[0].mxu0
        %970 = vmatprep.mubr.f32.mxu0 0.0
        %971 = vmatmul.mubr.f32.gmra.mrb[0].mxu0 %v786
        %v972 = vpop.f32.mrb[0].mxu0
        %v973 = vadd.f32 %v617, %v972
        %v974 = vpop.f32.mrb[0].mxu0
        %975 = vmatprep.mubr.f32.mxu0 0.0
        %976 = vmatmul.mubr.f32.gmra.mrb[0].mxu0 %v789
        %v977 = vpop.f32.mrb[0].mxu0
        %v978 = vadd.f32 %v622, %v977
        %v979 = vpop.f32.mrb[0].mxu0
        %980 = vmatprep.mubr.f32.mxu0 0.0
        %981 = vmatmul.mubr.f32.gmra.mrb[0].mxu0 %v792
        %v982 = vpop.f32.mrb[0].mxu0
        %v983 = vadd.f32 %v627, %v982
        %v984 = vpop.f32.mrb[0].mxu0
        %985 = vmatprep.mubr.f32.mxu0 0.0
        %986 = vmatmul.mubr.f32.gmra.mrb[0].mxu0 %v795
        %v987 = vpop.f32.mrb[0].mxu0
        %v988 = vadd.f32 %v632, %v987
        %v989 = vpop.f32.mrb[0].mxu0
        %990 = vmatprep.mubr.f32.mxu0 0.0
        %991 = vmatmul.mubr.f32.gmra.mrb[0].mxu0 %v798
        %v992 = vpop.f32.mrb[0].mxu0
        %v993 = vadd.f32 %v637, %v992
        %v994 = vpop.f32.mrb[0].mxu0
        %995 = vmatprep.mubr.f32.mxu0 0.0
        %996 = vmatmul.mubr.f32.gmra.mrb[0].mxu0 %v801
        %v997 = vpop.f32.mrb[0].mxu0
        %v998 = vadd.f32 %v642, %v997
        %v999 = vpop.f32.mrb[0].mxu0
        %1000 = vmatprep.mubr.f32.mxu0 0.0
        %1001 = vmatmul.mubr.f32.gmra.mrb[0].mxu0 %v804
        %v1002 = vpop.f32.mrb[0].mxu0
        %v1003 = vadd.f32 %v647, %v1002
        %v1004 = vpop.f32.mrb[0].mxu0
        %1005 = vmatprep.mubr.f32.mxu0 0.0
        %1006 = vmatmul.mubr.f32.gmra.mrb[0].mxu0 %v807
        %v1007 = vpop.f32.mrb[0].mxu0
        %v1008 = vadd.f32 %v652, %v1007
        %v1009 = vpop.f32.mrb[0].mxu0
        %1010 = vmatprep.mubr.f32.mxu0 0.0
        %1011 = vmatmul.mubr.f32.gmra.mrb[0].mxu0 %v810
        %v1012 = vpop.f32.mrb[0].mxu0
        %v1013 = vadd.f32 %v657, %v1012
        %v1014 = vpop.f32.mrb[0].mxu0
        %1015 = vmatprep.mubr.f32.mxu0 0.0
        %1016 = vmatmul.mubr.f32.gmra.mrb[0].mxu0 %v813
        %v1017 = vpop.f32.mrb[0].mxu0
        %v1018 = vadd.f32 %v662, %v1017
        %v1019 = vpop.f32.mrb[0].mxu0
        %1020 = vmatprep.mubr.f32.mxu0 0.0
        %1021 = vmatmul.mubr.f32.gmra.mrb[0].mxu0 %v816
        %v1022 = vpop.f32.mrb[0].mxu0
        %v1023 = vadd.f32 %v667, %v1022
        %v1024 = vpop.f32.mrb[0].mxu0
        %1025 = vmatprep.mubr.f32.mxu0 0.0
        %1026 = vmatmul.mubr.f32.gmra.mrb[0].mxu0 %v819
        %v1027 = vpop.f32.mrb[0].mxu0
        %v1028 = vadd.f32 %v672, %v1027
        %v1029 = vpop.f32.mrb[0].mxu0
        %1030 = vmatprep.mubr.f32.mxu0 0.0
        %1031 = vmatmul.mubr.f32.gmra.mrb[0].mxu0 %v822
        %v1032 = vpop.f32.mrb[0].mxu0
        %v1033 = vadd.f32 %v677, %v1032
        %v1034 = vpop.f32.mrb[0].mxu0
        %1035 = vmatprep.mubr.f32.mxu0 0.0
        %1036 = vmatmul.mubr.f32.gmra.mrb[0].mxu0 %v825
        %v1037 = vpop.f32.mrb[0].mxu0
        %v1038 = vadd.f32 %v682, %v1037
        %v1039 = vpop.f32.mrb[0].mxu0
        %1040 = vmatprep.mubr.f32.mxu0 0.0
        %1041 = vmatmul.mubr.f32.gmra.mrb[0].mxu0 %v828
        %v1042 = vpop.f32.mrb[0].mxu0
        %v1043 = vadd.f32 %v687, %v1042
        %v1044 = vpop.f32.mrb[0].mxu0
        %1045 = vmatprep.mubr.f32.mxu0 0.0
        %1046 = vmatmul.mubr.f32.gmra.mrb[0].mxu0 %v831
        %v1047 = vpop.f32.mrb[0].mxu0
        %v1048 = vadd.f32 %v692, %v1047
        %v1049 = vpop.f32.mrb[0].mxu0
        %1050 = vmatprep.mubr.f32.mxu0 0.0
        %1051 = vmatmul.mubr.f32.gmra.mrb[0].mxu0 %v834
        %v1052 = vpop.f32.mrb[0].mxu0
        %v1053 = vadd.f32 %v697, %v1052
        %v1054 = vpop.f32.mrb[0].mxu0
        %1055 = vmatprep.mubr.f32.mxu0 0.0
        %1056 = vmatmul.mubr.f32.gmra.mrb[0].mxu0 %v837
        %v1057 = vpop.f32.mrb[0].mxu0
        %v1058 = vadd.f32 %v702, %v1057
        %v1059 = vpop.f32.mrb[0].mxu0
        %1060 = vmatprep.mubr.f32.mxu0 0.0
        %1061 = vmatmul.mubr.f32.gmra.mrb[0].mxu0 %v840
        %v1062 = vpop.f32.mrb[0].mxu0
        %v1063 = vadd.f32 %v707, %v1062
        %v1064 = vpop.f32.mrb[0].mxu0
        %1065 = vmatprep.mubr.f32.mxu0 0.0
        %1066 = vmatmul.mubr.f32.gmra.mrb[0].mxu0 %v843
        %v1067 = vpop.f32.mrb[0].mxu0
        %v1068 = vadd.f32 %v712, %v1067
        %v1069 = vpop.f32.mrb[0].mxu0
        %1070 = vmatprep.mubr.f32.mxu0 0.0
        %1071 = vmatmul.mubr.f32.gmra.mrb[0].mxu0 %v846
        %v1072 = vpop.f32.mrb[0].mxu0
        %v1073 = vadd.f32 %v717, %v1072
        %v1074 = vpop.f32.mrb[0].mxu0
        %1075 = vmatprep.mubr.f32.mxu0 0.0
        %1076 = vmatmul.mubr.f32.gmra.mrb[0].mxu0 %v849
        %v1077 = vpop.f32.mrb[0].mxu0
        %v1078 = vadd.f32 %v722, %v1077
        %v1079 = vpop.f32.mrb[0].mxu0
        %1080 = vmatprep.mubr.f32.mxu0 0.0
        %1081 = vmatmul.mubr.f32.gmra.mrb[0].mxu0 %v852
        %v1082 = vpop.f32.mrb[0].mxu0
        %v1083 = vadd.f32 %v727, %v1082
        %v1084 = vpop.f32.mrb[0].mxu0
        %1085 = vmatprep.mubr.f32.mxu0 0.0
        %1086 = vmatmul.mubr.f32.gmra.mrb[0].mxu0 %v855
        %v1087 = vpop.f32.mrb[0].mxu0
        %v1088 = vadd.f32 %v732, %v1087
        %v1089 = vpop.f32.mrb[0].mxu0
        %1090 = vmatprep.mubr.f32.mxu0 0.0
        %1091 = vmatmul.mubr.f32.gmra.mrb[0].mxu0 %v858
        %v1092 = vpop.f32.mrb[0].mxu0
        %v1093 = vadd.f32 %v737, %v1092
        %v1094 = vpop.f32.mrb[0].mxu0
        %1095 = vmatprep.mubr.f32.mxu0 0.0
        %1096 = vmatmul.mubr.f32.gmra.mrb[0].mxu0 %v861
        %v1097 = vpop.f32.mrb[0].mxu0
        %v1098 = vadd.f32 %v742, %v1097
        %v1099 = vpop.f32.mrb[0].mxu0
        %1100 = vmatprep.mubr.f32.mxu0 0.0
        %1101 = vmatmul.mubr.f32.gmra.mrb[0].mxu0 %v864
        %v1102 = vpop.f32.mrb[0].mxu0
        %v1103 = vadd.f32 %v747, %v1102
        %v1104 = vpop.f32.mrb[0].mxu0
        %1105 = vmatprep.mubr.f32.mxu0 0.0
        %1106 = vmatmul.mubr.f32.gmra.mrb[0].mxu0 %v867
        %v1107 = vpop.f32.mrb[0].mxu0
        %v1108 = vadd.f32 %v752, %v1107
        %v1109 = vpop.f32.mrb[0].mxu0
        %1110 = vmatprep.mubr.f32.mxu0 0.0
        %1111 = vmatmul.mubr.f32.gmra.mrb[0].mxu0 %v870
        %v1112 = vpop.f32.mrb[0].mxu0
        %v1113 = vadd.f32 %v757, %v1112
        %v1114 = vpop.f32.mrb[0].mxu0
        %1115 = vmatprep.mubr.f32.mxu0 0.0
        %1116 = vmatmul.mubr.f32.gmra.mrb[0].mxu0 %v873
        %v1117 = vpop.f32.mrb[0].mxu0
        %v1118 = vadd.f32 %v762, %v1117
        %v1119 = vpop.f32.mrb[0].mxu0
        %1120 = vmatprep.mubr.f32.mxu0 0.0
        %1121 = vmatmul.mubr.f32.gmra.mrb[0].mxu0 %v876
        %v1122 = vpop.f32.mrb[0].mxu0
        %v1123 = vadd.f32 %v767, %v1122
        %v1124 = vpop.f32.mrb[0].mxu0
        %1125 = vdwg.mxu0
        %v1126 = vld [vmem:[%s326 + $0x2] sm:$0xff]
        %v1127 = vld [vmem:[%s326 + $0xa] sm:$0xff]
        %v1128 = vld [vmem:[%s326 + $0x12] sm:$0xff]
        %v1129 = vld [vmem:[%s326 + $0x1a] sm:$0xff]
        %v1130 = vld [vmem:[%s326 + $0x22] sm:$0xff]
        %v1131 = vld [vmem:[%s326 + $0x2a] sm:$0xff]
        %v1132 = vld [vmem:[%s326 + $0x32] sm:$0xff]
        %v1133 = vld [vmem:[%s326 + $0x3a] sm:$0xff]
        %v1134 = vld [vmem:[%s326 + $0x42] sm:$0xff]
        %v1135 = vld [vmem:[%s326 + $0x4a] sm:$0xff]
        %v1136 = vld [vmem:[%s326 + $0x52] sm:$0xff]
        %v1137 = vld [vmem:[%s326 + $0x5a] sm:$0xff]
        %v1138 = vld [vmem:[%s326 + $0x62] sm:$0xff]
        %v1139 = vld [vmem:[%s326 + $0x6a] sm:$0xff]
        %v1140 = vld [vmem:[%s326 + $0x72] sm:$0xff]
        %v1141 = vld [vmem:[%s326 + $0x7a] sm:$0xff]
        %v1142 = vld [vmem:[%s326 + $0x82] sm:$0xff]
        %v1143 = vld [vmem:[%s326 + $0x8a] sm:$0xff]
        %v1144 = vld [vmem:[%s326 + $0x92] sm:$0xff]
        %v1145 = vld [vmem:[%s326 + $0x9a] sm:$0xff]
        %v1146 = vld [vmem:[%s326 + $0xa2] sm:$0xff]
        %v1147 = vld [vmem:[%s326 + $0xaa] sm:$0xff]
        %v1148 = vld [vmem:[%s326 + $0xb2] sm:$0xff]
        %v1149 = vld [vmem:[%s326 + $0xba] sm:$0xff]
        %v1150 = vld [vmem:[%s326 + $0xc2] sm:$0xff]
        %v1151 = vld [vmem:[%s326 + $0xca] sm:$0xff]
        %v1152 = vld [vmem:[%s326 + $0xd2] sm:$0xff]
        %v1153 = vld [vmem:[%s326 + $0xda] sm:$0xff]
        %v1154 = vld [vmem:[%s326 + $0xe2] sm:$0xff]
        %v1155 = vld [vmem:[%s326 + $0xea] sm:$0xff]
        %v1156 = vld [vmem:[%s326 + $0xf2] sm:$0xff]
        %v1157 = vld [vmem:[%s326 + $0xfa] sm:$0xff]
        %v1158 = vld [vmem:[%s326 + $0x102] sm:$0xff]
        %v1159 = vld [vmem:[%s326 + $0x10a] sm:$0xff]
        %v1160 = vld [vmem:[%s326 + $0x112] sm:$0xff]
        %v1161 = vld [vmem:[%s326 + $0x11a] sm:$0xff]
        %s1162 = scalar_lea.vmem %s1, 8
        %v1163 = vld [vmem:[%s1162] sm:$0xf]
        %v1165 = vsel %vm412, %v1126, 0
        %v1168 = vsel %vm412, %v1127, 0
        %v1171 = vsel %vm412, %v1128, 0
        %v1174 = vsel %vm412, %v1129, 0
        %v1177 = vsel %vm412, %v1130, 0
        %v1180 = vsel %vm412, %v1131, 0
        %v1183 = vsel %vm412, %v1132, 0
        %v1186 = vsel %vm412, %v1133, 0
        %v1189 = vsel %vm412, %v1134, 0
        %v1192 = vsel %vm412, %v1135, 0
        %v1195 = vsel %vm412, %v1136, 0
        %v1198 = vsel %vm412, %v1137, 0
        %v1201 = vsel %vm412, %v1138, 0
        %v1204 = vsel %vm412, %v1139, 0
        %v1207 = vsel %vm412, %v1140, 0
        %v1210 = vsel %vm412, %v1141, 0
        %v1213 = vsel %vm412, %v1142, 0
        %v1216 = vsel %vm412, %v1143, 0
        %v1219 = vsel %vm412, %v1144, 0
        %v1222 = vsel %vm412, %v1145, 0
        %v1225 = vsel %vm412, %v1146, 0
        %v1228 = vsel %vm412, %v1147, 0
        %v1231 = vsel %vm412, %v1148, 0
        %v1234 = vsel %vm412, %v1149, 0
        %v1237 = vsel %vm412, %v1150, 0
        %v1240 = vsel %vm412, %v1151, 0
        %v1243 = vsel %vm412, %v1152, 0
        %v1246 = vsel %vm412, %v1153, 0
        %v1249 = vsel %vm412, %v1154, 0
        %v1252 = vsel %vm412, %v1155, 0
        %v1255 = vsel %vm412, %v1156, 0
        %v1258 = vsel %vm412, %v1157, 0
        %v1261 = vsel %vm412, %v1158, 0
        %v1264 = vsel %vm412, %v1159, 0
        %v1267 = vsel %vm412, %v1160, 0
        %v1270 = vsel %vm412, %v1161, 0
        %v1273 = vsel %vm521, %v1163, 0
        %1275 = vmatprep.subr.mxu0 0.0
        %1276 = vmatpush1.msra.mxu0 %v1273
        %1277 = vmatprep.subr.mxu0 0.0
        %1278 = vmatpush1.msra.mxu0 0.0
        %1279 = vmatprep.subr.mxu0 0.0
        %1280 = vmatpush1.msra.mxu0 0.0
        %1281 = vmatprep.subr.mxu0 0.0
        %1282 = vmatpush1.msra.mxu0 0.0
        %1283 = vmatprep.subr.mxu0 0.0
        %1284 = vmatpush1.msra.mxu0 0.0
        %1285 = vmatprep.subr.mxu0 0.0
        %1286 = vmatpush1.msra.mxu0 0.0
        %1287 = vmatprep.subr.mxu0 0.0
        %1288 = vmatpush1.msra.mxu0 0.0
        %1289 = vmatprep.subr.mxu0 0.0
        %1290 = vmatpush1.msra.mxu0 0.0
        %1291 = vmatprep.subr.mxu0 0.0
        %1292 = vmatpush1.msra.mxu0 0.0
        %1293 = vmatprep.subr.mxu0 0.0
        %1294 = vmatpush1.msra.mxu0 0.0
        %1295 = vmatprep.subr.mxu0 0.0
        %1296 = vmatpush1.msra.mxu0 0.0
        %1297 = vmatprep.subr.mxu0 0.0
        %1298 = vmatpush1.msra.mxu0 0.0
        %1299 = vmatprep.subr.mxu0 0.0
        %1300 = vmatpush1.msra.mxu0 0.0
        %1301 = vmatprep.subr.mxu0 0.0
        %1302 = vmatpush1.msra.mxu0 0.0
        %1303 = vmatprep.subr.mxu0 0.0
        %1304 = vmatpush1.msra.mxu0 0.0
        %1305 = vmatprep.subr.mxu0 0.0
        %1306 = vmatpush1.msra.mxu0 0.0
        %1307 = vmatprep.subr.mxu0 0.0
        %1308 = vmatpush1.msra.mxu0 0.0
        %1309 = vmatprep.subr.mxu0 0.0
        %1310 = vmatpush1.msra.mxu0 0.0
        %1311 = vmatprep.subr.mxu0 0.0
        %1312 = vmatpush1.msra.mxu0 0.0
        %1313 = vmatprep.subr.mxu0 0.0
        %1314 = vmatpush1.msra.mxu0 0.0
        %1315 = vmatprep.subr.mxu0 0.0
        %1316 = vmatpush1.msra.mxu0 0.0
        %1317 = vmatprep.subr.mxu0 0.0
        %1318 = vmatpush1.msra.mxu0 0.0
        %1319 = vmatprep.subr.mxu0 0.0
        %1320 = vmatpush1.msra.mxu0 0.0
        %1321 = vmatprep.subr.mxu0 0.0
        %1322 = vmatpush1.msra.mxu0 0.0
        %1323 = vmatprep.subr.mxu0 0.0
        %1324 = vmatpush1.msra.mxu0 0.0
        %1325 = vmatprep.subr.mxu0 0.0
        %1326 = vmatpush1.msra.mxu0 0.0
        %1327 = vmatprep.subr.mxu0 0.0
        %1328 = vmatpush1.msra.mxu0 0.0
        %1329 = vmatprep.subr.mxu0 0.0
        %1330 = vmatpush1.msra.mxu0 0.0
        %1331 = vmatprep.subr.mxu0 0.0
        %1332 = vmatpush1.msra.mxu0 0.0
        %1333 = vmatprep.subr.mxu0 0.0
        %1334 = vmatpush1.msra.mxu0 0.0
        %1335 = vmatprep.subr.mxu0 0.0
        %1336 = vmatpush1.msra.mxu0 0.0
        %1337 = vmatprep.subr.mxu0 0.0
        %1338 = vmatpush1.msra.mxu0 0.0
        %1339 = vmatprep.mubr.f32.mxu0 0.0
        %1340 = vmatmul.mubr.f32.gmra.mrb[0].mxu0 %v1165
        %v1341 = vpop.f32.mrb[0].mxu0
        %v1342 = vadd.f32 0.0, %v1341
        %v1343 = vpop.f32.mrb[0].mxu0
        %1344 = vmatprep.mubr.f32.mxu0 0.0
        %1345 = vmatmul.mubr.f32.gmra.mrb[0].mxu0 %v1168
        %v1346 = vpop.f32.mrb[0].mxu0
        %v1347 = vadd.f32 0.0, %v1346
        %v1348 = vpop.f32.mrb[0].mxu0
        %1349 = vmatprep.mubr.f32.mxu0 0.0
        %1350 = vmatmul.mubr.f32.gmra.mrb[0].mxu0 %v1171
        %v1351 = vpop.f32.mrb[0].mxu0
        %v1352 = vadd.f32 0.0, %v1351
        %v1353 = vpop.f32.mrb[0].mxu0
        %1354 = vmatprep.mubr.f32.mxu0 0.0
        %1355 = vmatmul.mubr.f32.gmra.mrb[0].mxu0 %v1174
        %v1356 = vpop.f32.mrb[0].mxu0
        %v1357 = vadd.f32 0.0, %v1356
        %v1358 = vpop.f32.mrb[0].mxu0
        %1359 = vmatprep.mubr.f32.mxu0 0.0
        %1360 = vmatmul.mubr.f32.gmra.mrb[0].mxu0 %v1177
        %v1361 = vpop.f32.mrb[0].mxu0
        %v1362 = vadd.f32 0.0, %v1361
        %v1363 = vpop.f32.mrb[0].mxu0
        %1364 = vmatprep.mubr.f32.mxu0 0.0
        %1365 = vmatmul.mubr.f32.gmra.mrb[0].mxu0 %v1180
        %v1366 = vpop.f32.mrb[0].mxu0
        %v1367 = vadd.f32 0.0, %v1366
        %v1368 = vpop.f32.mrb[0].mxu0
        %1369 = vmatprep.mubr.f32.mxu0 0.0
        %1370 = vmatmul.mubr.f32.gmra.mrb[0].mxu0 %v1183
        %v1371 = vpop.f32.mrb[0].mxu0
        %v1372 = vadd.f32 0.0, %v1371
        %v1373 = vpop.f32.mrb[0].mxu0
        %1374 = vmatprep.mubr.f32.mxu0 0.0
        %1375 = vmatmul.mubr.f32.gmra.mrb[0].mxu0 %v1186
        %v1376 = vpop.f32.mrb[0].mxu0
        %v1377 = vadd.f32 0.0, %v1376
        %v1378 = vpop.f32.mrb[0].mxu0
        %1379 = vmatprep.mubr.f32.mxu0 0.0
        %1380 = vmatmul.mubr.f32.gmra.mrb[0].mxu0 %v1189
        %v1381 = vpop.f32.mrb[0].mxu0
        %v1382 = vadd.f32 0.0, %v1381
        %v1383 = vpop.f32.mrb[0].mxu0
        %1384 = vmatprep.mubr.f32.mxu0 0.0
        %1385 = vmatmul.mubr.f32.gmra.mrb[0].mxu0 %v1192
        %v1386 = vpop.f32.mrb[0].mxu0
        %v1387 = vadd.f32 0.0, %v1386
        %v1388 = vpop.f32.mrb[0].mxu0
        %1389 = vmatprep.mubr.f32.mxu0 0.0
        %1390 = vmatmul.mubr.f32.gmra.mrb[0].mxu0 %v1195
        %v1391 = vpop.f32.mrb[0].mxu0
        %v1392 = vadd.f32 0.0, %v1391
        %v1393 = vpop.f32.mrb[0].mxu0
        %1394 = vmatprep.mubr.f32.mxu0 0.0
        %1395 = vmatmul.mubr.f32.gmra.mrb[0].mxu0 %v1198
        %v1396 = vpop.f32.mrb[0].mxu0
        %v1397 = vadd.f32 0.0, %v1396
        %v1398 = vpop.f32.mrb[0].mxu0
        %1399 = vmatprep.mubr.f32.mxu0 0.0
        %1400 = vmatmul.mubr.f32.gmra.mrb[0].mxu0 %v1201
        %v1401 = vpop.f32.mrb[0].mxu0
        %v1402 = vadd.f32 0.0, %v1401
        %v1403 = vpop.f32.mrb[0].mxu0
        %1404 = vmatprep.mubr.f32.mxu0 0.0
        %1405 = vmatmul.mubr.f32.gmra.mrb[0].mxu0 %v1204
        %v1406 = vpop.f32.mrb[0].mxu0
        %v1407 = vadd.f32 0.0, %v1406
        %v1408 = vpop.f32.mrb[0].mxu0
        %1409 = vmatprep.mubr.f32.mxu0 0.0
        %1410 = vmatmul.mubr.f32.gmra.mrb[0].mxu0 %v1207
        %v1411 = vpop.f32.mrb[0].mxu0
        %v1412 = vadd.f32 0.0, %v1411
        %v1413 = vpop.f32.mrb[0].mxu0
        %1414 = vmatprep.mubr.f32.mxu0 0.0
        %1415 = vmatmul.mubr.f32.gmra.mrb[0].mxu0 %v1210
        %v1416 = vpop.f32.mrb[0].mxu0
        %v1417 = vadd.f32 0.0, %v1416
        %v1418 = vpop.f32.mrb[0].mxu0
        %1419 = vmatprep.mubr.f32.mxu0 0.0
        %1420 = vmatmul.mubr.f32.gmra.mrb[0].mxu0 %v1213
        %v1421 = vpop.f32.mrb[0].mxu0
        %v1422 = vadd.f32 0.0, %v1421
        %v1423 = vpop.f32.mrb[0].mxu0
        %1424 = vmatprep.mubr.f32.mxu0 0.0
        %1425 = vmatmul.mubr.f32.gmra.mrb[0].mxu0 %v1216
        %v1426 = vpop.f32.mrb[0].mxu0
        %v1427 = vadd.f32 0.0, %v1426
        %v1428 = vpop.f32.mrb[0].mxu0
        %1429 = vmatprep.mubr.f32.mxu0 0.0
        %1430 = vmatmul.mubr.f32.gmra.mrb[0].mxu0 %v1219
        %v1431 = vpop.f32.mrb[0].mxu0
        %v1432 = vadd.f32 0.0, %v1431
        %v1433 = vpop.f32.mrb[0].mxu0
        %1434 = vmatprep.mubr.f32.mxu0 0.0
        %1435 = vmatmul.mubr.f32.gmra.mrb[0].mxu0 %v1222
        %v1436 = vpop.f32.mrb[0].mxu0
        %v1437 = vadd.f32 0.0, %v1436
        %v1438 = vpop.f32.mrb[0].mxu0
        %1439 = vmatprep.mubr.f32.mxu0 0.0
        %1440 = vmatmul.mubr.f32.gmra.mrb[0].mxu0 %v1225
        %v1441 = vpop.f32.mrb[0].mxu0
        %v1442 = vadd.f32 0.0, %v1441
        %v1443 = vpop.f32.mrb[0].mxu0
        %1444 = vmatprep.mubr.f32.mxu0 0.0
        %1445 = vmatmul.mubr.f32.gmra.mrb[0].mxu0 %v1228
        %v1446 = vpop.f32.mrb[0].mxu0
        %v1447 = vadd.f32 0.0, %v1446
        %v1448 = vpop.f32.mrb[0].mxu0
        %1449 = vmatprep.mubr.f32.mxu0 0.0
        %1450 = vmatmul.mubr.f32.gmra.mrb[0].mxu0 %v1231
        %v1451 = vpop.f32.mrb[0].mxu0
        %v1452 = vadd.f32 0.0, %v1451
        %v1453 = vpop.f32.mrb[0].mxu0
        %1454 = vmatprep.mubr.f32.mxu0 0.0
        %1455 = vmatmul.mubr.f32.gmra.mrb[0].mxu0 %v1234
        %v1456 = vpop.f32.mrb[0].mxu0
        %v1457 = vadd.f32 0.0, %v1456
        %v1458 = vpop.f32.mrb[0].mxu0
        %1459 = vmatprep.mubr.f32.mxu0 0.0
        %1460 = vmatmul.mubr.f32.gmra.mrb[0].mxu0 %v1237
        %v1461 = vpop.f32.mrb[0].mxu0
        %v1462 = vadd.f32 0.0, %v1461
        %v1463 = vpop.f32.mrb[0].mxu0
        %1464 = vmatprep.mubr.f32.mxu0 0.0
        %1465 = vmatmul.mubr.f32.gmra.mrb[0].mxu0 %v1240
        %v1466 = vpop.f32.mrb[0].mxu0
        %v1467 = vadd.f32 0.0, %v1466
        %v1468 = vpop.f32.mrb[0].mxu0
        %1469 = vmatprep.mubr.f32.mxu0 0.0
        %1470 = vmatmul.mubr.f32.gmra.mrb[0].mxu0 %v1243
        %v1471 = vpop.f32.mrb[0].mxu0
        %v1472 = vadd.f32 0.0, %v1471
        %v1473 = vpop.f32.mrb[0].mxu0
        %1474 = vmatprep.mubr.f32.mxu0 0.0
        %1475 = vmatmul.mubr.f32.gmra.mrb[0].mxu0 %v1246
        %v1476 = vpop.f32.mrb[0].mxu0
        %v1477 = vadd.f32 0.0, %v1476
        %v1478 = vpop.f32.mrb[0].mxu0
        %1479 = vmatprep.mubr.f32.mxu0 0.0
        %1480 = vmatmul.mubr.f32.gmra.mrb[0].mxu0 %v1249
        %v1481 = vpop.f32.mrb[0].mxu0
        %v1482 = vadd.f32 0.0, %v1481
        %v1483 = vpop.f32.mrb[0].mxu0
        %1484 = vmatprep.mubr.f32.mxu0 0.0
        %1485 = vmatmul.mubr.f32.gmra.mrb[0].mxu0 %v1252
        %v1486 = vpop.f32.mrb[0].mxu0
        %v1487 = vadd.f32 0.0, %v1486
        %v1488 = vpop.f32.mrb[0].mxu0
        %1489 = vmatprep.mubr.f32.mxu0 0.0
        %1490 = vmatmul.mubr.f32.gmra.mrb[0].mxu0 %v1255
        %v1491 = vpop.f32.mrb[0].mxu0
        %v1492 = vadd.f32 0.0, %v1491
        %v1493 = vpop.f32.mrb[0].mxu0
        %1494 = vmatprep.mubr.f32.mxu0 0.0
        %1495 = vmatmul.mubr.f32.gmra.mrb[0].mxu0 %v1258
        %v1496 = vpop.f32.mrb[0].mxu0
        %v1497 = vadd.f32 0.0, %v1496
        %v1498 = vpop.f32.mrb[0].mxu0
        %1499 = vmatprep.mubr.f32.mxu0 0.0
        %1500 = vmatmul.mubr.f32.gmra.mrb[0].mxu0 %v1261
        %v1501 = vpop.f32.mrb[0].mxu0
        %v1502 = vadd.f32 0.0, %v1501
        %v1503 = vpop.f32.mrb[0].mxu0
        %1504 = vmatprep.mubr.f32.mxu0 0.0
        %1505 = vmatmul.mubr.f32.gmra.mrb[0].mxu0 %v1264
        %v1506 = vpop.f32.mrb[0].mxu0
        %v1507 = vadd.f32 0.0, %v1506
        %v1508 = vpop.f32.mrb[0].mxu0
        %1509 = vmatprep.mubr.f32.mxu0 0.0
        %1510 = vmatmul.mubr.f32.gmra.mrb[0].mxu0 %v1267
        %v1511 = vpop.f32.mrb[0].mxu0
        %v1512 = vadd.f32 0.0, %v1511
        %v1513 = vpop.f32.mrb[0].mxu0
        %1514 = vmatprep.mubr.f32.mxu0 0.0
        %1515 = vmatmul.mubr.f32.gmra.mrb[0].mxu0 %v1270
        %v1516 = vpop.f32.mrb[0].mxu0
        %v1517 = vadd.f32 0.0, %v1516
        %v1518 = vpop.f32.mrb[0].mxu0
        %1519 = vdwg.mxu0
        %v1520 = vadd.f32 %v948, %v1342
        %v1521 = vadd.f32 %v953, %v1347
        %v1522 = vadd.f32 %v958, %v1352
        %v1523 = vadd.f32 %v963, %v1357
        %v1524 = vadd.f32 %v968, %v1362
        %v1525 = vadd.f32 %v973, %v1367
        %v1526 = vadd.f32 %v978, %v1372
        %v1527 = vadd.f32 %v983, %v1377
        %v1528 = vadd.f32 %v988, %v1382
        %v1529 = vadd.f32 %v993, %v1387
        %v1530 = vadd.f32 %v998, %v1392
        %v1531 = vadd.f32 %v1003, %v1397
        %v1532 = vadd.f32 %v1008, %v1402
        %v1533 = vadd.f32 %v1013, %v1407
        %v1534 = vadd.f32 %v1018, %v1412
        %v1535 = vadd.f32 %v1023, %v1417
        %v1536 = vadd.f32 %v1028, %v1422
        %v1537 = vadd.f32 %v1033, %v1427
        %v1538 = vadd.f32 %v1038, %v1432
        %v1539 = vadd.f32 %v1043, %v1437
        %v1540 = vadd.f32 %v1048, %v1442
        %v1541 = vadd.f32 %v1053, %v1447
        %v1542 = vadd.f32 %v1058, %v1452
        %v1543 = vadd.f32 %v1063, %v1457
        %v1544 = vadd.f32 %v1068, %v1462
        %v1545 = vadd.f32 %v1073, %v1467
        %v1546 = vadd.f32 %v1078, %v1472
        %v1547 = vadd.f32 %v1083, %v1477
        %v1548 = vadd.f32 %v1088, %v1482
        %v1549 = vadd.f32 %v1093, %v1487
        %v1550 = vadd.f32 %v1098, %v1492
        %v1551 = vadd.f32 %v1103, %v1497
        %v1552 = vadd.f32 %v1108, %v1502
        %v1553 = vadd.f32 %v1113, %v1507
        %v1554 = vadd.f32 %v1118, %v1512
        %v1555 = vadd.f32 %v1123, %v1517
        %v1556 = vld [vmem:[%s326 + $0x12] sm:$0xff]
        %v1557 = vld [vmem:[%s326 + $0x1a] sm:$0xff]
        %v1558 = vld [vmem:[%s326 + $0x22] sm:$0xff]
        %v1559 = vld [vmem:[%s326 + $0x2a] sm:$0xff]
        %v1560 = vld [vmem:[%s326 + $0x32] sm:$0xff]
        %v1561 = vld [vmem:[%s326 + $0x3a] sm:$0xff]
        %v1562 = vld [vmem:[%s326 + $0x42] sm:$0xff]
        %v1563 = vld [vmem:[%s326 + $0x4a] sm:$0xff]
        %v1564 = vld [vmem:[%s326 + $0x52] sm:$0xff]
        %v1565 = vld [vmem:[%s326 + $0x5a] sm:$0xff]
        %v1566 = vld [vmem:[%s326 + $0x62] sm:$0xff]
        %v1567 = vld [vmem:[%s326 + $0x6a] sm:$0xff]
        %v1568 = vld [vmem:[%s326 + $0x72] sm:$0xff]
        %v1569 = vld [vmem:[%s326 + $0x7a] sm:$0xff]
        %v1570 = vld [vmem:[%s326 + $0x82] sm:$0xff]
        %v1571 = vld [vmem:[%s326 + $0x8a] sm:$0xff]
        %v1572 = vld [vmem:[%s326 + $0x92] sm:$0xff]
        %v1573 = vld [vmem:[%s326 + $0x9a] sm:$0xff]
        %v1574 = vld [vmem:[%s326 + $0xa2] sm:$0xff]
        %v1575 = vld [vmem:[%s326 + $0xaa] sm:$0xff]
        %v1576 = vld [vmem:[%s326 + $0xb2] sm:$0xff]
        %v1577 = vld [vmem:[%s326 + $0xba] sm:$0xff]
        %v1578 = vld [vmem:[%s326 + $0xc2] sm:$0xff]
        %v1579 = vld [vmem:[%s326 + $0xca] sm:$0xff]
        %v1580 = vld [vmem:[%s326 + $0xd2] sm:$0xff]
        %v1581 = vld [vmem:[%s326 + $0xda] sm:$0xff]
        %v1582 = vld [vmem:[%s326 + $0xe2] sm:$0xff]
        %v1583 = vld [vmem:[%s326 + $0xea] sm:$0xff]
        %v1584 = vld [vmem:[%s326 + $0xf2] sm:$0xff]
        %v1585 = vld [vmem:[%s326 + $0xfa] sm:$0xff]
        %v1586 = vld [vmem:[%s326 + $0x102] sm:$0xff]
        %v1587 = vld [vmem:[%s326 + $0x10a] sm:$0xff]
        %v1588 = vld [vmem:[%s326 + $0x112] sm:$0xff]
        %v1589 = vld [vmem:[%s326 + $0x11a] sm:$0xff]
        %v1590 = vld [vmem:[%s326 + $0x122] sm:$0xff]
        %v1591 = vld [vmem:[%s326 + $0x12a] sm:$0xff]
        %s1592 = scalar_lea.vmem %s1, 12
        %v1593 = vld [vmem:[%s1592] sm:$0xf]
        %v1595 = vsel %vm412, %v1556, 0
        %v1598 = vsel %vm412, %v1557, 0
        %v1601 = vsel %vm412, %v1558, 0
        %v1604 = vsel %vm412, %v1559, 0
        %v1607 = vsel %vm412, %v1560, 0
        %v1610 = vsel %vm412, %v1561, 0
        %v1613 = vsel %vm412, %v1562, 0
        %v1616 = vsel %vm412, %v1563, 0
        %v1619 = vsel %vm412, %v1564, 0
        %v1622 = vsel %vm412, %v1565, 0
        %v1625 = vsel %vm412, %v1566, 0
        %v1628 = vsel %vm412, %v1567, 0
        %v1631 = vsel %vm412, %v1568, 0
        %v1634 = vsel %vm412, %v1569, 0
        %v1637 = vsel %vm412, %v1570, 0
        %v1640 = vsel %vm412, %v1571, 0
        %v1643 = vsel %vm412, %v1572, 0
        %v1646 = vsel %vm412, %v1573, 0
        %v1649 = vsel %vm412, %v1574, 0
        %v1652 = vsel %vm412, %v1575, 0
        %v1655 = vsel %vm412, %v1576, 0
        %v1658 = vsel %vm412, %v1577, 0
        %v1661 = vsel %vm412, %v1578, 0
        %v1664 = vsel %vm412, %v1579, 0
        %v1667 = vsel %vm412, %v1580, 0
        %v1670 = vsel %vm412, %v1581, 0
        %v1673 = vsel %vm412, %v1582, 0
        %v1676 = vsel %vm412, %v1583, 0
        %v1679 = vsel %vm412, %v1584, 0
        %v1682 = vsel %vm412, %v1585, 0
        %v1685 = vsel %vm412, %v1586, 0
        %v1688 = vsel %vm412, %v1587, 0
        %v1691 = vsel %vm412, %v1588, 0
        %v1694 = vsel %vm412, %v1589, 0
        %v1697 = vsel %vm412, %v1590, 0
        %v1700 = vsel %vm412, %v1591, 0
        %v1703 = vsel %vm521, %v1593, 0
        %1705 = vmatprep.subr.mxu0 0.0
        %1706 = vmatpush1.msra.mxu0 %v1703
        %1707 = vmatprep.subr.mxu0 0.0
        %1708 = vmatpush1.msra.mxu0 0.0
        %1709 = vmatprep.subr.mxu0 0.0
        %1710 = vmatpush1.msra.mxu0 0.0
        %1711 = vmatprep.subr.mxu0 0.0
        %1712 = vmatpush1.msra.mxu0 0.0
        %1713 = vmatprep.subr.mxu0 0.0
        %1714 = vmatpush1.msra.mxu0 0.0
        %1715 = vmatprep.subr.mxu0 0.0
        %1716 = vmatpush1.msra.mxu0 0.0
        %1717 = vmatprep.subr.mxu0 0.0
        %1718 = vmatpush1.msra.mxu0 0.0
        %1719 = vmatprep.subr.mxu0 0.0
        %1720 = vmatpush1.msra.mxu0 0.0
        %1721 = vmatprep.subr.mxu0 0.0
        %1722 = vmatpush1.msra.mxu0 0.0
        %1723 = vmatprep.subr.mxu0 0.0
        %1724 = vmatpush1.msra.mxu0 0.0
        %1725 = vmatprep.subr.mxu0 0.0
        %1726 = vmatpush1.msra.mxu0 0.0
        %1727 = vmatprep.subr.mxu0 0.0
        %1728 = vmatpush1.msra.mxu0 0.0
        %1729 = vmatprep.subr.mxu0 0.0
        %1730 = vmatpush1.msra.mxu0 0.0
        %1731 = vmatprep.subr.mxu0 0.0
        %1732 = vmatpush1.msra.mxu0 0.0
        %1733 = vmatprep.subr.mxu0 0.0
        %1734 = vmatpush1.msra.mxu0 0.0
        %1735 = vmatprep.subr.mxu0 0.0
        %1736 = vmatpush1.msra.mxu0 0.0
        %1737 = vmatprep.subr.mxu0 0.0
        %1738 = vmatpush1.msra.mxu0 0.0
        %1739 = vmatprep.subr.mxu0 0.0
        %1740 = vmatpush1.msra.mxu0 0.0
        %1741 = vmatprep.subr.mxu0 0.0
        %1742 = vmatpush1.msra.mxu0 0.0
        %1743 = vmatprep.subr.mxu0 0.0
        %1744 = vmatpush1.msra.mxu0 0.0
        %1745 = vmatprep.subr.mxu0 0.0
        %1746 = vmatpush1.msra.mxu0 0.0
        %1747 = vmatprep.subr.mxu0 0.0
        %1748 = vmatpush1.msra.mxu0 0.0
        %1749 = vmatprep.subr.mxu0 0.0
        %1750 = vmatpush1.msra.mxu0 0.0
        %1751 = vmatprep.subr.mxu0 0.0
        %1752 = vmatpush1.msra.mxu0 0.0
        %1753 = vmatprep.subr.mxu0 0.0
        %1754 = vmatpush1.msra.mxu0 0.0
        %1755 = vmatprep.subr.mxu0 0.0
        %1756 = vmatpush1.msra.mxu0 0.0
        %1757 = vmatprep.subr.mxu0 0.0
        %1758 = vmatpush1.msra.mxu0 0.0
        %1759 = vmatprep.subr.mxu0 0.0
        %1760 = vmatpush1.msra.mxu0 0.0
        %1761 = vmatprep.subr.mxu0 0.0
        %1762 = vmatpush1.msra.mxu0 0.0
        %1763 = vmatprep.subr.mxu0 0.0
        %1764 = vmatpush1.msra.mxu0 0.0
        %1765 = vmatprep.subr.mxu0 0.0
        %1766 = vmatpush1.msra.mxu0 0.0
        %1767 = vmatprep.subr.mxu0 0.0
        %1768 = vmatpush1.msra.mxu0 0.0
        %1769 = vmatprep.mubr.f32.mxu0 0.0
        %1770 = vmatmul.mubr.f32.gmra.mrb[0].mxu0 %v1595
        %v1771 = vpop.f32.mrb[0].mxu0
        %v1772 = vadd.f32 0.0, %v1771
        %v1773 = vpop.f32.mrb[0].mxu0
        %1774 = vmatprep.mubr.f32.mxu0 0.0
        %1775 = vmatmul.mubr.f32.gmra.mrb[0].mxu0 %v1598
        %v1776 = vpop.f32.mrb[0].mxu0
        %v1777 = vadd.f32 0.0, %v1776
        %v1778 = vpop.f32.mrb[0].mxu0
        %1779 = vmatprep.mubr.f32.mxu0 0.0
        %1780 = vmatmul.mubr.f32.gmra.mrb[0].mxu0 %v1601
        %v1781 = vpop.f32.mrb[0].mxu0
        %v1782 = vadd.f32 0.0, %v1781
        %v1783 = vpop.f32.mrb[0].mxu0
        %1784 = vmatprep.mubr.f32.mxu0 0.0
        %1785 = vmatmul.mubr.f32.gmra.mrb[0].mxu0 %v1604
        %v1786 = vpop.f32.mrb[0].mxu0
        %v1787 = vadd.f32 0.0, %v1786
        %v1788 = vpop.f32.mrb[0].mxu0
        %1789 = vmatprep.mubr.f32.mxu0 0.0
        %1790 = vmatmul.mubr.f32.gmra.mrb[0].mxu0 %v1607
        %v1791 = vpop.f32.mrb[0].mxu0
        %v1792 = vadd.f32 0.0, %v1791
        %v1793 = vpop.f32.mrb[0].mxu0
        %1794 = vmatprep.mubr.f32.mxu0 0.0
        %1795 = vmatmul.mubr.f32.gmra.mrb[0].mxu0 %v1610
        %v1796 = vpop.f32.mrb[0].mxu0
        %v1797 = vadd.f32 0.0, %v1796
        %v1798 = vpop.f32.mrb[0].mxu0
        %1799 = vmatprep.mubr.f32.mxu0 0.0
        %1800 = vmatmul.mubr.f32.gmra.mrb[0].mxu0 %v1613
        %v1801 = vpop.f32.mrb[0].mxu0
        %v1802 = vadd.f32 0.0, %v1801
        %v1803 = vpop.f32.mrb[0].mxu0
        %1804 = vmatprep.mubr.f32.mxu0 0.0
        %1805 = vmatmul.mubr.f32.gmra.mrb[0].mxu0 %v1616
        %v1806 = vpop.f32.mrb[0].mxu0
        %v1807 = vadd.f32 0.0, %v1806
        %v1808 = vpop.f32.mrb[0].mxu0
        %1809 = vmatprep.mubr.f32.mxu0 0.0
        %1810 = vmatmul.mubr.f32.gmra.mrb[0].mxu0 %v1619
        %v1811 = vpop.f32.mrb[0].mxu0
        %v1812 = vadd.f32 0.0, %v1811
        %v1813 = vpop.f32.mrb[0].mxu0
        %1814 = vmatprep.mubr.f32.mxu0 0.0
        %1815 = vmatmul.mubr.f32.gmra.mrb[0].mxu0 %v1622
        %v1816 = vpop.f32.mrb[0].mxu0
        %v1817 = vadd.f32 0.0, %v1816
        %v1818 = vpop.f32.mrb[0].mxu0
        %1819 = vmatprep.mubr.f32.mxu0 0.0
        %1820 = vmatmul.mubr.f32.gmra.mrb[0].mxu0 %v1625
        %v1821 = vpop.f32.mrb[0].mxu0
        %v1822 = vadd.f32 0.0, %v1821
        %v1823 = vpop.f32.mrb[0].mxu0
        %1824 = vmatprep.mubr.f32.mxu0 0.0
        %1825 = vmatmul.mubr.f32.gmra.mrb[0].mxu0 %v1628
        %v1826 = vpop.f32.mrb[0].mxu0
        %v1827 = vadd.f32 0.0, %v1826
        %v1828 = vpop.f32.mrb[0].mxu0
        %1829 = vmatprep.mubr.f32.mxu0 0.0
        %1830 = vmatmul.mubr.f32.gmra.mrb[0].mxu0 %v1631
        %v1831 = vpop.f32.mrb[0].mxu0
        %v1832 = vadd.f32 0.0, %v1831
        %v1833 = vpop.f32.mrb[0].mxu0
        %1834 = vmatprep.mubr.f32.mxu0 0.0
        %1835 = vmatmul.mubr.f32.gmra.mrb[0].mxu0 %v1634
        %v1836 = vpop.f32.mrb[0].mxu0
        %v1837 = vadd.f32 0.0, %v1836
        %v1838 = vpop.f32.mrb[0].mxu0
        %1839 = vmatprep.mubr.f32.mxu0 0.0
        %1840 = vmatmul.mubr.f32.gmra.mrb[0].mxu0 %v1637
        %v1841 = vpop.f32.mrb[0].mxu0
        %v1842 = vadd.f32 0.0, %v1841
        %v1843 = vpop.f32.mrb[0].mxu0
        %1844 = vmatprep.mubr.f32.mxu0 0.0
        %1845 = vmatmul.mubr.f32.gmra.mrb[0].mxu0 %v1640
        %v1846 = vpop.f32.mrb[0].mxu0
        %v1847 = vadd.f32 0.0, %v1846
        %v1848 = vpop.f32.mrb[0].mxu0
        %1849 = vmatprep.mubr.f32.mxu0 0.0
        %1850 = vmatmul.mubr.f32.gmra.mrb[0].mxu0 %v1643
        %v1851 = vpop.f32.mrb[0].mxu0
        %v1852 = vadd.f32 0.0, %v1851
        %v1853 = vpop.f32.mrb[0].mxu0
        %1854 = vmatprep.mubr.f32.mxu0 0.0
        %1855 = vmatmul.mubr.f32.gmra.mrb[0].mxu0 %v1646
        %v1856 = vpop.f32.mrb[0].mxu0
        %v1857 = vadd.f32 0.0, %v1856
        %v1858 = vpop.f32.mrb[0].mxu0
        %1859 = vmatprep.mubr.f32.mxu0 0.0
        %1860 = vmatmul.mubr.f32.gmra.mrb[0].mxu0 %v1649
        %v1861 = vpop.f32.mrb[0].mxu0
        %v1862 = vadd.f32 0.0, %v1861
        %v1863 = vpop.f32.mrb[0].mxu0
        %1864 = vmatprep.mubr.f32.mxu0 0.0
        %1865 = vmatmul.mubr.f32.gmra.mrb[0].mxu0 %v1652
        %v1866 = vpop.f32.mrb[0].mxu0
        %v1867 = vadd.f32 0.0, %v1866
        %v1868 = vpop.f32.mrb[0].mxu0
        %1869 = vmatprep.mubr.f32.mxu0 0.0
        %1870 = vmatmul.mubr.f32.gmra.mrb[0].mxu0 %v1655
        %v1871 = vpop.f32.mrb[0].mxu0
        %v1872 = vadd.f32 0.0, %v1871
        %v1873 = vpop.f32.mrb[0].mxu0
        %1874 = vmatprep.mubr.f32.mxu0 0.0
        %1875 = vmatmul.mubr.f32.gmra.mrb[0].mxu0 %v1658
        %v1876 = vpop.f32.mrb[0].mxu0
        %v1877 = vadd.f32 0.0, %v1876
        %v1878 = vpop.f32.mrb[0].mxu0
        %1879 = vmatprep.mubr.f32.mxu0 0.0
        %1880 = vmatmul.mubr.f32.gmra.mrb[0].mxu0 %v1661
        %v1881 = vpop.f32.mrb[0].mxu0
        %v1882 = vadd.f32 0.0, %v1881
        %v1883 = vpop.f32.mrb[0].mxu0
        %1884 = vmatprep.mubr.f32.mxu0 0.0
        %1885 = vmatmul.mubr.f32.gmra.mrb[0].mxu0 %v1664
        %v1886 = vpop.f32.mrb[0].mxu0
        %v1887 = vadd.f32 0.0, %v1886
        %v1888 = vpop.f32.mrb[0].mxu0
        %1889 = vmatprep.mubr.f32.mxu0 0.0
        %1890 = vmatmul.mubr.f32.gmra.mrb[0].mxu0 %v1667
        %v1891 = vpop.f32.mrb[0].mxu0
        %v1892 = vadd.f32 0.0, %v1891
        %v1893 = vpop.f32.mrb[0].mxu0
        %1894 = vmatprep.mubr.f32.mxu0 0.0
        %1895 = vmatmul.mubr.f32.gmra.mrb[0].mxu0 %v1670
        %v1896 = vpop.f32.mrb[0].mxu0
        %v1897 = vadd.f32 0.0, %v1896
        %v1898 = vpop.f32.mrb[0].mxu0
        %1899 = vmatprep.mubr.f32.mxu0 0.0
        %1900 = vmatmul.mubr.f32.gmra.mrb[0].mxu0 %v1673
        %v1901 = vpop.f32.mrb[0].mxu0
        %v1902 = vadd.f32 0.0, %v1901
        %v1903 = vpop.f32.mrb[0].mxu0
        %1904 = vmatprep.mubr.f32.mxu0 0.0
        %1905 = vmatmul.mubr.f32.gmra.mrb[0].mxu0 %v1676
        %v1906 = vpop.f32.mrb[0].mxu0
        %v1907 = vadd.f32 0.0, %v1906
        %v1908 = vpop.f32.mrb[0].mxu0
        %1909 = vmatprep.mubr.f32.mxu0 0.0
        %1910 = vmatmul.mubr.f32.gmra.mrb[0].mxu0 %v1679
        %v1911 = vpop.f32.mrb[0].mxu0
        %v1912 = vadd.f32 0.0, %v1911
        %v1913 = vpop.f32.mrb[0].mxu0
        %1914 = vmatprep.mubr.f32.mxu0 0.0
        %1915 = vmatmul.mubr.f32.gmra.mrb[0].mxu0 %v1682
        %v1916 = vpop.f32.mrb[0].mxu0
        %v1917 = vadd.f32 0.0, %v1916
        %v1918 = vpop.f32.mrb[0].mxu0
        %1919 = vmatprep.mubr.f32.mxu0 0.0
        %1920 = vmatmul.mubr.f32.gmra.mrb[0].mxu0 %v1685
        %v1921 = vpop.f32.mrb[0].mxu0
        %v1922 = vadd.f32 0.0, %v1921
        %v1923 = vpop.f32.mrb[0].mxu0
        %1924 = vmatprep.mubr.f32.mxu0 0.0
        %1925 = vmatmul.mubr.f32.gmra.mrb[0].mxu0 %v1688
        %v1926 = vpop.f32.mrb[0].mxu0
        %v1927 = vadd.f32 0.0, %v1926
        %v1928 = vpop.f32.mrb[0].mxu0
        %1929 = vmatprep.mubr.f32.mxu0 0.0
        %1930 = vmatmul.mubr.f32.gmra.mrb[0].mxu0 %v1691
        %v1931 = vpop.f32.mrb[0].mxu0
        %v1932 = vadd.f32 0.0, %v1931
        %v1933 = vpop.f32.mrb[0].mxu0
        %1934 = vmatprep.mubr.f32.mxu0 0.0
        %1935 = vmatmul.mubr.f32.gmra.mrb[0].mxu0 %v1694
        %v1936 = vpop.f32.mrb[0].mxu0
        %v1937 = vadd.f32 0.0, %v1936
        %v1938 = vpop.f32.mrb[0].mxu0
        %1939 = vmatprep.mubr.f32.mxu0 0.0
        %1940 = vmatmul.mubr.f32.gmra.mrb[0].mxu0 %v1697
        %v1941 = vpop.f32.mrb[0].mxu0
        %v1942 = vadd.f32 0.0, %v1941
        %v1943 = vpop.f32.mrb[0].mxu0
        %1944 = vmatprep.mubr.f32.mxu0 0.0
        %1945 = vmatmul.mubr.f32.gmra.mrb[0].mxu0 %v1700
        %v1946 = vpop.f32.mrb[0].mxu0
        %v1947 = vadd.f32 0.0, %v1946
        %v1948 = vpop.f32.mrb[0].mxu0
        %1949 = vdwg.mxu0
        %v1950 = vadd.f32 %v1520, %v1772
        %v1951 = vadd.f32 %v1521, %v1777
        %v1952 = vadd.f32 %v1522, %v1782
        %v1953 = vadd.f32 %v1523, %v1787
        %v1954 = vadd.f32 %v1524, %v1792
        %v1955 = vadd.f32 %v1525, %v1797
        %v1956 = vadd.f32 %v1526, %v1802
        %v1957 = vadd.f32 %v1527, %v1807
        %v1958 = vadd.f32 %v1528, %v1812
        %v1959 = vadd.f32 %v1529, %v1817
        %v1960 = vadd.f32 %v1530, %v1822
        %v1961 = vadd.f32 %v1531, %v1827
        %v1962 = vadd.f32 %v1532, %v1832
        %v1963 = vadd.f32 %v1533, %v1837
        %v1964 = vadd.f32 %v1534, %v1842
        %v1965 = vadd.f32 %v1535, %v1847
        %v1966 = vadd.f32 %v1536, %v1852
        %v1967 = vadd.f32 %v1537, %v1857
        %v1968 = vadd.f32 %v1538, %v1862
        %v1969 = vadd.f32 %v1539, %v1867
        %v1970 = vadd.f32 %v1540, %v1872
        %v1971 = vadd.f32 %v1541, %v1877
        %v1972 = vadd.f32 %v1542, %v1882
        %v1973 = vadd.f32 %v1543, %v1887
        %v1974 = vadd.f32 %v1544, %v1892
        %v1975 = vadd.f32 %v1545, %v1897
        %v1976 = vadd.f32 %v1546, %v1902
        %v1977 = vadd.f32 %v1547, %v1907
        %v1978 = vadd.f32 %v1548, %v1912
        %v1979 = vadd.f32 %v1549, %v1917
        %v1980 = vadd.f32 %v1550, %v1922
        %v1981 = vadd.f32 %v1551, %v1927
        %v1982 = vadd.f32 %v1552, %v1932
        %v1983 = vadd.f32 %v1553, %v1937
        %v1984 = vadd.f32 %v1554, %v1942
        %v1985 = vadd.f32 %v1555, %v1947
        %v1986 = vld [vmem:[%s326 + $0x13] sm:$0xff]
        %v1987 = vld [vmem:[%s326 + $0x1b] sm:$0xff]
        %v1988 = vld [vmem:[%s326 + $0x23] sm:$0xff]
        %v1989 = vld [vmem:[%s326 + $0x2b] sm:$0xff]
        %v1990 = vld [vmem:[%s326 + $0x33] sm:$0xff]
        %v1991 = vld [vmem:[%s326 + $0x3b] sm:$0xff]
        %v1992 = vld [vmem:[%s326 + $0x43] sm:$0xff]
        %v1993 = vld [vmem:[%s326 + $0x4b] sm:$0xff]
        %v1994 = vld [vmem:[%s326 + $0x53] sm:$0xff]
        %v1995 = vld [vmem:[%s326 + $0x5b] sm:$0xff]
        %v1996 = vld [vmem:[%s326 + $0x63] sm:$0xff]
        %v1997 = vld [vmem:[%s326 + $0x6b] sm:$0xff]
        %v1998 = vld [vmem:[%s326 + $0x73] sm:$0xff]
        %v1999 = vld [vmem:[%s326 + $0x7b] sm:$0xff]
        %v2000 = vld [vmem:[%s326 + $0x83] sm:$0xff]
        %v2001 = vld [vmem:[%s326 + $0x8b] sm:$0xff]
        %v2002 = vld [vmem:[%s326 + $0x93] sm:$0xff]
        %v2003 = vld [vmem:[%s326 + $0x9b] sm:$0xff]
        %v2004 = vld [vmem:[%s326 + $0xa3] sm:$0xff]
        %v2005 = vld [vmem:[%s326 + $0xab] sm:$0xff]
        %v2006 = vld [vmem:[%s326 + $0xb3] sm:$0xff]
        %v2007 = vld [vmem:[%s326 + $0xbb] sm:$0xff]
        %v2008 = vld [vmem:[%s326 + $0xc3] sm:$0xff]
        %v2009 = vld [vmem:[%s326 + $0xcb] sm:$0xff]
        %v2010 = vld [vmem:[%s326 + $0xd3] sm:$0xff]
        %v2011 = vld [vmem:[%s326 + $0xdb] sm:$0xff]
        %v2012 = vld [vmem:[%s326 + $0xe3] sm:$0xff]
        %v2013 = vld [vmem:[%s326 + $0xeb] sm:$0xff]
        %v2014 = vld [vmem:[%s326 + $0xf3] sm:$0xff]
        %v2015 = vld [vmem:[%s326 + $0xfb] sm:$0xff]
        %v2016 = vld [vmem:[%s326 + $0x103] sm:$0xff]
        %v2017 = vld [vmem:[%s326 + $0x10b] sm:$0xff]
        %v2018 = vld [vmem:[%s326 + $0x113] sm:$0xff]
        %v2019 = vld [vmem:[%s326 + $0x11b] sm:$0xff]
        %v2020 = vld [vmem:[%s326 + $0x123] sm:$0xff]
        %v2021 = vld [vmem:[%s326 + $0x12b] sm:$0xff]
        %s2022 = scalar_lea.vmem %s1, 16
        %v2023 = vld [vmem:[%s2022] sm:$0xf]
        %v2025 = vsel %vm412, %v1986, 0
        %v2028 = vsel %vm412, %v1987, 0
        %v2031 = vsel %vm412, %v1988, 0
        %v2034 = vsel %vm412, %v1989, 0
        %v2037 = vsel %vm412, %v1990, 0
        %v2040 = vsel %vm412, %v1991, 0
        %v2043 = vsel %vm412, %v1992, 0
        %v2046 = vsel %vm412, %v1993, 0
        %v2049 = vsel %vm412, %v1994, 0
        %v2052 = vsel %vm412, %v1995, 0
        %v2055 = vsel %vm412, %v1996, 0
        %v2058 = vsel %vm412, %v1997, 0
        %v2061 = vsel %vm412, %v1998, 0
        %v2064 = vsel %vm412, %v1999, 0
        %v2067 = vsel %vm412, %v2000, 0
        %v2070 = vsel %vm412, %v2001, 0
        %v2073 = vsel %vm412, %v2002, 0
        %v2076 = vsel %vm412, %v2003, 0
        %v2079 = vsel %vm412, %v2004, 0
        %v2082 = vsel %vm412, %v2005, 0
        %v2085 = vsel %vm412, %v2006, 0
        %v2088 = vsel %vm412, %v2007, 0
        %v2091 = vsel %vm412, %v2008, 0
        %v2094 = vsel %vm412, %v2009, 0
        %v2097 = vsel %vm412, %v2010, 0
        %v2100 = vsel %vm412, %v2011, 0
        %v2103 = vsel %vm412, %v2012, 0
        %v2106 = vsel %vm412, %v2013, 0
        %v2109 = vsel %vm412, %v2014, 0
        %v2112 = vsel %vm412, %v2015, 0
        %v2115 = vsel %vm412, %v2016, 0
        %v2118 = vsel %vm412, %v2017, 0
        %v2121 = vsel %vm412, %v2018, 0
        %v2124 = vsel %vm412, %v2019, 0
        %v2127 = vsel %vm412, %v2020, 0
        %v2130 = vsel %vm412, %v2021, 0
        %v2133 = vsel %vm521, %v2023, 0
        %2135 = vmatprep.subr.mxu0 0.0
        %2136 = vmatpush1.msra.mxu0 %v2133
        %2137 = vmatprep.subr.mxu0 0.0
        %2138 = vmatpush1.msra.mxu0 0.0
        %2139 = vmatprep.subr.mxu0 0.0
        %2140 = vmatpush1.msra.mxu0 0.0
        %2141 = vmatprep.subr.mxu0 0.0
        %2142 = vmatpush1.msra.mxu0 0.0
        %2143 = vmatprep.subr.mxu0 0.0
        %2144 = vmatpush1.msra.mxu0 0.0
        %2145 = vmatprep.subr.mxu0 0.0
        %2146 = vmatpush1.msra.mxu0 0.0
        %2147 = vmatprep.subr.mxu0 0.0
        %2148 = vmatpush1.msra.mxu0 0.0
        %2149 = vmatprep.subr.mxu0 0.0
        %2150 = vmatpush1.msra.mxu0 0.0
        %2151 = vmatprep.subr.mxu0 0.0
        %2152 = vmatpush1.msra.mxu0 0.0
        %2153 = vmatprep.subr.mxu0 0.0
        %2154 = vmatpush1.msra.mxu0 0.0
        %2155 = vmatprep.subr.mxu0 0.0
        %2156 = vmatpush1.msra.mxu0 0.0
        %2157 = vmatprep.subr.mxu0 0.0
        %2158 = vmatpush1.msra.mxu0 0.0
        %2159 = vmatprep.subr.mxu0 0.0
        %2160 = vmatpush1.msra.mxu0 0.0
        %2161 = vmatprep.subr.mxu0 0.0
        %2162 = vmatpush1.msra.mxu0 0.0
        %2163 = vmatprep.subr.mxu0 0.0
        %2164 = vmatpush1.msra.mxu0 0.0
        %2165 = vmatprep.subr.mxu0 0.0
        %2166 = vmatpush1.msra.mxu0 0.0
        %2167 = vmatprep.subr.mxu0 0.0
        %2168 = vmatpush1.msra.mxu0 0.0
        %2169 = vmatprep.subr.mxu0 0.0
        %2170 = vmatpush1.msra.mxu0 0.0
        %2171 = vmatprep.subr.mxu0 0.0
        %2172 = vmatpush1.msra.mxu0 0.0
        %2173 = vmatprep.subr.mxu0 0.0
        %2174 = vmatpush1.msra.mxu0 0.0
        %2175 = vmatprep.subr.mxu0 0.0
        %2176 = vmatpush1.msra.mxu0 0.0
        %2177 = vmatprep.subr.mxu0 0.0
        %2178 = vmatpush1.msra.mxu0 0.0
        %2179 = vmatprep.subr.mxu0 0.0
        %2180 = vmatpush1.msra.mxu0 0.0
        %2181 = vmatprep.subr.mxu0 0.0
        %2182 = vmatpush1.msra.mxu0 0.0
        %2183 = vmatprep.subr.mxu0 0.0
        %2184 = vmatpush1.msra.mxu0 0.0
        %2185 = vmatprep.subr.mxu0 0.0
        %2186 = vmatpush1.msra.mxu0 0.0
        %2187 = vmatprep.subr.mxu0 0.0
        %2188 = vmatpush1.msra.mxu0 0.0
        %2189 = vmatprep.subr.mxu0 0.0
        %2190 = vmatpush1.msra.mxu0 0.0
        %2191 = vmatprep.subr.mxu0 0.0
        %2192 = vmatpush1.msra.mxu0 0.0
        %2193 = vmatprep.subr.mxu0 0.0
        %2194 = vmatpush1.msra.mxu0 0.0
        %2195 = vmatprep.subr.mxu0 0.0
        %2196 = vmatpush1.msra.mxu0 0.0
        %2197 = vmatprep.subr.mxu0 0.0
        %2198 = vmatpush1.msra.mxu0 0.0
        %2199 = vmatprep.mubr.f32.mxu0 0.0
        %2200 = vmatmul.mubr.f32.gmra.mrb[0].mxu0 %v2025
        %v2201 = vpop.f32.mrb[0].mxu0
        %v2202 = vadd.f32 0.0, %v2201
        %v2203 = vpop.f32.mrb[0].mxu0
        %2204 = vmatprep.mubr.f32.mxu0 0.0
        %2205 = vmatmul.mubr.f32.gmra.mrb[0].mxu0 %v2028
        %v2206 = vpop.f32.mrb[0].mxu0
        %v2207 = vadd.f32 0.0, %v2206
        %v2208 = vpop.f32.mrb[0].mxu0
        %2209 = vmatprep.mubr.f32.mxu0 0.0
        %2210 = vmatmul.mubr.f32.gmra.mrb[0].mxu0 %v2031
        %v2211 = vpop.f32.mrb[0].mxu0
        %v2212 = vadd.f32 0.0, %v2211
        %v2213 = vpop.f32.mrb[0].mxu0
        %2214 = vmatprep.mubr.f32.mxu0 0.0
        %2215 = vmatmul.mubr.f32.gmra.mrb[0].mxu0 %v2034
        %v2216 = vpop.f32.mrb[0].mxu0
        %v2217 = vadd.f32 0.0, %v2216
        %v2218 = vpop.f32.mrb[0].mxu0
        %2219 = vmatprep.mubr.f32.mxu0 0.0
        %2220 = vmatmul.mubr.f32.gmra.mrb[0].mxu0 %v2037
        %v2221 = vpop.f32.mrb[0].mxu0
        %v2222 = vadd.f32 0.0, %v2221
        %v2223 = vpop.f32.mrb[0].mxu0
        %2224 = vmatprep.mubr.f32.mxu0 0.0
        %2225 = vmatmul.mubr.f32.gmra.mrb[0].mxu0 %v2040
        %v2226 = vpop.f32.mrb[0].mxu0
        %v2227 = vadd.f32 0.0, %v2226
        %v2228 = vpop.f32.mrb[0].mxu0
        %2229 = vmatprep.mubr.f32.mxu0 0.0
        %2230 = vmatmul.mubr.f32.gmra.mrb[0].mxu0 %v2043
        %v2231 = vpop.f32.mrb[0].mxu0
        %v2232 = vadd.f32 0.0, %v2231
        %v2233 = vpop.f32.mrb[0].mxu0
        %2234 = vmatprep.mubr.f32.mxu0 0.0
        %2235 = vmatmul.mubr.f32.gmra.mrb[0].mxu0 %v2046
        %v2236 = vpop.f32.mrb[0].mxu0
        %v2237 = vadd.f32 0.0, %v2236
        %v2238 = vpop.f32.mrb[0].mxu0
        %2239 = vmatprep.mubr.f32.mxu0 0.0
        %2240 = vmatmul.mubr.f32.gmra.mrb[0].mxu0 %v2049
        %v2241 = vpop.f32.mrb[0].mxu0
        %v2242 = vadd.f32 0.0, %v2241
        %v2243 = vpop.f32.mrb[0].mxu0
        %2244 = vmatprep.mubr.f32.mxu0 0.0
        %2245 = vmatmul.mubr.f32.gmra.mrb[0].mxu0 %v2052
        %v2246 = vpop.f32.mrb[0].mxu0
        %v2247 = vadd.f32 0.0, %v2246
        %v2248 = vpop.f32.mrb[0].mxu0
        %2249 = vmatprep.mubr.f32.mxu0 0.0
        %2250 = vmatmul.mubr.f32.gmra.mrb[0].mxu0 %v2055
        %v2251 = vpop.f32.mrb[0].mxu0
        %v2252 = vadd.f32 0.0, %v2251
        %v2253 = vpop.f32.mrb[0].mxu0
        %2254 = vmatprep.mubr.f32.mxu0 0.0
        %2255 = vmatmul.mubr.f32.gmra.mrb[0].mxu0 %v2058
        %v2256 = vpop.f32.mrb[0].mxu0
        %v2257 = vadd.f32 0.0, %v2256
        %v2258 = vpop.f32.mrb[0].mxu0
        %2259 = vmatprep.mubr.f32.mxu0 0.0
        %2260 = vmatmul.mubr.f32.gmra.mrb[0].mxu0 %v2061
        %v2261 = vpop.f32.mrb[0].mxu0
        %v2262 = vadd.f32 0.0, %v2261
        %v2263 = vpop.f32.mrb[0].mxu0
        %2264 = vmatprep.mubr.f32.mxu0 0.0
        %2265 = vmatmul.mubr.f32.gmra.mrb[0].mxu0 %v2064
        %v2266 = vpop.f32.mrb[0].mxu0
        %v2267 = vadd.f32 0.0, %v2266
        %v2268 = vpop.f32.mrb[0].mxu0
        %2269 = vmatprep.mubr.f32.mxu0 0.0
        %2270 = vmatmul.mubr.f32.gmra.mrb[0].mxu0 %v2067
        %v2271 = vpop.f32.mrb[0].mxu0
        %v2272 = vadd.f32 0.0, %v2271
        %v2273 = vpop.f32.mrb[0].mxu0
        %2274 = vmatprep.mubr.f32.mxu0 0.0
        %2275 = vmatmul.mubr.f32.gmra.mrb[0].mxu0 %v2070
        %v2276 = vpop.f32.mrb[0].mxu0
        %v2277 = vadd.f32 0.0, %v2276
        %v2278 = vpop.f32.mrb[0].mxu0
        %2279 = vmatprep.mubr.f32.mxu0 0.0
        %2280 = vmatmul.mubr.f32.gmra.mrb[0].mxu0 %v2073
        %v2281 = vpop.f32.mrb[0].mxu0
        %v2282 = vadd.f32 0.0, %v2281
        %v2283 = vpop.f32.mrb[0].mxu0
        %2284 = vmatprep.mubr.f32.mxu0 0.0
        %2285 = vmatmul.mubr.f32.gmra.mrb[0].mxu0 %v2076
        %v2286 = vpop.f32.mrb[0].mxu0
        %v2287 = vadd.f32 0.0, %v2286
        %v2288 = vpop.f32.mrb[0].mxu0
        %2289 = vmatprep.mubr.f32.mxu0 0.0
        %2290 = vmatmul.mubr.f32.gmra.mrb[0].mxu0 %v2079
        %v2291 = vpop.f32.mrb[0].mxu0
        %v2292 = vadd.f32 0.0, %v2291
        %v2293 = vpop.f32.mrb[0].mxu0
        %2294 = vmatprep.mubr.f32.mxu0 0.0
        %2295 = vmatmul.mubr.f32.gmra.mrb[0].mxu0 %v2082
        %v2296 = vpop.f32.mrb[0].mxu0
        %v2297 = vadd.f32 0.0, %v2296
        %v2298 = vpop.f32.mrb[0].mxu0
        %2299 = vmatprep.mubr.f32.mxu0 0.0
        %2300 = vmatmul.mubr.f32.gmra.mrb[0].mxu0 %v2085
        %v2301 = vpop.f32.mrb[0].mxu0
        %v2302 = vadd.f32 0.0, %v2301
        %v2303 = vpop.f32.mrb[0].mxu0
        %2304 = vmatprep.mubr.f32.mxu0 0.0
        %2305 = vmatmul.mubr.f32.gmra.mrb[0].mxu0 %v2088
        %v2306 = vpop.f32.mrb[0].mxu0
        %v2307 = vadd.f32 0.0, %v2306
        %v2308 = vpop.f32.mrb[0].mxu0
        %2309 = vmatprep.mubr.f32.mxu0 0.0
        %2310 = vmatmul.mubr.f32.gmra.mrb[0].mxu0 %v2091
        %v2311 = vpop.f32.mrb[0].mxu0
        %v2312 = vadd.f32 0.0, %v2311
        %v2313 = vpop.f32.mrb[0].mxu0
        %2314 = vmatprep.mubr.f32.mxu0 0.0
        %2315 = vmatmul.mubr.f32.gmra.mrb[0].mxu0 %v2094
        %v2316 = vpop.f32.mrb[0].mxu0
        %v2317 = vadd.f32 0.0, %v2316
        %v2318 = vpop.f32.mrb[0].mxu0
        %2319 = vmatprep.mubr.f32.mxu0 0.0
        %2320 = vmatmul.mubr.f32.gmra.mrb[0].mxu0 %v2097
        %v2321 = vpop.f32.mrb[0].mxu0
        %v2322 = vadd.f32 0.0, %v2321
        %v2323 = vpop.f32.mrb[0].mxu0
        %2324 = vmatprep.mubr.f32.mxu0 0.0
        %2325 = vmatmul.mubr.f32.gmra.mrb[0].mxu0 %v2100
        %v2326 = vpop.f32.mrb[0].mxu0
        %v2327 = vadd.f32 0.0, %v2326
        %v2328 = vpop.f32.mrb[0].mxu0
        %2329 = vmatprep.mubr.f32.mxu0 0.0
        %2330 = vmatmul.mubr.f32.gmra.mrb[0].mxu0 %v2103
        %v2331 = vpop.f32.mrb[0].mxu0
        %v2332 = vadd.f32 0.0, %v2331
        %v2333 = vpop.f32.mrb[0].mxu0
        %2334 = vmatprep.mubr.f32.mxu0 0.0
        %2335 = vmatmul.mubr.f32.gmra.mrb[0].mxu0 %v2106
        %v2336 = vpop.f32.mrb[0].mxu0
        %v2337 = vadd.f32 0.0, %v2336
        %v2338 = vpop.f32.mrb[0].mxu0
        %2339 = vmatprep.mubr.f32.mxu0 0.0
        %2340 = vmatmul.mubr.f32.gmra.mrb[0].mxu0 %v2109
        %v2341 = vpop.f32.mrb[0].mxu0
        %v2342 = vadd.f32 0.0, %v2341
        %v2343 = vpop.f32.mrb[0].mxu0
        %2344 = vmatprep.mubr.f32.mxu0 0.0
        %2345 = vmatmul.mubr.f32.gmra.mrb[0].mxu0 %v2112
        %v2346 = vpop.f32.mrb[0].mxu0
        %v2347 = vadd.f32 0.0, %v2346
        %v2348 = vpop.f32.mrb[0].mxu0
        %2349 = vmatprep.mubr.f32.mxu0 0.0
        %2350 = vmatmul.mubr.f32.gmra.mrb[0].mxu0 %v2115
        %v2351 = vpop.f32.mrb[0].mxu0
        %v2352 = vadd.f32 0.0, %v2351
        %v2353 = vpop.f32.mrb[0].mxu0
        %2354 = vmatprep.mubr.f32.mxu0 0.0
        %2355 = vmatmul.mubr.f32.gmra.mrb[0].mxu0 %v2118
        %v2356 = vpop.f32.mrb[0].mxu0
        %v2357 = vadd.f32 0.0, %v2356
        %v2358 = vpop.f32.mrb[0].mxu0
        %2359 = vmatprep.mubr.f32.mxu0 0.0
        %2360 = vmatmul.mubr.f32.gmra.mrb[0].mxu0 %v2121
        %v2361 = vpop.f32.mrb[0].mxu0
        %v2362 = vadd.f32 0.0, %v2361
        %v2363 = vpop.f32.mrb[0].mxu0
        %2364 = vmatprep.mubr.f32.mxu0 0.0
        %2365 = vmatmul.mubr.f32.gmra.mrb[0].mxu0 %v2124
        %v2366 = vpop.f32.mrb[0].mxu0
        %v2367 = vadd.f32 0.0, %v2366
        %v2368 = vpop.f32.mrb[0].mxu0
        %2369 = vmatprep.mubr.f32.mxu0 0.0
        %2370 = vmatmul.mubr.f32.gmra.mrb[0].mxu0 %v2127
        %v2371 = vpop.f32.mrb[0].mxu0
        %v2372 = vadd.f32 0.0, %v2371
        %v2373 = vpop.f32.mrb[0].mxu0
        %2374 = vmatprep.mubr.f32.mxu0 0.0
        %2375 = vmatmul.mubr.f32.gmra.mrb[0].mxu0 %v2130
        %v2376 = vpop.f32.mrb[0].mxu0
        %v2377 = vadd.f32 0.0, %v2376
        %v2378 = vpop.f32.mrb[0].mxu0
        %2379 = vdwg.mxu0
        %v2380 = vadd.f32 %v1950, %v2202
        %v2381 = vadd.f32 %v1951, %v2207
        %v2382 = vadd.f32 %v1952, %v2212
        %v2383 = vadd.f32 %v1953, %v2217
        %v2384 = vadd.f32 %v1954, %v2222
        %v2385 = vadd.f32 %v1955, %v2227
        %v2386 = vadd.f32 %v1956, %v2232
        %v2387 = vadd.f32 %v1957, %v2237
        %v2388 = vadd.f32 %v1958, %v2242
        %v2389 = vadd.f32 %v1959, %v2247
        %v2390 = vadd.f32 %v1960, %v2252
        %v2391 = vadd.f32 %v1961, %v2257
        %v2392 = vadd.f32 %v1962, %v2262
        %v2393 = vadd.f32 %v1963, %v2267
        %v2394 = vadd.f32 %v1964, %v2272
        %v2395 = vadd.f32 %v1965, %v2277
        %v2396 = vadd.f32 %v1966, %v2282
        %v2397 = vadd.f32 %v1967, %v2287
        %v2398 = vadd.f32 %v1968, %v2292
        %v2399 = vadd.f32 %v1969, %v2297
        %v2400 = vadd.f32 %v1970, %v2302
        %v2401 = vadd.f32 %v1971, %v2307
        %v2402 = vadd.f32 %v1972, %v2312
        %v2403 = vadd.f32 %v1973, %v2317
        %v2404 = vadd.f32 %v1974, %v2322
        %v2405 = vadd.f32 %v1975, %v2327
        %v2406 = vadd.f32 %v1976, %v2332
        %v2407 = vadd.f32 %v1977, %v2337
        %v2408 = vadd.f32 %v1978, %v2342
        %v2409 = vadd.f32 %v1979, %v2347
        %v2410 = vadd.f32 %v1980, %v2352
        %v2411 = vadd.f32 %v1981, %v2357
        %v2412 = vadd.f32 %v1982, %v2362
        %v2413 = vadd.f32 %v1983, %v2367
        %v2414 = vadd.f32 %v1984, %v2372
        %v2415 = vadd.f32 %v1985, %v2377
        %v2416 = vld [vmem:[%s326 + $0x14] sm:$0xff]
        %v2417 = vld [vmem:[%s326 + $0x1c] sm:$0xff]
        %v2418 = vld [vmem:[%s326 + $0x24] sm:$0xff]
        %v2419 = vld [vmem:[%s326 + $0x2c] sm:$0xff]
        %v2420 = vld [vmem:[%s326 + $0x34] sm:$0xff]
        %v2421 = vld [vmem:[%s326 + $0x3c] sm:$0xff]
        %v2422 = vld [vmem:[%s326 + $0x44] sm:$0xff]
        %v2423 = vld [vmem:[%s326 + $0x4c] sm:$0xff]
        %v2424 = vld [vmem:[%s326 + $0x54] sm:$0xff]
        %v2425 = vld [vmem:[%s326 + $0x5c] sm:$0xff]
        %v2426 = vld [vmem:[%s326 + $0x64] sm:$0xff]
        %v2427 = vld [vmem:[%s326 + $0x6c] sm:$0xff]
        %v2428 = vld [vmem:[%s326 + $0x74] sm:$0xff]
        %v2429 = vld [vmem:[%s326 + $0x7c] sm:$0xff]
        %v2430 = vld [vmem:[%s326 + $0x84] sm:$0xff]
        %v2431 = vld [vmem:[%s326 + $0x8c] sm:$0xff]
        %v2432 = vld [vmem:[%s326 + $0x94] sm:$0xff]
        %v2433 = vld [vmem:[%s326 + $0x9c] sm:$0xff]
        %v2434 = vld [vmem:[%s326 + $0xa4] sm:$0xff]
        %v2435 = vld [vmem:[%s326 + $0xac] sm:$0xff]
        %v2436 = vld [vmem:[%s326 + $0xb4] sm:$0xff]
        %v2437 = vld [vmem:[%s326 + $0xbc] sm:$0xff]
        %v2438 = vld [vmem:[%s326 + $0xc4] sm:$0xff]
        %v2439 = vld [vmem:[%s326 + $0xcc] sm:$0xff]
        %v2440 = vld [vmem:[%s326 + $0xd4] sm:$0xff]
        %v2441 = vld [vmem:[%s326 + $0xdc] sm:$0xff]
        %v2442 = vld [vmem:[%s326 + $0xe4] sm:$0xff]
        %v2443 = vld [vmem:[%s326 + $0xec] sm:$0xff]
        %v2444 = vld [vmem:[%s326 + $0xf4] sm:$0xff]
        %v2445 = vld [vmem:[%s326 + $0xfc] sm:$0xff]
        %v2446 = vld [vmem:[%s326 + $0x104] sm:$0xff]
        %v2447 = vld [vmem:[%s326 + $0x10c] sm:$0xff]
        %v2448 = vld [vmem:[%s326 + $0x114] sm:$0xff]
        %v2449 = vld [vmem:[%s326 + $0x11c] sm:$0xff]
        %v2450 = vld [vmem:[%s326 + $0x124] sm:$0xff]
        %v2451 = vld [vmem:[%s326 + $0x12c] sm:$0xff]
        %s2452 = scalar_lea.vmem %s1, 20
        %v2453 = vld [vmem:[%s2452] sm:$0xf]
        %v2455 = vsel %vm412, %v2416, 0
        %v2458 = vsel %vm412, %v2417, 0
        %v2461 = vsel %vm412, %v2418, 0
        %v2464 = vsel %vm412, %v2419, 0
        %v2467 = vsel %vm412, %v2420, 0
        %v2470 = vsel %vm412, %v2421, 0
        %v2473 = vsel %vm412, %v2422, 0
        %v2476 = vsel %vm412, %v2423, 0
        %v2479 = vsel %vm412, %v2424, 0
        %v2482 = vsel %vm412, %v2425, 0
        %v2485 = vsel %vm412, %v2426, 0
        %v2488 = vsel %vm412, %v2427, 0
        %v2491 = vsel %vm412, %v2428, 0
        %v2494 = vsel %vm412, %v2429, 0
        %v2497 = vsel %vm412, %v2430, 0
        %v2500 = vsel %vm412, %v2431, 0
        %v2503 = vsel %vm412, %v2432, 0
        %v2506 = vsel %vm412, %v2433, 0
        %v2509 = vsel %vm412, %v2434, 0
        %v2512 = vsel %vm412, %v2435, 0
        %v2515 = vsel %vm412, %v2436, 0
        %v2518 = vsel %vm412, %v2437, 0
        %v2521 = vsel %vm412, %v2438, 0
        %v2524 = vsel %vm412, %v2439, 0
        %v2527 = vsel %vm412, %v2440, 0
        %v2530 = vsel %vm412, %v2441, 0
        %v2533 = vsel %vm412, %v2442, 0
        %v2536 = vsel %vm412, %v2443, 0
        %v2539 = vsel %vm412, %v2444, 0
        %v2542 = vsel %vm412, %v2445, 0
        %v2545 = vsel %vm412, %v2446, 0
        %v2548 = vsel %vm412, %v2447, 0
        %v2551 = vsel %vm412, %v2448, 0
        %v2554 = vsel %vm412, %v2449, 0
        %v2557 = vsel %vm412, %v2450, 0
        %v2560 = vsel %vm412, %v2451, 0
        %v2563 = vsel %vm521, %v2453, 0
        %2565 = vmatprep.subr.mxu0 0.0
        %2566 = vmatpush1.msra.mxu0 %v2563
        %2567 = vmatprep.subr.mxu0 0.0
        %2568 = vmatpush1.msra.mxu0 0.0
        %2569 = vmatprep.subr.mxu0 0.0
        %2570 = vmatpush1.msra.mxu0 0.0
        %2571 = vmatprep.subr.mxu0 0.0
        %2572 = vmatpush1.msra.mxu0 0.0
        %2573 = vmatprep.subr.mxu0 0.0
        %2574 = vmatpush1.msra.mxu0 0.0
        %2575 = vmatprep.subr.mxu0 0.0
        %2576 = vmatpush1.msra.mxu0 0.0
        %2577 = vmatprep.subr.mxu0 0.0
        %2578 = vmatpush1.msra.mxu0 0.0
        %2579 = vmatprep.subr.mxu0 0.0
        %2580 = vmatpush1.msra.mxu0 0.0
        %2581 = vmatprep.subr.mxu0 0.0
        %2582 = vmatpush1.msra.mxu0 0.0
        %2583 = vmatprep.subr.mxu0 0.0
        %2584 = vmatpush1.msra.mxu0 0.0
        %2585 = vmatprep.subr.mxu0 0.0
        %2586 = vmatpush1.msra.mxu0 0.0
        %2587 = vmatprep.subr.mxu0 0.0
        %2588 = vmatpush1.msra.mxu0 0.0
        %2589 = vmatprep.subr.mxu0 0.0
        %2590 = vmatpush1.msra.mxu0 0.0
        %2591 = vmatprep.subr.mxu0 0.0
        %2592 = vmatpush1.msra.mxu0 0.0
        %2593 = vmatprep.subr.mxu0 0.0
        %2594 = vmatpush1.msra.mxu0 0.0
        %2595 = vmatprep.subr.mxu0 0.0
        %2596 = vmatpush1.msra.mxu0 0.0
        %2597 = vmatprep.subr.mxu0 0.0
        %2598 = vmatpush1.msra.mxu0 0.0
        %2599 = vmatprep.subr.mxu0 0.0
        %2600 = vmatpush1.msra.mxu0 0.0
        %2601 = vmatprep.subr.mxu0 0.0
        %2602 = vmatpush1.msra.mxu0 0.0
        %2603 = vmatprep.subr.mxu0 0.0
        %2604 = vmatpush1.msra.mxu0 0.0
        %2605 = vmatprep.subr.mxu0 0.0
        %2606 = vmatpush1.msra.mxu0 0.0
        %2607 = vmatprep.subr.mxu0 0.0
        %2608 = vmatpush1.msra.mxu0 0.0
        %2609 = vmatprep.subr.mxu0 0.0
        %2610 = vmatpush1.msra.mxu0 0.0
        %2611 = vmatprep.subr.mxu0 0.0
        %2612 = vmatpush1.msra.mxu0 0.0
        %2613 = vmatprep.subr.mxu0 0.0
        %2614 = vmatpush1.msra.mxu0 0.0
        %2615 = vmatprep.subr.mxu0 0.0
        %2616 = vmatpush1.msra.mxu0 0.0
        %2617 = vmatprep.subr.mxu0 0.0
        %2618 = vmatpush1.msra.mxu0 0.0
        %2619 = vmatprep.subr.mxu0 0.0
        %2620 = vmatpush1.msra.mxu0 0.0
        %2621 = vmatprep.subr.mxu0 0.0
        %2622 = vmatpush1.msra.mxu0 0.0
        %2623 = vmatprep.subr.mxu0 0.0
        %2624 = vmatpush1.msra.mxu0 0.0
        %2625 = vmatprep.subr.mxu0 0.0
        %2626 = vmatpush1.msra.mxu0 0.0
        %2627 = vmatprep.subr.mxu0 0.0
        %2628 = vmatpush1.msra.mxu0 0.0
        %2629 = vmatprep.mubr.f32.mxu0 0.0
        %2630 = vmatmul.mubr.f32.gmra.mrb[0].mxu0 %v2455
        %v2631 = vpop.f32.mrb[0].mxu0
        %v2632 = vadd.f32 0.0, %v2631
        %v2633 = vpop.f32.mrb[0].mxu0
        %2634 = vmatprep.mubr.f32.mxu0 0.0
        %2635 = vmatmul.mubr.f32.gmra.mrb[0].mxu0 %v2458
        %v2636 = vpop.f32.mrb[0].mxu0
        %v2637 = vadd.f32 0.0, %v2636
        %v2638 = vpop.f32.mrb[0].mxu0
        %2639 = vmatprep.mubr.f32.mxu0 0.0
        %2640 = vmatmul.mubr.f32.gmra.mrb[0].mxu0 %v2461
        %v2641 = vpop.f32.mrb[0].mxu0
        %v2642 = vadd.f32 0.0, %v2641
        %v2643 = vpop.f32.mrb[0].mxu0
        %2644 = vmatprep.mubr.f32.mxu0 0.0
        %2645 = vmatmul.mubr.f32.gmra.mrb[0].mxu0 %v2464
        %v2646 = vpop.f32.mrb[0].mxu0
        %v2647 = vadd.f32 0.0, %v2646
        %v2648 = vpop.f32.mrb[0].mxu0
        %2649 = vmatprep.mubr.f32.mxu0 0.0
        %2650 = vmatmul.mubr.f32.gmra.mrb[0].mxu0 %v2467
        %v2651 = vpop.f32.mrb[0].mxu0
        %v2652 = vadd.f32 0.0, %v2651
        %v2653 = vpop.f32.mrb[0].mxu0
        %2654 = vmatprep.mubr.f32.mxu0 0.0
        %2655 = vmatmul.mubr.f32.gmra.mrb[0].mxu0 %v2470
        %v2656 = vpop.f32.mrb[0].mxu0
        %v2657 = vadd.f32 0.0, %v2656
        %v2658 = vpop.f32.mrb[0].mxu0
        %2659 = vmatprep.mubr.f32.mxu0 0.0
        %2660 = vmatmul.mubr.f32.gmra.mrb[0].mxu0 %v2473
        %v2661 = vpop.f32.mrb[0].mxu0
        %v2662 = vadd.f32 0.0, %v2661
        %v2663 = vpop.f32.mrb[0].mxu0
        %2664 = vmatprep.mubr.f32.mxu0 0.0
        %2665 = vmatmul.mubr.f32.gmra.mrb[0].mxu0 %v2476
        %v2666 = vpop.f32.mrb[0].mxu0
        %v2667 = vadd.f32 0.0, %v2666
        %v2668 = vpop.f32.mrb[0].mxu0
        %2669 = vmatprep.mubr.f32.mxu0 0.0
        %2670 = vmatmul.mubr.f32.gmra.mrb[0].mxu0 %v2479
        %v2671 = vpop.f32.mrb[0].mxu0
        %v2672 = vadd.f32 0.0, %v2671
        %v2673 = vpop.f32.mrb[0].mxu0
        %2674 = vmatprep.mubr.f32.mxu0 0.0
        %2675 = vmatmul.mubr.f32.gmra.mrb[0].mxu0 %v2482
        %v2676 = vpop.f32.mrb[0].mxu0
        %v2677 = vadd.f32 0.0, %v2676
        %v2678 = vpop.f32.mrb[0].mxu0
        %2679 = vmatprep.mubr.f32.mxu0 0.0
        %2680 = vmatmul.mubr.f32.gmra.mrb[0].mxu0 %v2485
        %v2681 = vpop.f32.mrb[0].mxu0
        %v2682 = vadd.f32 0.0, %v2681
        %v2683 = vpop.f32.mrb[0].mxu0
        %2684 = vmatprep.mubr.f32.mxu0 0.0
        %2685 = vmatmul.mubr.f32.gmra.mrb[0].mxu0 %v2488
        %v2686 = vpop.f32.mrb[0].mxu0
        %v2687 = vadd.f32 0.0, %v2686
        %v2688 = vpop.f32.mrb[0].mxu0
        %2689 = vmatprep.mubr.f32.mxu0 0.0
        %2690 = vmatmul.mubr.f32.gmra.mrb[0].mxu0 %v2491
        %v2691 = vpop.f32.mrb[0].mxu0
        %v2692 = vadd.f32 0.0, %v2691
        %v2693 = vpop.f32.mrb[0].mxu0
        %2694 = vmatprep.mubr.f32.mxu0 0.0
        %2695 = vmatmul.mubr.f32.gmra.mrb[0].mxu0 %v2494
        %v2696 = vpop.f32.mrb[0].mxu0
        %v2697 = vadd.f32 0.0, %v2696
        %v2698 = vpop.f32.mrb[0].mxu0
        %2699 = vmatprep.mubr.f32.mxu0 0.0
        %2700 = vmatmul.mubr.f32.gmra.mrb[0].mxu0 %v2497
        %v2701 = vpop.f32.mrb[0].mxu0
        %v2702 = vadd.f32 0.0, %v2701
        %v2703 = vpop.f32.mrb[0].mxu0
        %2704 = vmatprep.mubr.f32.mxu0 0.0
        %2705 = vmatmul.mubr.f32.gmra.mrb[0].mxu0 %v2500
        %v2706 = vpop.f32.mrb[0].mxu0
        %v2707 = vadd.f32 0.0, %v2706
        %v2708 = vpop.f32.mrb[0].mxu0
        %2709 = vmatprep.mubr.f32.mxu0 0.0
        %2710 = vmatmul.mubr.f32.gmra.mrb[0].mxu0 %v2503
        %v2711 = vpop.f32.mrb[0].mxu0
        %v2712 = vadd.f32 0.0, %v2711
        %v2713 = vpop.f32.mrb[0].mxu0
        %2714 = vmatprep.mubr.f32.mxu0 0.0
        %2715 = vmatmul.mubr.f32.gmra.mrb[0].mxu0 %v2506
        %v2716 = vpop.f32.mrb[0].mxu0
        %v2717 = vadd.f32 0.0, %v2716
        %v2718 = vpop.f32.mrb[0].mxu0
        %2719 = vmatprep.mubr.f32.mxu0 0.0
        %2720 = vmatmul.mubr.f32.gmra.mrb[0].mxu0 %v2509
        %v2721 = vpop.f32.mrb[0].mxu0
        %v2722 = vadd.f32 0.0, %v2721
        %v2723 = vpop.f32.mrb[0].mxu0
        %2724 = vmatprep.mubr.f32.mxu0 0.0
        %2725 = vmatmul.mubr.f32.gmra.mrb[0].mxu0 %v2512
        %v2726 = vpop.f32.mrb[0].mxu0
        %v2727 = vadd.f32 0.0, %v2726
        %v2728 = vpop.f32.mrb[0].mxu0
        %2729 = vmatprep.mubr.f32.mxu0 0.0
        %2730 = vmatmul.mubr.f32.gmra.mrb[0].mxu0 %v2515
        %v2731 = vpop.f32.mrb[0].mxu0
        %v2732 = vadd.f32 0.0, %v2731
        %v2733 = vpop.f32.mrb[0].mxu0
        %2734 = vmatprep.mubr.f32.mxu0 0.0
        %2735 = vmatmul.mubr.f32.gmra.mrb[0].mxu0 %v2518
        %v2736 = vpop.f32.mrb[0].mxu0
        %v2737 = vadd.f32 0.0, %v2736
        %v2738 = vpop.f32.mrb[0].mxu0
        %2739 = vmatprep.mubr.f32.mxu0 0.0
        %2740 = vmatmul.mubr.f32.gmra.mrb[0].mxu0 %v2521
        %v2741 = vpop.f32.mrb[0].mxu0
        %v2742 = vadd.f32 0.0, %v2741
        %v2743 = vpop.f32.mrb[0].mxu0
        %2744 = vmatprep.mubr.f32.mxu0 0.0
        %2745 = vmatmul.mubr.f32.gmra.mrb[0].mxu0 %v2524
        %v2746 = vpop.f32.mrb[0].mxu0
        %v2747 = vadd.f32 0.0, %v2746
        %v2748 = vpop.f32.mrb[0].mxu0
        %2749 = vmatprep.mubr.f32.mxu0 0.0
        %2750 = vmatmul.mubr.f32.gmra.mrb[0].mxu0 %v2527
        %v2751 = vpop.f32.mrb[0].mxu0
        %v2752 = vadd.f32 0.0, %v2751
        %v2753 = vpop.f32.mrb[0].mxu0
        %2754 = vmatprep.mubr.f32.mxu0 0.0
        %2755 = vmatmul.mubr.f32.gmra.mrb[0].mxu0 %v2530
        %v2756 = vpop.f32.mrb[0].mxu0
        %v2757 = vadd.f32 0.0, %v2756
        %v2758 = vpop.f32.mrb[0].mxu0
        %2759 = vmatprep.mubr.f32.mxu0 0.0
        %2760 = vmatmul.mubr.f32.gmra.mrb[0].mxu0 %v2533
        %v2761 = vpop.f32.mrb[0].mxu0
        %v2762 = vadd.f32 0.0, %v2761
        %v2763 = vpop.f32.mrb[0].mxu0
        %2764 = vmatprep.mubr.f32.mxu0 0.0
        %2765 = vmatmul.mubr.f32.gmra.mrb[0].mxu0 %v2536
        %v2766 = vpop.f32.mrb[0].mxu0
        %v2767 = vadd.f32 0.0, %v2766
        %v2768 = vpop.f32.mrb[0].mxu0
        %2769 = vmatprep.mubr.f32.mxu0 0.0
        %2770 = vmatmul.mubr.f32.gmra.mrb[0].mxu0 %v2539
        %v2771 = vpop.f32.mrb[0].mxu0
        %v2772 = vadd.f32 0.0, %v2771
        %v2773 = vpop.f32.mrb[0].mxu0
        %2774 = vmatprep.mubr.f32.mxu0 0.0
        %2775 = vmatmul.mubr.f32.gmra.mrb[0].mxu0 %v2542
        %v2776 = vpop.f32.mrb[0].mxu0
        %v2777 = vadd.f32 0.0, %v2776
        %v2778 = vpop.f32.mrb[0].mxu0
        %2779 = vmatprep.mubr.f32.mxu0 0.0
        %2780 = vmatmul.mubr.f32.gmra.mrb[0].mxu0 %v2545
        %v2781 = vpop.f32.mrb[0].mxu0
        %v2782 = vadd.f32 0.0, %v2781
        %v2783 = vpop.f32.mrb[0].mxu0
        %2784 = vmatprep.mubr.f32.mxu0 0.0
        %2785 = vmatmul.mubr.f32.gmra.mrb[0].mxu0 %v2548
        %v2786 = vpop.f32.mrb[0].mxu0
        %v2787 = vadd.f32 0.0, %v2786
        %v2788 = vpop.f32.mrb[0].mxu0
        %2789 = vmatprep.mubr.f32.mxu0 0.0
        %2790 = vmatmul.mubr.f32.gmra.mrb[0].mxu0 %v2551
        %v2791 = vpop.f32.mrb[0].mxu0
        %v2792 = vadd.f32 0.0, %v2791
        %v2793 = vpop.f32.mrb[0].mxu0
        %2794 = vmatprep.mubr.f32.mxu0 0.0
        %2795 = vmatmul.mubr.f32.gmra.mrb[0].mxu0 %v2554
        %v2796 = vpop.f32.mrb[0].mxu0
        %v2797 = vadd.f32 0.0, %v2796
        %v2798 = vpop.f32.mrb[0].mxu0
        %2799 = vmatprep.mubr.f32.mxu0 0.0
        %2800 = vmatmul.mubr.f32.gmra.mrb[0].mxu0 %v2557
        %v2801 = vpop.f32.mrb[0].mxu0
        %v2802 = vadd.f32 0.0, %v2801
        %v2803 = vpop.f32.mrb[0].mxu0
        %2804 = vmatprep.mubr.f32.mxu0 0.0
        %2805 = vmatmul.mubr.f32.gmra.mrb[0].mxu0 %v2560
        %v2806 = vpop.f32.mrb[0].mxu0
        %v2807 = vadd.f32 0.0, %v2806
        %v2808 = vpop.f32.mrb[0].mxu0
        %2809 = vdwg.mxu0
        %v2810 = vadd.f32 %v2380, %v2632
        %v2811 = vadd.f32 %v2381, %v2637
        %v2812 = vadd.f32 %v2382, %v2642
        %v2813 = vadd.f32 %v2383, %v2647
        %v2814 = vadd.f32 %v2384, %v2652
        %v2815 = vadd.f32 %v2385, %v2657
        %v2816 = vadd.f32 %v2386, %v2662
        %v2817 = vadd.f32 %v2387, %v2667
        %v2818 = vadd.f32 %v2388, %v2672
        %v2819 = vadd.f32 %v2389, %v2677
        %v2820 = vadd.f32 %v2390, %v2682
        %v2821 = vadd.f32 %v2391, %v2687
        %v2822 = vadd.f32 %v2392, %v2692
        %v2823 = vadd.f32 %v2393, %v2697
        %v2824 = vadd.f32 %v2394, %v2702
        %v2825 = vadd.f32 %v2395, %v2707
        %v2826 = vadd.f32 %v2396, %v2712
        %v2827 = vadd.f32 %v2397, %v2717
        %v2828 = vadd.f32 %v2398, %v2722
        %v2829 = vadd.f32 %v2399, %v2727
        %v2830 = vadd.f32 %v2400, %v2732
        %v2831 = vadd.f32 %v2401, %v2737
        %v2832 = vadd.f32 %v2402, %v2742
        %v2833 = vadd.f32 %v2403, %v2747
        %v2834 = vadd.f32 %v2404, %v2752
        %v2835 = vadd.f32 %v2405, %v2757
        %v2836 = vadd.f32 %v2406, %v2762
        %v2837 = vadd.f32 %v2407, %v2767
        %v2838 = vadd.f32 %v2408, %v2772
        %v2839 = vadd.f32 %v2409, %v2777
        %v2840 = vadd.f32 %v2410, %v2782
        %v2841 = vadd.f32 %v2411, %v2787
        %v2842 = vadd.f32 %v2412, %v2792
        %v2843 = vadd.f32 %v2413, %v2797
        %v2844 = vadd.f32 %v2414, %v2802
        %v2845 = vadd.f32 %v2415, %v2807
        %v2846 = vld [vmem:[%s326 + $0x24] sm:$0xff]
        %v2847 = vld [vmem:[%s326 + $0x2c] sm:$0xff]
        %v2848 = vld [vmem:[%s326 + $0x34] sm:$0xff]
        %v2849 = vld [vmem:[%s326 + $0x3c] sm:$0xff]
        %v2850 = vld [vmem:[%s326 + $0x44] sm:$0xff]
        %v2851 = vld [vmem:[%s326 + $0x4c] sm:$0xff]
        %v2852 = vld [vmem:[%s326 + $0x54] sm:$0xff]
        %v2853 = vld [vmem:[%s326 + $0x5c] sm:$0xff]
        %v2854 = vld [vmem:[%s326 + $0x64] sm:$0xff]
        %v2855 = vld [vmem:[%s326 + $0x6c] sm:$0xff]
        %v2856 = vld [vmem:[%s326 + $0x74] sm:$0xff]
        %v2857 = vld [vmem:[%s326 + $0x7c] sm:$0xff]
        %v2858 = vld [vmem:[%s326 + $0x84] sm:$0xff]
        %v2859 = vld [vmem:[%s326 + $0x8c] sm:$0xff]
        %v2860 = vld [vmem:[%s326 + $0x94] sm:$0xff]
        %v2861 = vld [vmem:[%s326 + $0x9c] sm:$0xff]
        %v2862 = vld [vmem:[%s326 + $0xa4] sm:$0xff]
        %v2863 = vld [vmem:[%s326 + $0xac] sm:$0xff]
        %v2864 = vld [vmem:[%s326 + $0xb4] sm:$0xff]
        %v2865 = vld [vmem:[%s326 + $0xbc] sm:$0xff]
        %v2866 = vld [vmem:[%s326 + $0xc4] sm:$0xff]
        %v2867 = vld [vmem:[%s326 + $0xcc] sm:$0xff]
        %v2868 = vld [vmem:[%s326 + $0xd4] sm:$0xff]
        %v2869 = vld [vmem:[%s326 + $0xdc] sm:$0xff]
        %v2870 = vld [vmem:[%s326 + $0xe4] sm:$0xff]
        %v2871 = vld [vmem:[%s326 + $0xec] sm:$0xff]
        %v2872 = vld [vmem:[%s326 + $0xf4] sm:$0xff]
        %v2873 = vld [vmem:[%s326 + $0xfc] sm:$0xff]
        %v2874 = vld [vmem:[%s326 + $0x104] sm:$0xff]
        %v2875 = vld [vmem:[%s326 + $0x10c] sm:$0xff]
        %v2876 = vld [vmem:[%s326 + $0x114] sm:$0xff]
        %v2877 = vld [vmem:[%s326 + $0x11c] sm:$0xff]
        %v2878 = vld [vmem:[%s326 + $0x124] sm:$0xff]
        %v2879 = vld [vmem:[%s326 + $0x12c] sm:$0xff]
        %v2880 = vld [vmem:[%s326 + $0x134] sm:$0xff]
        %v2881 = vld [vmem:[%s326 + $0x13c] sm:$0xff]
        %s2882 = scalar_lea.vmem %s1, 24
        %v2883 = vld [vmem:[%s2882] sm:$0xf]
        %v2885 = vsel %vm412, %v2846, 0
        %v2888 = vsel %vm412, %v2847, 0
        %v2891 = vsel %vm412, %v2848, 0
        %v2894 = vsel %vm412, %v2849, 0
        %v2897 = vsel %vm412, %v2850, 0
        %v2900 = vsel %vm412, %v2851, 0
        %v2903 = vsel %vm412, %v2852, 0
        %v2906 = vsel %vm412, %v2853, 0
        %v2909 = vsel %vm412, %v2854, 0
        %v2912 = vsel %vm412, %v2855, 0
        %v2915 = vsel %vm412, %v2856, 0
        %v2918 = vsel %vm412, %v2857, 0
        %v2921 = vsel %vm412, %v2858, 0
        %v2924 = vsel %vm412, %v2859, 0
        %v2927 = vsel %vm412, %v2860, 0
        %v2930 = vsel %vm412, %v2861, 0
        %v2933 = vsel %vm412, %v2862, 0
        %v2936 = vsel %vm412, %v2863, 0
        %v2939 = vsel %vm412, %v2864, 0
        %v2942 = vsel %vm412, %v2865, 0
        %v2945 = vsel %vm412, %v2866, 0
        %v2948 = vsel %vm412, %v2867, 0
        %v2951 = vsel %vm412, %v2868, 0
        %v2954 = vsel %vm412, %v2869, 0
        %v2957 = vsel %vm412, %v2870, 0
        %v2960 = vsel %vm412, %v2871, 0
        %v2963 = vsel %vm412, %v2872, 0
        %v2966 = vsel %vm412, %v2873, 0
        %v2969 = vsel %vm412, %v2874, 0
        %v2972 = vsel %vm412, %v2875, 0
        %v2975 = vsel %vm412, %v2876, 0
        %v2978 = vsel %vm412, %v2877, 0
        %v2981 = vsel %vm412, %v2878, 0
        %v2984 = vsel %vm412, %v2879, 0
        %v2987 = vsel %vm412, %v2880, 0
        %v2990 = vsel %vm412, %v2881, 0
        %v2993 = vsel %vm521, %v2883, 0
        %2995 = vmatprep.subr.mxu0 0.0
        %2996 = vmatpush1.msra.mxu0 %v2993
        %2997 = vmatprep.subr.mxu0 0.0
        %2998 = vmatpush1.msra.mxu0 0.0
        %2999 = vmatprep.subr.mxu0 0.0
        %3000 = vmatpush1.msra.mxu0 0.0
        %3001 = vmatprep.subr.mxu0 0.0
        %3002 = vmatpush1.msra.mxu0 0.0
        %3003 = vmatprep.subr.mxu0 0.0
        %3004 = vmatpush1.msra.mxu0 0.0
        %3005 = vmatprep.subr.mxu0 0.0
        %3006 = vmatpush1.msra.mxu0 0.0
        %3007 = vmatprep.subr.mxu0 0.0
        %3008 = vmatpush1.msra.mxu0 0.0
        %3009 = vmatprep.subr.mxu0 0.0
        %3010 = vmatpush1.msra.mxu0 0.0
        %3011 = vmatprep.subr.mxu0 0.0
        %3012 = vmatpush1.msra.mxu0 0.0
        %3013 = vmatprep.subr.mxu0 0.0
        %3014 = vmatpush1.msra.mxu0 0.0
        %3015 = vmatprep.subr.mxu0 0.0
        %3016 = vmatpush1.msra.mxu0 0.0
        %3017 = vmatprep.subr.mxu0 0.0
        %3018 = vmatpush1.msra.mxu0 0.0
        %3019 = vmatprep.subr.mxu0 0.0
        %3020 = vmatpush1.msra.mxu0 0.0
        %3021 = vmatprep.subr.mxu0 0.0
        %3022 = vmatpush1.msra.mxu0 0.0
        %3023 = vmatprep.subr.mxu0 0.0
        %3024 = vmatpush1.msra.mxu0 0.0
        %3025 = vmatprep.subr.mxu0 0.0
        %3026 = vmatpush1.msra.mxu0 0.0
        %3027 = vmatprep.subr.mxu0 0.0
        %3028 = vmatpush1.msra.mxu0 0.0
        %3029 = vmatprep.subr.mxu0 0.0
        %3030 = vmatpush1.msra.mxu0 0.0
        %3031 = vmatprep.subr.mxu0 0.0
        %3032 = vmatpush1.msra.mxu0 0.0
        %3033 = vmatprep.subr.mxu0 0.0
        %3034 = vmatpush1.msra.mxu0 0.0
        %3035 = vmatprep.subr.mxu0 0.0
        %3036 = vmatpush1.msra.mxu0 0.0
        %3037 = vmatprep.subr.mxu0 0.0
        %3038 = vmatpush1.msra.mxu0 0.0
        %3039 = vmatprep.subr.mxu0 0.0
        %3040 = vmatpush1.msra.mxu0 0.0
        %3041 = vmatprep.subr.mxu0 0.0
        %3042 = vmatpush1.msra.mxu0 0.0
        %3043 = vmatprep.subr.mxu0 0.0
        %3044 = vmatpush1.msra.mxu0 0.0
        %3045 = vmatprep.subr.mxu0 0.0
        %3046 = vmatpush1.msra.mxu0 0.0
        %3047 = vmatprep.subr.mxu0 0.0
        %3048 = vmatpush1.msra.mxu0 0.0
        %3049 = vmatprep.subr.mxu0 0.0
        %3050 = vmatpush1.msra.mxu0 0.0
        %3051 = vmatprep.subr.mxu0 0.0
        %3052 = vmatpush1.msra.mxu0 0.0
        %3053 = vmatprep.subr.mxu0 0.0
        %3054 = vmatpush1.msra.mxu0 0.0
        %3055 = vmatprep.subr.mxu0 0.0
        %3056 = vmatpush1.msra.mxu0 0.0
        %3057 = vmatprep.subr.mxu0 0.0
        %3058 = vmatpush1.msra.mxu0 0.0
        %3059 = vmatprep.mubr.f32.mxu0 0.0
        %3060 = vmatmul.mubr.f32.gmra.mrb[0].mxu0 %v2885
        %v3061 = vpop.f32.mrb[0].mxu0
        %v3062 = vadd.f32 0.0, %v3061
        %v3063 = vpop.f32.mrb[0].mxu0
        %3064 = vmatprep.mubr.f32.mxu0 0.0
        %3065 = vmatmul.mubr.f32.gmra.mrb[0].mxu0 %v2888
        %v3066 = vpop.f32.mrb[0].mxu0
        %v3067 = vadd.f32 0.0, %v3066
        %v3068 = vpop.f32.mrb[0].mxu0
        %3069 = vmatprep.mubr.f32.mxu0 0.0
        %3070 = vmatmul.mubr.f32.gmra.mrb[0].mxu0 %v2891
        %v3071 = vpop.f32.mrb[0].mxu0
        %v3072 = vadd.f32 0.0, %v3071
        %v3073 = vpop.f32.mrb[0].mxu0
        %3074 = vmatprep.mubr.f32.mxu0 0.0
        %3075 = vmatmul.mubr.f32.gmra.mrb[0].mxu0 %v2894
        %v3076 = vpop.f32.mrb[0].mxu0
        %v3077 = vadd.f32 0.0, %v3076
        %v3078 = vpop.f32.mrb[0].mxu0
        %3079 = vmatprep.mubr.f32.mxu0 0.0
        %3080 = vmatmul.mubr.f32.gmra.mrb[0].mxu0 %v2897
        %v3081 = vpop.f32.mrb[0].mxu0
        %v3082 = vadd.f32 0.0, %v3081
        %v3083 = vpop.f32.mrb[0].mxu0
        %3084 = vmatprep.mubr.f32.mxu0 0.0
        %3085 = vmatmul.mubr.f32.gmra.mrb[0].mxu0 %v2900
        %v3086 = vpop.f32.mrb[0].mxu0
        %v3087 = vadd.f32 0.0, %v3086
        %v3088 = vpop.f32.mrb[0].mxu0
        %3089 = vmatprep.mubr.f32.mxu0 0.0
        %3090 = vmatmul.mubr.f32.gmra.mrb[0].mxu0 %v2903
        %v3091 = vpop.f32.mrb[0].mxu0
        %v3092 = vadd.f32 0.0, %v3091
        %v3093 = vpop.f32.mrb[0].mxu0
        %3094 = vmatprep.mubr.f32.mxu0 0.0
        %3095 = vmatmul.mubr.f32.gmra.mrb[0].mxu0 %v2906
        %v3096 = vpop.f32.mrb[0].mxu0
        %v3097 = vadd.f32 0.0, %v3096
        %v3098 = vpop.f32.mrb[0].mxu0
        %3099 = vmatprep.mubr.f32.mxu0 0.0
        %3100 = vmatmul.mubr.f32.gmra.mrb[0].mxu0 %v2909
        %v3101 = vpop.f32.mrb[0].mxu0
        %v3102 = vadd.f32 0.0, %v3101
        %v3103 = vpop.f32.mrb[0].mxu0
        %3104 = vmatprep.mubr.f32.mxu0 0.0
        %3105 = vmatmul.mubr.f32.gmra.mrb[0].mxu0 %v2912
        %v3106 = vpop.f32.mrb[0].mxu0
        %v3107 = vadd.f32 0.0, %v3106
        %v3108 = vpop.f32.mrb[0].mxu0
        %3109 = vmatprep.mubr.f32.mxu0 0.0
        %3110 = vmatmul.mubr.f32.gmra.mrb[0].mxu0 %v2915
        %v3111 = vpop.f32.mrb[0].mxu0
        %v3112 = vadd.f32 0.0, %v3111
        %v3113 = vpop.f32.mrb[0].mxu0
        %3114 = vmatprep.mubr.f32.mxu0 0.0
        %3115 = vmatmul.mubr.f32.gmra.mrb[0].mxu0 %v2918
        %v3116 = vpop.f32.mrb[0].mxu0
        %v3117 = vadd.f32 0.0, %v3116
        %v3118 = vpop.f32.mrb[0].mxu0
        %3119 = vmatprep.mubr.f32.mxu0 0.0
        %3120 = vmatmul.mubr.f32.gmra.mrb[0].mxu0 %v2921
        %v3121 = vpop.f32.mrb[0].mxu0
        %v3122 = vadd.f32 0.0, %v3121
        %v3123 = vpop.f32.mrb[0].mxu0
        %3124 = vmatprep.mubr.f32.mxu0 0.0
        %3125 = vmatmul.mubr.f32.gmra.mrb[0].mxu0 %v2924
        %v3126 = vpop.f32.mrb[0].mxu0
        %v3127 = vadd.f32 0.0, %v3126
        %v3128 = vpop.f32.mrb[0].mxu0
        %3129 = vmatprep.mubr.f32.mxu0 0.0
        %3130 = vmatmul.mubr.f32.gmra.mrb[0].mxu0 %v2927
        %v3131 = vpop.f32.mrb[0].mxu0
        %v3132 = vadd.f32 0.0, %v3131
        %v3133 = vpop.f32.mrb[0].mxu0
        %3134 = vmatprep.mubr.f32.mxu0 0.0
        %3135 = vmatmul.mubr.f32.gmra.mrb[0].mxu0 %v2930
        %v3136 = vpop.f32.mrb[0].mxu0
        %v3137 = vadd.f32 0.0, %v3136
        %v3138 = vpop.f32.mrb[0].mxu0
        %3139 = vmatprep.mubr.f32.mxu0 0.0
        %3140 = vmatmul.mubr.f32.gmra.mrb[0].mxu0 %v2933
        %v3141 = vpop.f32.mrb[0].mxu0
        %v3142 = vadd.f32 0.0, %v3141
        %v3143 = vpop.f32.mrb[0].mxu0
        %3144 = vmatprep.mubr.f32.mxu0 0.0
        %3145 = vmatmul.mubr.f32.gmra.mrb[0].mxu0 %v2936
        %v3146 = vpop.f32.mrb[0].mxu0
        %v3147 = vadd.f32 0.0, %v3146
        %v3148 = vpop.f32.mrb[0].mxu0
        %3149 = vmatprep.mubr.f32.mxu0 0.0
        %3150 = vmatmul.mubr.f32.gmra.mrb[0].mxu0 %v2939
        %v3151 = vpop.f32.mrb[0].mxu0
        %v3152 = vadd.f32 0.0, %v3151
        %v3153 = vpop.f32.mrb[0].mxu0
        %3154 = vmatprep.mubr.f32.mxu0 0.0
        %3155 = vmatmul.mubr.f32.gmra.mrb[0].mxu0 %v2942
        %v3156 = vpop.f32.mrb[0].mxu0
        %v3157 = vadd.f32 0.0, %v3156
        %v3158 = vpop.f32.mrb[0].mxu0
        %3159 = vmatprep.mubr.f32.mxu0 0.0
        %3160 = vmatmul.mubr.f32.gmra.mrb[0].mxu0 %v2945
        %v3161 = vpop.f32.mrb[0].mxu0
        %v3162 = vadd.f32 0.0, %v3161
        %v3163 = vpop.f32.mrb[0].mxu0
        %3164 = vmatprep.mubr.f32.mxu0 0.0
        %3165 = vmatmul.mubr.f32.gmra.mrb[0].mxu0 %v2948
        %v3166 = vpop.f32.mrb[0].mxu0
        %v3167 = vadd.f32 0.0, %v3166
        %v3168 = vpop.f32.mrb[0].mxu0
        %3169 = vmatprep.mubr.f32.mxu0 0.0
        %3170 = vmatmul.mubr.f32.gmra.mrb[0].mxu0 %v2951
        %v3171 = vpop.f32.mrb[0].mxu0
        %v3172 = vadd.f32 0.0, %v3171
        %v3173 = vpop.f32.mrb[0].mxu0
        %3174 = vmatprep.mubr.f32.mxu0 0.0
        %3175 = vmatmul.mubr.f32.gmra.mrb[0].mxu0 %v2954
        %v3176 = vpop.f32.mrb[0].mxu0
        %v3177 = vadd.f32 0.0, %v3176
        %v3178 = vpop.f32.mrb[0].mxu0
        %3179 = vmatprep.mubr.f32.mxu0 0.0
        %3180 = vmatmul.mubr.f32.gmra.mrb[0].mxu0 %v2957
        %v3181 = vpop.f32.mrb[0].mxu0
        %v3182 = vadd.f32 0.0, %v3181
        %v3183 = vpop.f32.mrb[0].mxu0
        %3184 = vmatprep.mubr.f32.mxu0 0.0
        %3185 = vmatmul.mubr.f32.gmra.mrb[0].mxu0 %v2960
        %v3186 = vpop.f32.mrb[0].mxu0
        %v3187 = vadd.f32 0.0, %v3186
        %v3188 = vpop.f32.mrb[0].mxu0
        %3189 = vmatprep.mubr.f32.mxu0 0.0
        %3190 = vmatmul.mubr.f32.gmra.mrb[0].mxu0 %v2963
        %v3191 = vpop.f32.mrb[0].mxu0
        %v3192 = vadd.f32 0.0, %v3191
        %v3193 = vpop.f32.mrb[0].mxu0
        %3194 = vmatprep.mubr.f32.mxu0 0.0
        %3195 = vmatmul.mubr.f32.gmra.mrb[0].mxu0 %v2966
        %v3196 = vpop.f32.mrb[0].mxu0
        %v3197 = vadd.f32 0.0, %v3196
        %v3198 = vpop.f32.mrb[0].mxu0
        %3199 = vmatprep.mubr.f32.mxu0 0.0
        %3200 = vmatmul.mubr.f32.gmra.mrb[0].mxu0 %v2969
        %v3201 = vpop.f32.mrb[0].mxu0
        %v3202 = vadd.f32 0.0, %v3201
        %v3203 = vpop.f32.mrb[0].mxu0
        %3204 = vmatprep.mubr.f32.mxu0 0.0
        %3205 = vmatmul.mubr.f32.gmra.mrb[0].mxu0 %v2972
        %v3206 = vpop.f32.mrb[0].mxu0
        %v3207 = vadd.f32 0.0, %v3206
        %v3208 = vpop.f32.mrb[0].mxu0
        %3209 = vmatprep.mubr.f32.mxu0 0.0
        %3210 = vmatmul.mubr.f32.gmra.mrb[0].mxu0 %v2975
        %v3211 = vpop.f32.mrb[0].mxu0
        %v3212 = vadd.f32 0.0, %v3211
        %v3213 = vpop.f32.mrb[0].mxu0
        %3214 = vmatprep.mubr.f32.mxu0 0.0
        %3215 = vmatmul.mubr.f32.gmra.mrb[0].mxu0 %v2978
        %v3216 = vpop.f32.mrb[0].mxu0
        %v3217 = vadd.f32 0.0, %v3216
        %v3218 = vpop.f32.mrb[0].mxu0
        %3219 = vmatprep.mubr.f32.mxu0 0.0
        %3220 = vmatmul.mubr.f32.gmra.mrb[0].mxu0 %v2981
        %v3221 = vpop.f32.mrb[0].mxu0
        %v3222 = vadd.f32 0.0, %v3221
        %v3223 = vpop.f32.mrb[0].mxu0
        %3224 = vmatprep.mubr.f32.mxu0 0.0
        %3225 = vmatmul.mubr.f32.gmra.mrb[0].mxu0 %v2984
        %v3226 = vpop.f32.mrb[0].mxu0
        %v3227 = vadd.f32 0.0, %v3226
        %v3228 = vpop.f32.mrb[0].mxu0
        %3229 = vmatprep.mubr.f32.mxu0 0.0
        %3230 = vmatmul.mubr.f32.gmra.mrb[0].mxu0 %v2987
        %v3231 = vpop.f32.mrb[0].mxu0
        %v3232 = vadd.f32 0.0, %v3231
        %v3233 = vpop.f32.mrb[0].mxu0
        %3234 = vmatprep.mubr.f32.mxu0 0.0
        %3235 = vmatmul.mubr.f32.gmra.mrb[0].mxu0 %v2990
        %v3236 = vpop.f32.mrb[0].mxu0
        %v3237 = vadd.f32 0.0, %v3236
        %v3238 = vpop.f32.mrb[0].mxu0
        %3239 = vdwg.mxu0
        %v3240 = vadd.f32 %v2810, %v3062
        %v3241 = vadd.f32 %v2811, %v3067
        %v3242 = vadd.f32 %v2812, %v3072
        %v3243 = vadd.f32 %v2813, %v3077
        %v3244 = vadd.f32 %v2814, %v3082
        %v3245 = vadd.f32 %v2815, %v3087
        %v3246 = vadd.f32 %v2816, %v3092
        %v3247 = vadd.f32 %v2817, %v3097
        %v3248 = vadd.f32 %v2818, %v3102
        %v3249 = vadd.f32 %v2819, %v3107
        %v3250 = vadd.f32 %v2820, %v3112
        %v3251 = vadd.f32 %v2821, %v3117
        %v3252 = vadd.f32 %v2822, %v3122
        %v3253 = vadd.f32 %v2823, %v3127
        %v3254 = vadd.f32 %v2824, %v3132
        %v3255 = vadd.f32 %v2825, %v3137
        %v3256 = vadd.f32 %v2826, %v3142
        %v3257 = vadd.f32 %v2827, %v3147
        %v3258 = vadd.f32 %v2828, %v3152
        %v3259 = vadd.f32 %v2829, %v3157
        %v3260 = vadd.f32 %v2830, %v3162
        %v3261 = vadd.f32 %v2831, %v3167
        %v3262 = vadd.f32 %v2832, %v3172
        %v3263 = vadd.f32 %v2833, %v3177
        %v3264 = vadd.f32 %v2834, %v3182
        %v3265 = vadd.f32 %v2835, %v3187
        %v3266 = vadd.f32 %v2836, %v3192
        %v3267 = vadd.f32 %v2837, %v3197
        %v3268 = vadd.f32 %v2838, %v3202
        %v3269 = vadd.f32 %v2839, %v3207
        %v3270 = vadd.f32 %v2840, %v3212
        %v3271 = vadd.f32 %v2841, %v3217
        %v3272 = vadd.f32 %v2842, %v3222
        %v3273 = vadd.f32 %v2843, %v3227
        %v3274 = vadd.f32 %v2844, %v3232
        %v3275 = vadd.f32 %v2845, %v3237
        %v3276 = vld [vmem:[%s326 + $0x25] sm:$0xff]
        %v3277 = vld [vmem:[%s326 + $0x2d] sm:$0xff]
        %v3278 = vld [vmem:[%s326 + $0x35] sm:$0xff]
        %v3279 = vld [vmem:[%s326 + $0x3d] sm:$0xff]
        %v3280 = vld [vmem:[%s326 + $0x45] sm:$0xff]
        %v3281 = vld [vmem:[%s326 + $0x4d] sm:$0xff]
        %v3282 = vld [vmem:[%s326 + $0x55] sm:$0xff]
        %v3283 = vld [vmem:[%s326 + $0x5d] sm:$0xff]
        %v3284 = vld [vmem:[%s326 + $0x65] sm:$0xff]
        %v3285 = vld [vmem:[%s326 + $0x6d] sm:$0xff]
        %v3286 = vld [vmem:[%s326 + $0x75] sm:$0xff]
        %v3287 = vld [vmem:[%s326 + $0x7d] sm:$0xff]
        %v3288 = vld [vmem:[%s326 + $0x85] sm:$0xff]
        %v3289 = vld [vmem:[%s326 + $0x8d] sm:$0xff]
        %v3290 = vld [vmem:[%s326 + $0x95] sm:$0xff]
        %v3291 = vld [vmem:[%s326 + $0x9d] sm:$0xff]
        %v3292 = vld [vmem:[%s326 + $0xa5] sm:$0xff]
        %v3293 = vld [vmem:[%s326 + $0xad] sm:$0xff]
        %v3294 = vld [vmem:[%s326 + $0xb5] sm:$0xff]
        %v3295 = vld [vmem:[%s326 + $0xbd] sm:$0xff]
        %v3296 = vld [vmem:[%s326 + $0xc5] sm:$0xff]
        %v3297 = vld [vmem:[%s326 + $0xcd] sm:$0xff]
        %v3298 = vld [vmem:[%s326 + $0xd5] sm:$0xff]
        %v3299 = vld [vmem:[%s326 + $0xdd] sm:$0xff]
        %v3300 = vld [vmem:[%s326 + $0xe5] sm:$0xff]
        %v3301 = vld [vmem:[%s326 + $0xed] sm:$0xff]
        %v3302 = vld [vmem:[%s326 + $0xf5] sm:$0xff]
        %v3303 = vld [vmem:[%s326 + $0xfd] sm:$0xff]
        %v3304 = vld [vmem:[%s326 + $0x105] sm:$0xff]
        %v3305 = vld [vmem:[%s326 + $0x10d] sm:$0xff]
        %v3306 = vld [vmem:[%s326 + $0x115] sm:$0xff]
        %v3307 = vld [vmem:[%s326 + $0x11d] sm:$0xff]
        %v3308 = vld [vmem:[%s326 + $0x125] sm:$0xff]
        %v3309 = vld [vmem:[%s326 + $0x12d] sm:$0xff]
        %v3310 = vld [vmem:[%s326 + $0x135] sm:$0xff]
        %v3311 = vld [vmem:[%s326 + $0x13d] sm:$0xff]
        %s3312 = scalar_lea.vmem %s1, 28
        %v3313 = vld [vmem:[%s3312] sm:$0xf]
        %v3315 = vsel %vm412, %v3276, 0
        %v3318 = vsel %vm412, %v3277, 0
        %v3321 = vsel %vm412, %v3278, 0
        %v3324 = vsel %vm412, %v3279, 0
        %v3327 = vsel %vm412, %v3280, 0
        %v3330 = vsel %vm412, %v3281, 0
        %v3333 = vsel %vm412, %v3282, 0
        %v3336 = vsel %vm412, %v3283, 0
        %v3339 = vsel %vm412, %v3284, 0
        %v3342 = vsel %vm412, %v3285, 0
        %v3345 = vsel %vm412, %v3286, 0
        %v3348 = vsel %vm412, %v3287, 0
        %v3351 = vsel %vm412, %v3288, 0
        %v3354 = vsel %vm412, %v3289, 0
        %v3357 = vsel %vm412, %v3290, 0
        %v3360 = vsel %vm412, %v3291, 0
        %v3363 = vsel %vm412, %v3292, 0
        %v3366 = vsel %vm412, %v3293, 0
        %v3369 = vsel %vm412, %v3294, 0
        %v3372 = vsel %vm412, %v3295, 0
        %v3375 = vsel %vm412, %v3296, 0
        %v3378 = vsel %vm412, %v3297, 0
        %v3381 = vsel %vm412, %v3298, 0
        %v3384 = vsel %vm412, %v3299, 0
        %v3387 = vsel %vm412, %v3300, 0
        %v3390 = vsel %vm412, %v3301, 0
        %v3393 = vsel %vm412, %v3302, 0
        %v3396 = vsel %vm412, %v3303, 0
        %v3399 = vsel %vm412, %v3304, 0
        %v3402 = vsel %vm412, %v3305, 0
        %v3405 = vsel %vm412, %v3306, 0
        %v3408 = vsel %vm412, %v3307, 0
        %v3411 = vsel %vm412, %v3308, 0
        %v3414 = vsel %vm412, %v3309, 0
        %v3417 = vsel %vm412, %v3310, 0
        %v3420 = vsel %vm412, %v3311, 0
        %v3423 = vsel %vm521, %v3313, 0
        %3425 = vmatprep.subr.mxu0 0.0
        %3426 = vmatpush1.msra.mxu0 %v3423
        %3427 = vmatprep.subr.mxu0 0.0
        %3428 = vmatpush1.msra.mxu0 0.0
        %3429 = vmatprep.subr.mxu0 0.0
        %3430 = vmatpush1.msra.mxu0 0.0
        %3431 = vmatprep.subr.mxu0 0.0
        %3432 = vmatpush1.msra.mxu0 0.0
        %3433 = vmatprep.subr.mxu0 0.0
        %3434 = vmatpush1.msra.mxu0 0.0
        %3435 = vmatprep.subr.mxu0 0.0
        %3436 = vmatpush1.msra.mxu0 0.0
        %3437 = vmatprep.subr.mxu0 0.0
        %3438 = vmatpush1.msra.mxu0 0.0
        %3439 = vmatprep.subr.mxu0 0.0
        %3440 = vmatpush1.msra.mxu0 0.0
        %3441 = vmatprep.subr.mxu0 0.0
        %3442 = vmatpush1.msra.mxu0 0.0
        %3443 = vmatprep.subr.mxu0 0.0
        %3444 = vmatpush1.msra.mxu0 0.0
        %3445 = vmatprep.subr.mxu0 0.0
        %3446 = vmatpush1.msra.mxu0 0.0
        %3447 = vmatprep.subr.mxu0 0.0
        %3448 = vmatpush1.msra.mxu0 0.0
        %3449 = vmatprep.subr.mxu0 0.0
        %3450 = vmatpush1.msra.mxu0 0.0
        %3451 = vmatprep.subr.mxu0 0.0
        %3452 = vmatpush1.msra.mxu0 0.0
        %3453 = vmatprep.subr.mxu0 0.0
        %3454 = vmatpush1.msra.mxu0 0.0
        %3455 = vmatprep.subr.mxu0 0.0
        %3456 = vmatpush1.msra.mxu0 0.0
        %3457 = vmatprep.subr.mxu0 0.0
        %3458 = vmatpush1.msra.mxu0 0.0
        %3459 = vmatprep.subr.mxu0 0.0
        %3460 = vmatpush1.msra.mxu0 0.0
        %3461 = vmatprep.subr.mxu0 0.0
        %3462 = vmatpush1.msra.mxu0 0.0
        %3463 = vmatprep.subr.mxu0 0.0
        %3464 = vmatpush1.msra.mxu0 0.0
        %3465 = vmatprep.subr.mxu0 0.0
        %3466 = vmatpush1.msra.mxu0 0.0
        %3467 = vmatprep.subr.mxu0 0.0
        %3468 = vmatpush1.msra.mxu0 0.0
        %3469 = vmatprep.subr.mxu0 0.0
        %3470 = vmatpush1.msra.mxu0 0.0
        %3471 = vmatprep.subr.mxu0 0.0
        %3472 = vmatpush1.msra.mxu0 0.0
        %3473 = vmatprep.subr.mxu0 0.0
        %3474 = vmatpush1.msra.mxu0 0.0
        %3475 = vmatprep.subr.mxu0 0.0
        %3476 = vmatpush1.msra.mxu0 0.0
        %3477 = vmatprep.subr.mxu0 0.0
        %3478 = vmatpush1.msra.mxu0 0.0
        %3479 = vmatprep.subr.mxu0 0.0
        %3480 = vmatpush1.msra.mxu0 0.0
        %3481 = vmatprep.subr.mxu0 0.0
        %3482 = vmatpush1.msra.mxu0 0.0
        %3483 = vmatprep.subr.mxu0 0.0
        %3484 = vmatpush1.msra.mxu0 0.0
        %3485 = vmatprep.subr.mxu0 0.0
        %3486 = vmatpush1.msra.mxu0 0.0
        %3487 = vmatprep.subr.mxu0 0.0
        %3488 = vmatpush1.msra.mxu0 0.0
        %3489 = vmatprep.mubr.f32.mxu0 0.0
        %3490 = vmatmul.mubr.f32.gmra.mrb[0].mxu0 %v3315
        %v3491 = vpop.f32.mrb[0].mxu0
        %v3492 = vadd.f32 0.0, %v3491
        %v3493 = vpop.f32.mrb[0].mxu0
        %3494 = vmatprep.mubr.f32.mxu0 0.0
        %3495 = vmatmul.mubr.f32.gmra.mrb[0].mxu0 %v3318
        %v3496 = vpop.f32.mrb[0].mxu0
        %v3497 = vadd.f32 0.0, %v3496
        %v3498 = vpop.f32.mrb[0].mxu0
        %3499 = vmatprep.mubr.f32.mxu0 0.0
        %3500 = vmatmul.mubr.f32.gmra.mrb[0].mxu0 %v3321
        %v3501 = vpop.f32.mrb[0].mxu0
        %v3502 = vadd.f32 0.0, %v3501
        %v3503 = vpop.f32.mrb[0].mxu0
        %3504 = vmatprep.mubr.f32.mxu0 0.0
        %3505 = vmatmul.mubr.f32.gmra.mrb[0].mxu0 %v3324
        %v3506 = vpop.f32.mrb[0].mxu0
        %v3507 = vadd.f32 0.0, %v3506
        %v3508 = vpop.f32.mrb[0].mxu0
        %3509 = vmatprep.mubr.f32.mxu0 0.0
        %3510 = vmatmul.mubr.f32.gmra.mrb[0].mxu0 %v3327
        %v3511 = vpop.f32.mrb[0].mxu0
        %v3512 = vadd.f32 0.0, %v3511
        %v3513 = vpop.f32.mrb[0].mxu0
        %3514 = vmatprep.mubr.f32.mxu0 0.0
        %3515 = vmatmul.mubr.f32.gmra.mrb[0].mxu0 %v3330
        %v3516 = vpop.f32.mrb[0].mxu0
        %v3517 = vadd.f32 0.0, %v3516
        %v3518 = vpop.f32.mrb[0].mxu0
        %3519 = vmatprep.mubr.f32.mxu0 0.0
        %3520 = vmatmul.mubr.f32.gmra.mrb[0].mxu0 %v3333
        %v3521 = vpop.f32.mrb[0].mxu0
        %v3522 = vadd.f32 0.0, %v3521
        %v3523 = vpop.f32.mrb[0].mxu0
        %3524 = vmatprep.mubr.f32.mxu0 0.0
        %3525 = vmatmul.mubr.f32.gmra.mrb[0].mxu0 %v3336
        %v3526 = vpop.f32.mrb[0].mxu0
        %v3527 = vadd.f32 0.0, %v3526
        %v3528 = vpop.f32.mrb[0].mxu0
        %3529 = vmatprep.mubr.f32.mxu0 0.0
        %3530 = vmatmul.mubr.f32.gmra.mrb[0].mxu0 %v3339
        %v3531 = vpop.f32.mrb[0].mxu0
        %v3532 = vadd.f32 0.0, %v3531
        %v3533 = vpop.f32.mrb[0].mxu0
        %3534 = vmatprep.mubr.f32.mxu0 0.0
        %3535 = vmatmul.mubr.f32.gmra.mrb[0].mxu0 %v3342
        %v3536 = vpop.f32.mrb[0].mxu0
        %v3537 = vadd.f32 0.0, %v3536
        %v3538 = vpop.f32.mrb[0].mxu0
        %3539 = vmatprep.mubr.f32.mxu0 0.0
        %3540 = vmatmul.mubr.f32.gmra.mrb[0].mxu0 %v3345
        %v3541 = vpop.f32.mrb[0].mxu0
        %v3542 = vadd.f32 0.0, %v3541
        %v3543 = vpop.f32.mrb[0].mxu0
        %3544 = vmatprep.mubr.f32.mxu0 0.0
        %3545 = vmatmul.mubr.f32.gmra.mrb[0].mxu0 %v3348
        %v3546 = vpop.f32.mrb[0].mxu0
        %v3547 = vadd.f32 0.0, %v3546
        %v3548 = vpop.f32.mrb[0].mxu0
        %3549 = vmatprep.mubr.f32.mxu0 0.0
        %3550 = vmatmul.mubr.f32.gmra.mrb[0].mxu0 %v3351
        %v3551 = vpop.f32.mrb[0].mxu0
        %v3552 = vadd.f32 0.0, %v3551
        %v3553 = vpop.f32.mrb[0].mxu0
        %3554 = vmatprep.mubr.f32.mxu0 0.0
        %3555 = vmatmul.mubr.f32.gmra.mrb[0].mxu0 %v3354
        %v3556 = vpop.f32.mrb[0].mxu0
        %v3557 = vadd.f32 0.0, %v3556
        %v3558 = vpop.f32.mrb[0].mxu0
        %3559 = vmatprep.mubr.f32.mxu0 0.0
        %3560 = vmatmul.mubr.f32.gmra.mrb[0].mxu0 %v3357
        %v3561 = vpop.f32.mrb[0].mxu0
        %v3562 = vadd.f32 0.0, %v3561
        %v3563 = vpop.f32.mrb[0].mxu0
        %3564 = vmatprep.mubr.f32.mxu0 0.0
        %3565 = vmatmul.mubr.f32.gmra.mrb[0].mxu0 %v3360
        %v3566 = vpop.f32.mrb[0].mxu0
        %v3567 = vadd.f32 0.0, %v3566
        %v3568 = vpop.f32.mrb[0].mxu0
        %3569 = vmatprep.mubr.f32.mxu0 0.0
        %3570 = vmatmul.mubr.f32.gmra.mrb[0].mxu0 %v3363
        %v3571 = vpop.f32.mrb[0].mxu0
        %v3572 = vadd.f32 0.0, %v3571
        %v3573 = vpop.f32.mrb[0].mxu0
        %3574 = vmatprep.mubr.f32.mxu0 0.0
        %3575 = vmatmul.mubr.f32.gmra.mrb[0].mxu0 %v3366
        %v3576 = vpop.f32.mrb[0].mxu0
        %v3577 = vadd.f32 0.0, %v3576
        %v3578 = vpop.f32.mrb[0].mxu0
        %3579 = vmatprep.mubr.f32.mxu0 0.0
        %3580 = vmatmul.mubr.f32.gmra.mrb[0].mxu0 %v3369
        %v3581 = vpop.f32.mrb[0].mxu0
        %v3582 = vadd.f32 0.0, %v3581
        %v3583 = vpop.f32.mrb[0].mxu0
        %3584 = vmatprep.mubr.f32.mxu0 0.0
        %3585 = vmatmul.mubr.f32.gmra.mrb[0].mxu0 %v3372
        %v3586 = vpop.f32.mrb[0].mxu0
        %v3587 = vadd.f32 0.0, %v3586
        %v3588 = vpop.f32.mrb[0].mxu0
        %3589 = vmatprep.mubr.f32.mxu0 0.0
        %3590 = vmatmul.mubr.f32.gmra.mrb[0].mxu0 %v3375
        %v3591 = vpop.f32.mrb[0].mxu0
        %v3592 = vadd.f32 0.0, %v3591
        %v3593 = vpop.f32.mrb[0].mxu0
        %3594 = vmatprep.mubr.f32.mxu0 0.0
        %3595 = vmatmul.mubr.f32.gmra.mrb[0].mxu0 %v3378
        %v3596 = vpop.f32.mrb[0].mxu0
        %v3597 = vadd.f32 0.0, %v3596
        %v3598 = vpop.f32.mrb[0].mxu0
        %3599 = vmatprep.mubr.f32.mxu0 0.0
        %3600 = vmatmul.mubr.f32.gmra.mrb[0].mxu0 %v3381
        %v3601 = vpop.f32.mrb[0].mxu0
        %v3602 = vadd.f32 0.0, %v3601
        %v3603 = vpop.f32.mrb[0].mxu0
        %3604 = vmatprep.mubr.f32.mxu0 0.0
        %3605 = vmatmul.mubr.f32.gmra.mrb[0].mxu0 %v3384
        %v3606 = vpop.f32.mrb[0].mxu0
        %v3607 = vadd.f32 0.0, %v3606
        %v3608 = vpop.f32.mrb[0].mxu0
        %3609 = vmatprep.mubr.f32.mxu0 0.0
        %3610 = vmatmul.mubr.f32.gmra.mrb[0].mxu0 %v3387
        %v3611 = vpop.f32.mrb[0].mxu0
        %v3612 = vadd.f32 0.0, %v3611
        %v3613 = vpop.f32.mrb[0].mxu0
        %3614 = vmatprep.mubr.f32.mxu0 0.0
        %3615 = vmatmul.mubr.f32.gmra.mrb[0].mxu0 %v3390
        %v3616 = vpop.f32.mrb[0].mxu0
        %v3617 = vadd.f32 0.0, %v3616
        %v3618 = vpop.f32.mrb[0].mxu0
        %3619 = vmatprep.mubr.f32.mxu0 0.0
        %3620 = vmatmul.mubr.f32.gmra.mrb[0].mxu0 %v3393
        %v3621 = vpop.f32.mrb[0].mxu0
        %v3622 = vadd.f32 0.0, %v3621
        %v3623 = vpop.f32.mrb[0].mxu0
        %3624 = vmatprep.mubr.f32.mxu0 0.0
        %3625 = vmatmul.mubr.f32.gmra.mrb[0].mxu0 %v3396
        %v3626 = vpop.f32.mrb[0].mxu0
        %v3627 = vadd.f32 0.0, %v3626
        %v3628 = vpop.f32.mrb[0].mxu0
        %3629 = vmatprep.mubr.f32.mxu0 0.0
        %3630 = vmatmul.mubr.f32.gmra.mrb[0].mxu0 %v3399
        %v3631 = vpop.f32.mrb[0].mxu0
        %v3632 = vadd.f32 0.0, %v3631
        %v3633 = vpop.f32.mrb[0].mxu0
        %3634 = vmatprep.mubr.f32.mxu0 0.0
        %3635 = vmatmul.mubr.f32.gmra.mrb[0].mxu0 %v3402
        %v3636 = vpop.f32.mrb[0].mxu0
        %v3637 = vadd.f32 0.0, %v3636
        %v3638 = vpop.f32.mrb[0].mxu0
        %3639 = vmatprep.mubr.f32.mxu0 0.0
        %3640 = vmatmul.mubr.f32.gmra.mrb[0].mxu0 %v3405
        %v3641 = vpop.f32.mrb[0].mxu0
        %v3642 = vadd.f32 0.0, %v3641
        %v3643 = vpop.f32.mrb[0].mxu0
        %3644 = vmatprep.mubr.f32.mxu0 0.0
        %3645 = vmatmul.mubr.f32.gmra.mrb[0].mxu0 %v3408
        %v3646 = vpop.f32.mrb[0].mxu0
        %v3647 = vadd.f32 0.0, %v3646
        %v3648 = vpop.f32.mrb[0].mxu0
        %3649 = vmatprep.mubr.f32.mxu0 0.0
        %3650 = vmatmul.mubr.f32.gmra.mrb[0].mxu0 %v3411
        %v3651 = vpop.f32.mrb[0].mxu0
        %v3652 = vadd.f32 0.0, %v3651
        %v3653 = vpop.f32.mrb[0].mxu0
        %3654 = vmatprep.mubr.f32.mxu0 0.0
        %3655 = vmatmul.mubr.f32.gmra.mrb[0].mxu0 %v3414
        %v3656 = vpop.f32.mrb[0].mxu0
        %v3657 = vadd.f32 0.0, %v3656
        %v3658 = vpop.f32.mrb[0].mxu0
        %3659 = vmatprep.mubr.f32.mxu0 0.0
        %3660 = vmatmul.mubr.f32.gmra.mrb[0].mxu0 %v3417
        %v3661 = vpop.f32.mrb[0].mxu0
        %v3662 = vadd.f32 0.0, %v3661
        %v3663 = vpop.f32.mrb[0].mxu0
        %3664 = vmatprep.mubr.f32.mxu0 0.0
        %3665 = vmatmul.mubr.f32.gmra.mrb[0].mxu0 %v3420
        %v3666 = vpop.f32.mrb[0].mxu0
        %v3667 = vadd.f32 0.0, %v3666
        %v3668 = vpop.f32.mrb[0].mxu0
        %3669 = vdwg.mxu0
        %v3670 = vadd.f32 %v3240, %v3492
        %v3671 = vadd.f32 %v3241, %v3497
        %v3672 = vadd.f32 %v3242, %v3502
        %v3673 = vadd.f32 %v3243, %v3507
        %v3674 = vadd.f32 %v3244, %v3512
        %v3675 = vadd.f32 %v3245, %v3517
        %v3676 = vadd.f32 %v3246, %v3522
        %v3677 = vadd.f32 %v3247, %v3527
        %v3678 = vadd.f32 %v3248, %v3532
        %v3679 = vadd.f32 %v3249, %v3537
        %v3680 = vadd.f32 %v3250, %v3542
        %v3681 = vadd.f32 %v3251, %v3547
        %v3682 = vadd.f32 %v3252, %v3552
        %v3683 = vadd.f32 %v3253, %v3557
        %v3684 = vadd.f32 %v3254, %v3562
        %v3685 = vadd.f32 %v3255, %v3567
        %v3686 = vadd.f32 %v3256, %v3572
        %v3687 = vadd.f32 %v3257, %v3577
        %v3688 = vadd.f32 %v3258, %v3582
        %v3689 = vadd.f32 %v3259, %v3587
        %v3690 = vadd.f32 %v3260, %v3592
        %v3691 = vadd.f32 %v3261, %v3597
        %v3692 = vadd.f32 %v3262, %v3602
        %v3693 = vadd.f32 %v3263, %v3607
        %v3694 = vadd.f32 %v3264, %v3612
        %v3695 = vadd.f32 %v3265, %v3617
        %v3696 = vadd.f32 %v3266, %v3622
        %v3697 = vadd.f32 %v3267, %v3627
        %v3698 = vadd.f32 %v3268, %v3632
        %v3699 = vadd.f32 %v3269, %v3637
        %v3700 = vadd.f32 %v3270, %v3642
        %v3701 = vadd.f32 %v3271, %v3647
        %v3702 = vadd.f32 %v3272, %v3652
        %v3703 = vadd.f32 %v3273, %v3657
        %v3704 = vadd.f32 %v3274, %v3662
        %v3705 = vadd.f32 %v3275, %v3667
        %v3706 = vld [vmem:[%s326 + $0x26] sm:$0xff]
        %v3707 = vld [vmem:[%s326 + $0x2e] sm:$0xff]
        %v3708 = vld [vmem:[%s326 + $0x36] sm:$0xff]
        %v3709 = vld [vmem:[%s326 + $0x3e] sm:$0xff]
        %v3710 = vld [vmem:[%s326 + $0x46] sm:$0xff]
        %v3711 = vld [vmem:[%s326 + $0x4e] sm:$0xff]
        %v3712 = vld [vmem:[%s326 + $0x56] sm:$0xff]
        %v3713 = vld [vmem:[%s326 + $0x5e] sm:$0xff]
        %v3714 = vld [vmem:[%s326 + $0x66] sm:$0xff]
        %v3715 = vld [vmem:[%s326 + $0x6e] sm:$0xff]
        %v3716 = vld [vmem:[%s326 + $0x76] sm:$0xff]
        %v3717 = vld [vmem:[%s326 + $0x7e] sm:$0xff]
        %v3718 = vld [vmem:[%s326 + $0x86] sm:$0xff]
        %v3719 = vld [vmem:[%s326 + $0x8e] sm:$0xff]
        %v3720 = vld [vmem:[%s326 + $0x96] sm:$0xff]
        %v3721 = vld [vmem:[%s326 + $0x9e] sm:$0xff]
        %v3722 = vld [vmem:[%s326 + $0xa6] sm:$0xff]
        %v3723 = vld [vmem:[%s326 + $0xae] sm:$0xff]
        %v3724 = vld [vmem:[%s326 + $0xb6] sm:$0xff]
        %v3725 = vld [vmem:[%s326 + $0xbe] sm:$0xff]
        %v3726 = vld [vmem:[%s326 + $0xc6] sm:$0xff]
        %v3727 = vld [vmem:[%s326 + $0xce] sm:$0xff]
        %v3728 = vld [vmem:[%s326 + $0xd6] sm:$0xff]
        %v3729 = vld [vmem:[%s326 + $0xde] sm:$0xff]
        %v3730 = vld [vmem:[%s326 + $0xe6] sm:$0xff]
        %v3731 = vld [vmem:[%s326 + $0xee] sm:$0xff]
        %v3732 = vld [vmem:[%s326 + $0xf6] sm:$0xff]
        %v3733 = vld [vmem:[%s326 + $0xfe] sm:$0xff]
        %v3734 = vld [vmem:[%s326 + $0x106] sm:$0xff]
        %v3735 = vld [vmem:[%s326 + $0x10e] sm:$0xff]
        %v3736 = vld [vmem:[%s326 + $0x116] sm:$0xff]
        %v3737 = vld [vmem:[%s326 + $0x11e] sm:$0xff]
        %v3738 = vld [vmem:[%s326 + $0x126] sm:$0xff]
        %v3739 = vld [vmem:[%s326 + $0x12e] sm:$0xff]
        %v3740 = vld [vmem:[%s326 + $0x136] sm:$0xff]
        %v3741 = vld [vmem:[%s326 + $0x13e] sm:$0xff]
        %s3742 = scalar_lea.vmem %s1, 32
        %v3743 = vld [vmem:[%s3742] sm:$0xf]
        %v3745 = vsel %vm412, %v3706, 0
        %v3748 = vsel %vm412, %v3707, 0
        %v3751 = vsel %vm412, %v3708, 0
        %v3754 = vsel %vm412, %v3709, 0
        %v3757 = vsel %vm412, %v3710, 0
        %v3760 = vsel %vm412, %v3711, 0
        %v3763 = vsel %vm412, %v3712, 0
        %v3766 = vsel %vm412, %v3713, 0
        %v3769 = vsel %vm412, %v3714, 0
        %v3772 = vsel %vm412, %v3715, 0
        %v3775 = vsel %vm412, %v3716, 0
        %v3778 = vsel %vm412, %v3717, 0
        %v3781 = vsel %vm412, %v3718, 0
        %v3784 = vsel %vm412, %v3719, 0
        %v3787 = vsel %vm412, %v3720, 0
        %v3790 = vsel %vm412, %v3721, 0
        %v3793 = vsel %vm412, %v3722, 0
        %v3796 = vsel %vm412, %v3723, 0
        %v3799 = vsel %vm412, %v3724, 0
        %v3802 = vsel %vm412, %v3725, 0
        %v3805 = vsel %vm412, %v3726, 0
        %v3808 = vsel %vm412, %v3727, 0
        %v3811 = vsel %vm412, %v3728, 0
        %v3814 = vsel %vm412, %v3729, 0
        %v3817 = vsel %vm412, %v3730, 0
        %v3820 = vsel %vm412, %v3731, 0
        %v3823 = vsel %vm412, %v3732, 0
        %v3826 = vsel %vm412, %v3733, 0
        %v3829 = vsel %vm412, %v3734, 0
        %v3832 = vsel %vm412, %v3735, 0
        %v3835 = vsel %vm412, %v3736, 0
        %v3838 = vsel %vm412, %v3737, 0
        %v3841 = vsel %vm412, %v3738, 0
        %v3844 = vsel %vm412, %v3739, 0
        %v3847 = vsel %vm412, %v3740, 0
        %v3850 = vsel %vm412, %v3741, 0
        %v3853 = vsel %vm521, %v3743, 0
        %3855 = vmatprep.subr.mxu0 0.0
        %3856 = vmatpush1.msra.mxu0 %v3853
        %3857 = vmatprep.subr.mxu0 0.0
        %3858 = vmatpush1.msra.mxu0 0.0
        %3859 = vmatprep.subr.mxu0 0.0
        %3860 = vmatpush1.msra.mxu0 0.0
        %3861 = vmatprep.subr.mxu0 0.0
        %3862 = vmatpush1.msra.mxu0 0.0
        %3863 = vmatprep.subr.mxu0 0.0
        %3864 = vmatpush1.msra.mxu0 0.0
        %3865 = vmatprep.subr.mxu0 0.0
        %3866 = vmatpush1.msra.mxu0 0.0
        %3867 = vmatprep.subr.mxu0 0.0
        %3868 = vmatpush1.msra.mxu0 0.0
        %3869 = vmatprep.subr.mxu0 0.0
        %3870 = vmatpush1.msra.mxu0 0.0
        %3871 = vmatprep.subr.mxu0 0.0
        %3872 = vmatpush1.msra.mxu0 0.0
        %3873 = vmatprep.subr.mxu0 0.0
        %3874 = vmatpush1.msra.mxu0 0.0
        %3875 = vmatprep.subr.mxu0 0.0
        %3876 = vmatpush1.msra.mxu0 0.0
        %3877 = vmatprep.subr.mxu0 0.0
        %3878 = vmatpush1.msra.mxu0 0.0
        %3879 = vmatprep.subr.mxu0 0.0
        %3880 = vmatpush1.msra.mxu0 0.0
        %3881 = vmatprep.subr.mxu0 0.0
        %3882 = vmatpush1.msra.mxu0 0.0
        %3883 = vmatprep.subr.mxu0 0.0
        %3884 = vmatpush1.msra.mxu0 0.0
        %3885 = vmatprep.subr.mxu0 0.0
        %3886 = vmatpush1.msra.mxu0 0.0
        %3887 = vmatprep.subr.mxu0 0.0
        %3888 = vmatpush1.msra.mxu0 0.0
        %3889 = vmatprep.subr.mxu0 0.0
        %3890 = vmatpush1.msra.mxu0 0.0
        %3891 = vmatprep.subr.mxu0 0.0
        %3892 = vmatpush1.msra.mxu0 0.0
        %3893 = vmatprep.subr.mxu0 0.0
        %3894 = vmatpush1.msra.mxu0 0.0
        %3895 = vmatprep.subr.mxu0 0.0
        %3896 = vmatpush1.msra.mxu0 0.0
        %3897 = vmatprep.subr.mxu0 0.0
        %3898 = vmatpush1.msra.mxu0 0.0
        %3899 = vmatprep.subr.mxu0 0.0
        %3900 = vmatpush1.msra.mxu0 0.0
        %3901 = vmatprep.subr.mxu0 0.0
        %3902 = vmatpush1.msra.mxu0 0.0
        %3903 = vmatprep.subr.mxu0 0.0
        %3904 = vmatpush1.msra.mxu0 0.0
        %3905 = vmatprep.subr.mxu0 0.0
        %3906 = vmatpush1.msra.mxu0 0.0
        %3907 = vmatprep.subr.mxu0 0.0
        %3908 = vmatpush1.msra.mxu0 0.0
        %3909 = vmatprep.subr.mxu0 0.0
        %3910 = vmatpush1.msra.mxu0 0.0
        %3911 = vmatprep.subr.mxu0 0.0
        %3912 = vmatpush1.msra.mxu0 0.0
        %3913 = vmatprep.subr.mxu0 0.0
        %3914 = vmatpush1.msra.mxu0 0.0
        %3915 = vmatprep.subr.mxu0 0.0
        %3916 = vmatpush1.msra.mxu0 0.0
        %3917 = vmatprep.subr.mxu0 0.0
        %3918 = vmatpush1.msra.mxu0 0.0
        %3919 = vmatprep.mubr.f32.mxu0 0.0
        %3920 = vmatmul.mubr.f32.gmra.mrb[0].mxu0 %v3745
        %v3921 = vpop.f32.mrb[0].mxu0
        %v3922 = vadd.f32 0.0, %v3921
        %v3923 = vpop.f32.mrb[0].mxu0
        %3924 = vmatprep.mubr.f32.mxu0 0.0
        %3925 = vmatmul.mubr.f32.gmra.mrb[0].mxu0 %v3748
        %v3926 = vpop.f32.mrb[0].mxu0
        %v3927 = vadd.f32 0.0, %v3926
        %v3928 = vpop.f32.mrb[0].mxu0
        %3929 = vmatprep.mubr.f32.mxu0 0.0
        %3930 = vmatmul.mubr.f32.gmra.mrb[0].mxu0 %v3751
        %v3931 = vpop.f32.mrb[0].mxu0
        %v3932 = vadd.f32 0.0, %v3931
        %v3933 = vpop.f32.mrb[0].mxu0
        %3934 = vmatprep.mubr.f32.mxu0 0.0
        %3935 = vmatmul.mubr.f32.gmra.mrb[0].mxu0 %v3754
        %v3936 = vpop.f32.mrb[0].mxu0
        %v3937 = vadd.f32 0.0, %v3936
        %v3938 = vpop.f32.mrb[0].mxu0
        %3939 = vmatprep.mubr.f32.mxu0 0.0
        %3940 = vmatmul.mubr.f32.gmra.mrb[0].mxu0 %v3757
        %v3941 = vpop.f32.mrb[0].mxu0
        %v3942 = vadd.f32 0.0, %v3941
        %v3943 = vpop.f32.mrb[0].mxu0
        %3944 = vmatprep.mubr.f32.mxu0 0.0
        %3945 = vmatmul.mubr.f32.gmra.mrb[0].mxu0 %v3760
        %v3946 = vpop.f32.mrb[0].mxu0
        %v3947 = vadd.f32 0.0, %v3946
        %v3948 = vpop.f32.mrb[0].mxu0
        %3949 = vmatprep.mubr.f32.mxu0 0.0
        %3950 = vmatmul.mubr.f32.gmra.mrb[0].mxu0 %v3763
        %v3951 = vpop.f32.mrb[0].mxu0
        %v3952 = vadd.f32 0.0, %v3951
        %v3953 = vpop.f32.mrb[0].mxu0
        %3954 = vmatprep.mubr.f32.mxu0 0.0
        %3955 = vmatmul.mubr.f32.gmra.mrb[0].mxu0 %v3766
        %v3956 = vpop.f32.mrb[0].mxu0
        %v3957 = vadd.f32 0.0, %v3956
        %v3958 = vpop.f32.mrb[0].mxu0
        %3959 = vmatprep.mubr.f32.mxu0 0.0
        %3960 = vmatmul.mubr.f32.gmra.mrb[0].mxu0 %v3769
        %v3961 = vpop.f32.mrb[0].mxu0
        %v3962 = vadd.f32 0.0, %v3961
        %v3963 = vpop.f32.mrb[0].mxu0
        %3964 = vmatprep.mubr.f32.mxu0 0.0
        %3965 = vmatmul.mubr.f32.gmra.mrb[0].mxu0 %v3772
        %v3966 = vpop.f32.mrb[0].mxu0
        %v3967 = vadd.f32 0.0, %v3966
        %v3968 = vpop.f32.mrb[0].mxu0
        %3969 = vmatprep.mubr.f32.mxu0 0.0
        %3970 = vmatmul.mubr.f32.gmra.mrb[0].mxu0 %v3775
        %v3971 = vpop.f32.mrb[0].mxu0
        %v3972 = vadd.f32 0.0, %v3971
        %v3973 = vpop.f32.mrb[0].mxu0
        %3974 = vmatprep.mubr.f32.mxu0 0.0
        %3975 = vmatmul.mubr.f32.gmra.mrb[0].mxu0 %v3778
        %v3976 = vpop.f32.mrb[0].mxu0
        %v3977 = vadd.f32 0.0, %v3976
        %v3978 = vpop.f32.mrb[0].mxu0
        %3979 = vmatprep.mubr.f32.mxu0 0.0
        %3980 = vmatmul.mubr.f32.gmra.mrb[0].mxu0 %v3781
        %v3981 = vpop.f32.mrb[0].mxu0
        %v3982 = vadd.f32 0.0, %v3981
        %v3983 = vpop.f32.mrb[0].mxu0
        %3984 = vmatprep.mubr.f32.mxu0 0.0
        %3985 = vmatmul.mubr.f32.gmra.mrb[0].mxu0 %v3784
        %v3986 = vpop.f32.mrb[0].mxu0
        %v3987 = vadd.f32 0.0, %v3986
        %v3988 = vpop.f32.mrb[0].mxu0
        %3989 = vmatprep.mubr.f32.mxu0 0.0
        %3990 = vmatmul.mubr.f32.gmra.mrb[0].mxu0 %v3787
        %v3991 = vpop.f32.mrb[0].mxu0
        %v3992 = vadd.f32 0.0, %v3991
        %v3993 = vpop.f32.mrb[0].mxu0
        %3994 = vmatprep.mubr.f32.mxu0 0.0
        %3995 = vmatmul.mubr.f32.gmra.mrb[0].mxu0 %v3790
        %v3996 = vpop.f32.mrb[0].mxu0
        %v3997 = vadd.f32 0.0, %v3996
        %v3998 = vpop.f32.mrb[0].mxu0
        %3999 = vmatprep.mubr.f32.mxu0 0.0
        %4000 = vmatmul.mubr.f32.gmra.mrb[0].mxu0 %v3793
        %v4001 = vpop.f32.mrb[0].mxu0
        %v4002 = vadd.f32 0.0, %v4001
        %v4003 = vpop.f32.mrb[0].mxu0
        %4004 = vmatprep.mubr.f32.mxu0 0.0
        %4005 = vmatmul.mubr.f32.gmra.mrb[0].mxu0 %v3796
        %v4006 = vpop.f32.mrb[0].mxu0
        %v4007 = vadd.f32 0.0, %v4006
        %v4008 = vpop.f32.mrb[0].mxu0
        %4009 = vmatprep.mubr.f32.mxu0 0.0
        %4010 = vmatmul.mubr.f32.gmra.mrb[0].mxu0 %v3799
        %v4011 = vpop.f32.mrb[0].mxu0
        %v4012 = vadd.f32 0.0, %v4011
        %v4013 = vpop.f32.mrb[0].mxu0
        %4014 = vmatprep.mubr.f32.mxu0 0.0
        %4015 = vmatmul.mubr.f32.gmra.mrb[0].mxu0 %v3802
        %v4016 = vpop.f32.mrb[0].mxu0
        %v4017 = vadd.f32 0.0, %v4016
        %v4018 = vpop.f32.mrb[0].mxu0
        %4019 = vmatprep.mubr.f32.mxu0 0.0
        %4020 = vmatmul.mubr.f32.gmra.mrb[0].mxu0 %v3805
        %v4021 = vpop.f32.mrb[0].mxu0
        %v4022 = vadd.f32 0.0, %v4021
        %v4023 = vpop.f32.mrb[0].mxu0
        %4024 = vmatprep.mubr.f32.mxu0 0.0
        %4025 = vmatmul.mubr.f32.gmra.mrb[0].mxu0 %v3808
        %v4026 = vpop.f32.mrb[0].mxu0
        %v4027 = vadd.f32 0.0, %v4026
        %v4028 = vpop.f32.mrb[0].mxu0
        %4029 = vmatprep.mubr.f32.mxu0 0.0
        %4030 = vmatmul.mubr.f32.gmra.mrb[0].mxu0 %v3811
        %v4031 = vpop.f32.mrb[0].mxu0
        %v4032 = vadd.f32 0.0, %v4031
        %v4033 = vpop.f32.mrb[0].mxu0
        %4034 = vmatprep.mubr.f32.mxu0 0.0
        %4035 = vmatmul.mubr.f32.gmra.mrb[0].mxu0 %v3814
        %v4036 = vpop.f32.mrb[0].mxu0
        %v4037 = vadd.f32 0.0, %v4036
        %v4038 = vpop.f32.mrb[0].mxu0
        %4039 = vmatprep.mubr.f32.mxu0 0.0
        %4040 = vmatmul.mubr.f32.gmra.mrb[0].mxu0 %v3817
        %v4041 = vpop.f32.mrb[0].mxu0
        %v4042 = vadd.f32 0.0, %v4041
        %v4043 = vpop.f32.mrb[0].mxu0
        %4044 = vmatprep.mubr.f32.mxu0 0.0
        %4045 = vmatmul.mubr.f32.gmra.mrb[0].mxu0 %v3820
        %v4046 = vpop.f32.mrb[0].mxu0
        %v4047 = vadd.f32 0.0, %v4046
        %v4048 = vpop.f32.mrb[0].mxu0
        %4049 = vmatprep.mubr.f32.mxu0 0.0
        %4050 = vmatmul.mubr.f32.gmra.mrb[0].mxu0 %v3823
        %v4051 = vpop.f32.mrb[0].mxu0
        %v4052 = vadd.f32 0.0, %v4051
        %v4053 = vpop.f32.mrb[0].mxu0
        %4054 = vmatprep.mubr.f32.mxu0 0.0
        %4055 = vmatmul.mubr.f32.gmra.mrb[0].mxu0 %v3826
        %v4056 = vpop.f32.mrb[0].mxu0
        %v4057 = vadd.f32 0.0, %v4056
        %v4058 = vpop.f32.mrb[0].mxu0
        %4059 = vmatprep.mubr.f32.mxu0 0.0
        %4060 = vmatmul.mubr.f32.gmra.mrb[0].mxu0 %v3829
        %v4061 = vpop.f32.mrb[0].mxu0
        %v4062 = vadd.f32 0.0, %v4061
        %v4063 = vpop.f32.mrb[0].mxu0
        %4064 = vmatprep.mubr.f32.mxu0 0.0
        %4065 = vmatmul.mubr.f32.gmra.mrb[0].mxu0 %v3832
        %v4066 = vpop.f32.mrb[0].mxu0
        %v4067 = vadd.f32 0.0, %v4066
        %v4068 = vpop.f32.mrb[0].mxu0
        %4069 = vmatprep.mubr.f32.mxu0 0.0
        %4070 = vmatmul.mubr.f32.gmra.mrb[0].mxu0 %v3835
        %v4071 = vpop.f32.mrb[0].mxu0
        %v4072 = vadd.f32 0.0, %v4071
        %v4073 = vpop.f32.mrb[0].mxu0
        %4074 = vmatprep.mubr.f32.mxu0 0.0
        %4075 = vmatmul.mubr.f32.gmra.mrb[0].mxu0 %v3838
        %v4076 = vpop.f32.mrb[0].mxu0
        %v4077 = vadd.f32 0.0, %v4076
        %v4078 = vpop.f32.mrb[0].mxu0
        %4079 = vmatprep.mubr.f32.mxu0 0.0
        %4080 = vmatmul.mubr.f32.gmra.mrb[0].mxu0 %v3841
        %v4081 = vpop.f32.mrb[0].mxu0
        %v4082 = vadd.f32 0.0, %v4081
        %v4083 = vpop.f32.mrb[0].mxu0
        %4084 = vmatprep.mubr.f32.mxu0 0.0
        %4085 = vmatmul.mubr.f32.gmra.mrb[0].mxu0 %v3844
        %v4086 = vpop.f32.mrb[0].mxu0
        %v4087 = vadd.f32 0.0, %v4086
        %v4088 = vpop.f32.mrb[0].mxu0
        %4089 = vmatprep.mubr.f32.mxu0 0.0
        %4090 = vmatmul.mubr.f32.gmra.mrb[0].mxu0 %v3847
        %v4091 = vpop.f32.mrb[0].mxu0
        %v4092 = vadd.f32 0.0, %v4091
        %v4093 = vpop.f32.mrb[0].mxu0
        %4094 = vmatprep.mubr.f32.mxu0 0.0
        %4095 = vmatmul.mubr.f32.gmra.mrb[0].mxu0 %v3850
        %v4096 = vpop.f32.mrb[0].mxu0
        %v4097 = vadd.f32 0.0, %v4096
        %v4098 = vpop.f32.mrb[0].mxu0
        %4099 = vdwg.mxu0
        %v4100 = vadd.f32 %v3670, %v3922
        %v4101 = vadd.f32 %v3671, %v3927
        %v4102 = vadd.f32 %v3672, %v3932
        %v4103 = vadd.f32 %v3673, %v3937
        %v4104 = vadd.f32 %v3674, %v3942
        %v4105 = vadd.f32 %v3675, %v3947
        %v4106 = vadd.f32 %v3676, %v3952
        %v4107 = vadd.f32 %v3677, %v3957
        %v4108 = vadd.f32 %v3678, %v3962
        %v4109 = vadd.f32 %v3679, %v3967
        %v4110 = vadd.f32 %v3680, %v3972
        %v4111 = vadd.f32 %v3681, %v3977
        %v4112 = vadd.f32 %v3682, %v3982
        %v4113 = vadd.f32 %v3683, %v3987
        %v4114 = vadd.f32 %v3684, %v3992
        %v4115 = vadd.f32 %v3685, %v3997
        %v4116 = vadd.f32 %v3686, %v4002
        %v4117 = vadd.f32 %v3687, %v4007
        %v4118 = vadd.f32 %v3688, %v4012
        %v4119 = vadd.f32 %v3689, %v4017
        %v4120 = vadd.f32 %v3690, %v4022
        %v4121 = vadd.f32 %v3691, %v4027
        %v4122 = vadd.f32 %v3692, %v4032
        %v4123 = vadd.f32 %v3693, %v4037
        %v4124 = vadd.f32 %v3694, %v4042
        %v4125 = vadd.f32 %v3695, %v4047
        %v4126 = vadd.f32 %v3696, %v4052
        %v4127 = vadd.f32 %v3697, %v4057
        %v4128 = vadd.f32 %v3698, %v4062
        %v4129 = vadd.f32 %v3699, %v4067
        %v4130 = vadd.f32 %v3700, %v4072
        %v4131 = vadd.f32 %v3701, %v4077
        %v4132 = vadd.f32 %v3702, %v4082
        %v4133 = vadd.f32 %v3703, %v4087
        %v4134 = vadd.f32 %v3704, %v4092
        %v4135 = vadd.f32 %v3705, %v4097
        %v4136 = vld [vmem:[%s2] sm:$0x1]
        %v4138 = vlaneseq
        %v4139 = vshrl.u32 %v4138, 7
        %v4140 = vsub.s32 0, %v4139
        %v4141 = vrot.slane %v4136, %v4140
        %v4143 = vadd.f32 %v4100, %v4141
        %v4144 = vadd.f32 %v4101, %v4141
        %v4145 = vadd.f32 %v4102, %v4141
        %v4146 = vadd.f32 %v4103, %v4141
        %v4147 = vadd.f32 %v4104, %v4141
        %v4148 = vadd.f32 %v4105, %v4141
        %v4149 = vadd.f32 %v4106, %v4141
        %v4150 = vadd.f32 %v4107, %v4141
        %v4151 = vadd.f32 %v4108, %v4141
        %v4152 = vadd.f32 %v4109, %v4141
        %v4153 = vadd.f32 %v4110, %v4141
        %v4154 = vadd.f32 %v4111, %v4141
        %v4155 = vadd.f32 %v4112, %v4141
        %v4156 = vadd.f32 %v4113, %v4141
        %v4157 = vadd.f32 %v4114, %v4141
        %v4158 = vadd.f32 %v4115, %v4141
        %v4159 = vadd.f32 %v4116, %v4141
        %v4160 = vadd.f32 %v4117, %v4141
        %v4161 = vadd.f32 %v4118, %v4141
        %v4162 = vadd.f32 %v4119, %v4141
        %v4163 = vadd.f32 %v4120, %v4141
        %v4164 = vadd.f32 %v4121, %v4141
        %v4165 = vadd.f32 %v4122, %v4141
        %v4166 = vadd.f32 %v4123, %v4141
        %v4167 = vadd.f32 %v4124, %v4141
        %v4168 = vadd.f32 %v4125, %v4141
        %v4169 = vadd.f32 %v4126, %v4141
        %v4170 = vadd.f32 %v4127, %v4141
        %v4171 = vadd.f32 %v4128, %v4141
        %v4172 = vadd.f32 %v4129, %v4141
        %v4173 = vadd.f32 %v4130, %v4141
        %v4174 = vadd.f32 %v4131, %v4141
        %v4175 = vadd.f32 %v4132, %v4141
        %v4176 = vadd.f32 %v4133, %v4141
        %v4177 = vadd.f32 %v4134, %v4141
        %v4178 = vadd.f32 %v4135, %v4141
        %v4179 = vmax.f32 %v4143, 0.0
        %v4180 = vmax.f32 %v4144, 0.0
        %v4181 = vmax.f32 %v4145, 0.0
        %v4182 = vmax.f32 %v4146, 0.0
        %v4183 = vmax.f32 %v4147, 0.0
        %v4184 = vmax.f32 %v4148, 0.0
        %v4185 = vmax.f32 %v4149, 0.0
        %v4186 = vmax.f32 %v4150, 0.0
        %v4187 = vmax.f32 %v4151, 0.0
        %v4188 = vmax.f32 %v4152, 0.0
        %v4189 = vmax.f32 %v4153, 0.0
        %v4190 = vmax.f32 %v4154, 0.0
        %v4191 = vmax.f32 %v4155, 0.0
        %v4192 = vmax.f32 %v4156, 0.0
        %v4193 = vmax.f32 %v4157, 0.0
        %v4194 = vmax.f32 %v4158, 0.0
        %v4195 = vmax.f32 %v4159, 0.0
        %v4196 = vmax.f32 %v4160, 0.0
        %v4197 = vmax.f32 %v4161, 0.0
        %v4198 = vmax.f32 %v4162, 0.0
        %v4199 = vmax.f32 %v4163, 0.0
        %v4200 = vmax.f32 %v4164, 0.0
        %v4201 = vmax.f32 %v4165, 0.0
        %v4202 = vmax.f32 %v4166, 0.0
        %v4203 = vmax.f32 %v4167, 0.0
        %v4204 = vmax.f32 %v4168, 0.0
        %v4205 = vmax.f32 %v4169, 0.0
        %v4206 = vmax.f32 %v4170, 0.0
        %v4207 = vmax.f32 %v4171, 0.0
        %v4208 = vmax.f32 %v4172, 0.0
        %v4209 = vmax.f32 %v4173, 0.0
        %v4210 = vmax.f32 %v4174, 0.0
        %v4211 = vmax.f32 %v4175, 0.0
        %v4212 = vmax.f32 %v4176, 0.0
        %v4213 = vmax.f32 %v4177, 0.0
        %v4214 = vmax.f32 %v4178, 0.0
        %vm4215 = vcmask 261120
        %4216 = vst.msk [vmem:[%s331] sm:$0xff] %vm4215, %v4179
        %4217 = vst.msk [vmem:[%s331 + $0x8] sm:$0xff] %vm4215, %v4180
        %4218 = vst.msk [vmem:[%s331 + $0x10] sm:$0xff] %vm4215, %v4181
        %4219 = vst.msk [vmem:[%s331 + $0x18] sm:$0xff] %vm4215, %v4182
        %4220 = vst.msk [vmem:[%s331 + $0x20] sm:$0xff] %vm4215, %v4183
        %4221 = vst.msk [vmem:[%s331 + $0x28] sm:$0xff] %vm4215, %v4184
        %4222 = vst.msk [vmem:[%s331 + $0x30] sm:$0xff] %vm4215, %v4185
        %4223 = vst.msk [vmem:[%s331 + $0x38] sm:$0xff] %vm4215, %v4186
        %4224 = vst.msk [vmem:[%s331 + $0x40] sm:$0xff] %vm4215, %v4187
        %4225 = vst.msk [vmem:[%s331 + $0x48] sm:$0xff] %vm4215, %v4188
        %4226 = vst.msk [vmem:[%s331 + $0x50] sm:$0xff] %vm4215, %v4189
        %4227 = vst.msk [vmem:[%s331 + $0x58] sm:$0xff] %vm4215, %v4190
        %4228 = vst.msk [vmem:[%s331 + $0x60] sm:$0xff] %vm4215, %v4191
        %4229 = vst.msk [vmem:[%s331 + $0x68] sm:$0xff] %vm4215, %v4192
        %4230 = vst.msk [vmem:[%s331 + $0x70] sm:$0xff] %vm4215, %v4193
        %4231 = vst.msk [vmem:[%s331 + $0x78] sm:$0xff] %vm4215, %v4194
        %4232 = vst.msk [vmem:[%s331 + $0x80] sm:$0xff] %vm4215, %v4195
        %4233 = vst.msk [vmem:[%s331 + $0x88] sm:$0xff] %vm4215, %v4196
        %4234 = vst.msk [vmem:[%s331 + $0x90] sm:$0xff] %vm4215, %v4197
        %4235 = vst.msk [vmem:[%s331 + $0x98] sm:$0xff] %vm4215, %v4198
        %4236 = vst.msk [vmem:[%s331 + $0xa0] sm:$0xff] %vm4215, %v4199
        %4237 = vst.msk [vmem:[%s331 + $0xa8] sm:$0xff] %vm4215, %v4200
        %4238 = vst.msk [vmem:[%s331 + $0xb0] sm:$0xff] %vm4215, %v4201
        %4239 = vst.msk [vmem:[%s331 + $0xb8] sm:$0xff] %vm4215, %v4202
        %4240 = vst.msk [vmem:[%s331 + $0xc0] sm:$0xff] %vm4215, %v4203
        %4241 = vst.msk [vmem:[%s331 + $0xc8] sm:$0xff] %vm4215, %v4204
        %4242 = vst.msk [vmem:[%s331 + $0xd0] sm:$0xff] %vm4215, %v4205
        %4243 = vst.msk [vmem:[%s331 + $0xd8] sm:$0xff] %vm4215, %v4206
        %4244 = vst.msk [vmem:[%s331 + $0xe0] sm:$0xff] %vm4215, %v4207
        %4245 = vst.msk [vmem:[%s331 + $0xe8] sm:$0xff] %vm4215, %v4208
        %4246 = vst.msk [vmem:[%s331 + $0xf0] sm:$0xff] %vm4215, %v4209
        %4247 = vst.msk [vmem:[%s331 + $0xf8] sm:$0xff] %vm4215, %v4210
        %4248 = vst.msk [vmem:[%s331 + $0x100] sm:$0xff] %vm4215, %v4211
        %4249 = vst.msk [vmem:[%s331 + $0x108] sm:$0xff] %vm4215, %v4212
        %4250 = vst.msk [vmem:[%s331 + $0x110] sm:$0xff] %vm4215, %v4213
        %4251 = vst.msk [vmem:[%s331 + $0x118] sm:$0xff] %vm4215, %v4214
        %v4252 = vld [vmem:[%s3] sm:$0x7]
        %v4254 = vlaneseq
        %v4255 = vshrl.u32 %v4254, 7
        %v4256 = vsub.s32 0, %v4255
        %v4257 = vrot.slane %v4252, %v4256
        %v4258 = vlaneseq
        %v4259 = vshrl.u32 %v4258, 7
        %v4260 = vsub.s32 1, %v4259
        %v4261 = vrot.slane %v4252, %v4260
        %v4262 = vlaneseq
        %v4263 = vshrl.u32 %v4262, 7
        %v4264 = vsub.s32 2, %v4263
        %v4265 = vrot.slane %v4252, %v4264
        %v4268 = vsel %vm4215, %v4265, 0
        %4270 = vmatprep.subr.mxu0 0.0
        %4271 = vmatpush1.msra.mxu0 %v4179
        %4272 = vmatprep.subr.mxu0 0.0
        %4273 = vmatpush1.msra.mxu0 %v4180
        %4274 = vmatprep.subr.mxu0 0.0
        %4275 = vmatpush1.msra.mxu0 %v4181
        %4276 = vmatprep.subr.mxu0 0.0
        %4277 = vmatpush1.msra.mxu0 %v4182
        %4278 = vmatprep.subr.mxu0 0.0
        %4279 = vmatpush1.msra.mxu0 %v4183
        %4280 = vmatprep.subr.mxu0 0.0
        %4281 = vmatpush1.msra.mxu0 %v4184
        %4282 = vmatprep.subr.mxu0 0.0
        %4283 = vmatpush1.msra.mxu0 %v4185
        %4284 = vmatprep.subr.mxu0 0.0
        %4285 = vmatpush1.msra.mxu0 %v4186
        %4286 = vmatprep.subr.mxu0 0.0
        %4287 = vmatpush1.msra.mxu0 %v4187
        %4288 = vmatprep.subr.mxu0 0.0
        %4289 = vmatpush1.msra.mxu0 %v4188
        %4290 = vmatprep.subr.mxu0 0.0
        %4291 = vmatpush1.msra.mxu0 %v4189
        %4292 = vmatprep.subr.mxu0 0.0
        %4293 = vmatpush1.msra.mxu0 %v4190
        %4294 = vmatprep.subr.mxu0 0.0
        %4295 = vmatpush1.msra.mxu0 %v4191
        %4296 = vmatprep.subr.mxu0 0.0
        %4297 = vmatpush1.msra.mxu0 %v4192
        %4298 = vmatprep.subr.mxu0 0.0
        %4299 = vmatpush1.msra.mxu0 %v4193
        %4300 = vmatprep.subr.mxu0 0.0
        %4301 = vmatpush1.msra.mxu0 %v4194
        %4302 = vmatprep.subr.mxu0 0.0
        %4303 = vmatpush1.msra.mxu0 %v4195
        %4304 = vmatprep.subr.mxu0 0.0
        %4305 = vmatpush1.msra.mxu0 %v4196
        %4306 = vmatprep.subr.mxu0 0.0
        %4307 = vmatpush1.msra.mxu0 %v4197
        %4308 = vmatprep.subr.mxu0 0.0
        %4309 = vmatpush1.msra.mxu0 %v4198
        %4310 = vmatprep.subr.mxu0 0.0
        %4311 = vmatpush1.msra.mxu0 %v4199
        %4312 = vmatprep.subr.mxu0 0.0
        %4313 = vmatpush1.msra.mxu0 %v4200
        %4314 = vmatprep.subr.mxu0 0.0
        %4315 = vmatpush1.msra.mxu0 %v4201
        %4316 = vmatprep.subr.mxu0 0.0
        %4317 = vmatpush1.msra.mxu0 %v4202
        %4318 = vmatprep.subr.mxu0 0.0
        %4319 = vmatpush1.msra.mxu0 %v4203
        %4320 = vmatprep.subr.mxu0 0.0
        %4321 = vmatpush1.msra.mxu0 %v4204
        %4322 = vmatprep.subr.mxu0 0.0
        %4323 = vmatpush1.msra.mxu0 %v4205
        %4324 = vmatprep.subr.mxu0 0.0
        %4325 = vmatpush1.msra.mxu0 %v4206
        %4326 = vmatprep.subr.mxu0 0.0
        %4327 = vmatpush1.msra.mxu0 %v4207
        %4328 = vmatprep.subr.mxu0 0.0
        %4329 = vmatpush1.msra.mxu0 %v4208
        %4330 = vmatprep.subr.mxu0 0.0
        %4331 = vmatpush1.msra.mxu0 %v4209
        %4332 = vmatprep.subr.mxu0 0.0
        %4333 = vmatpush1.msra.mxu0 %v4210
        %4334 = vmatprep.mubr.f32.mxu0 %v4261
        %4335 = vmatmul.mubr.f32.gmra.mrb[0].mxu0 %v4257
        %v4336 = vpop.f32.mrb[0].mxu0
        %v4337 = vadd.f32 0.0, %v4336
        %v4338 = vpop.f32.mrb[0].mxu0
        %4339 = vdwg.mxu0
        %4340 = vmatprep.subr.mxu0 0.0
        %4341 = vmatpush1.msra.mxu0 %v4211
        %4342 = vmatprep.subr.mxu0 0.0
        %4343 = vmatpush1.msra.mxu0 %v4212
        %4344 = vmatprep.subr.mxu0 0.0
        %4345 = vmatpush1.msra.mxu0 %v4213
        %4346 = vmatprep.subr.mxu0 0.0
        %4347 = vmatpush1.msra.mxu0 %v4214
        %4348 = vmatprep.subr.mxu0 0.0
        %4349 = vmatpush1.msra.mxu0 0.0
        %4350 = vmatprep.subr.mxu0 0.0
        %4351 = vmatpush1.msra.mxu0 0.0
        %4352 = vmatprep.subr.mxu0 0.0
        %4353 = vmatpush1.msra.mxu0 0.0
        %4354 = vmatprep.subr.mxu0 0.0
        %4355 = vmatpush1.msra.mxu0 0.0
        %4356 = vmatprep.subr.mxu0 0.0
        %4357 = vmatpush1.msra.mxu0 0.0
        %4358 = vmatprep.subr.mxu0 0.0
        %4359 = vmatpush1.msra.mxu0 0.0
        %4360 = vmatprep.subr.mxu0 0.0
        %4361 = vmatpush1.msra.mxu0 0.0
        %4362 = vmatprep.subr.mxu0 0.0
        %4363 = vmatpush1.msra.mxu0 0.0
        %4364 = vmatprep.subr.mxu0 0.0
        %4365 = vmatpush1.msra.mxu0 0.0
        %4366 = vmatprep.subr.mxu0 0.0
        %4367 = vmatpush1.msra.mxu0 0.0
        %4368 = vmatprep.subr.mxu0 0.0
        %4369 = vmatpush1.msra.mxu0 0.0
        %4370 = vmatprep.subr.mxu0 0.0
        %4371 = vmatpush1.msra.mxu0 0.0
        %4372 = vmatprep.subr.mxu0 0.0
        %4373 = vmatpush1.msra.mxu0 0.0
        %4374 = vmatprep.subr.mxu0 0.0
        %4375 = vmatpush1.msra.mxu0 0.0
        %4376 = vmatprep.subr.mxu0 0.0
        %4377 = vmatpush1.msra.mxu0 0.0
        %4378 = vmatprep.subr.mxu0 0.0
        %4379 = vmatpush1.msra.mxu0 0.0
        %4380 = vmatprep.subr.mxu0 0.0
        %4381 = vmatpush1.msra.mxu0 0.0
        %4382 = vmatprep.subr.mxu0 0.0
        %4383 = vmatpush1.msra.mxu0 0.0
        %4384 = vmatprep.subr.mxu0 0.0
        %4385 = vmatpush1.msra.mxu0 0.0
        %4386 = vmatprep.subr.mxu0 0.0
        %4387 = vmatpush1.msra.mxu0 0.0
        %4388 = vmatprep.subr.mxu0 0.0
        %4389 = vmatpush1.msra.mxu0 0.0
        %4390 = vmatprep.subr.mxu0 0.0
        %4391 = vmatpush1.msra.mxu0 0.0
        %4392 = vmatprep.subr.mxu0 0.0
        %4393 = vmatpush1.msra.mxu0 0.0
        %4394 = vmatprep.subr.mxu0 0.0
        %4395 = vmatpush1.msra.mxu0 0.0
        %4396 = vmatprep.subr.mxu0 0.0
        %4397 = vmatpush1.msra.mxu0 0.0
        %4398 = vmatprep.subr.mxu0 0.0
        %4399 = vmatpush1.msra.mxu0 0.0
        %4400 = vmatprep.subr.mxu0 0.0
        %4401 = vmatpush1.msra.mxu0 0.0
        %4402 = vmatprep.subr.mxu0 0.0
        %4403 = vmatpush1.msra.mxu0 0.0
        %4404 = vmatprep.mubr.f32.mxu0 0.0
        %4405 = vmatmul.mubr.f32.gmra.mrb[0].mxu0 %v4268
        %v4406 = vpop.f32.mrb[0].mxu0
        %v4407 = vadd.f32 %v4337, %v4406
        %v4408 = vpop.f32.mrb[0].mxu0
        %4409 = vdwg.mxu0
        %v4410 = vmul.f32 %v4407, 0.00390625
        %v4411 = vmax.f32 %v4410, 0.0
        %vm4412 = vcmask 253952
        %4413 = vst.msk [vmem:[%s308] sm:$0x1] %vm4412, %v4411
        %v4414 = vld [vmem:[%s4] sm:$0xff]
        %v4415 = vld [vmem:[%s4 + $0x8] sm:$0x7]
        %v4416 = vmul.f32 %v4414, %v4414
        %v4417 = vmul.f32 %v4415, %v4415
        %v4418 = vsel %vm4215, %v4416, 0.0
        %4419 = vadd.xlane.f32.xlu0 %v4418
        %v4420 = vpop.xlane.xlu0 %4419
        %vm4421 = vcmask 256000
        %v4422 = vsel %vm4421, %v4417, 0.0
        %4423 = vadd.xlane.f32.xlu0 %v4422
        %v4424 = vpop.xlane.xlu0 %4423
        %v4425 = vrsqrt.pop %v4420
        %v4426 = vmul.f32 %v4420, %v4425
        %vm4427 = vcmp.eq.f32.partialorder %v4420, inf
        %v4428 = vsel %vm4427, %v4420, %v4426
        %vm4429 = vcmp.eq.f32.partialorder %v4420, 0.0
        %v4430 = vand.u32 %v4420, 2147483648
        %v4431 = vsel %vm4429, %v4430, %v4428
        %v4432 = vrsqrt.pop %v4424
        %v4433 = vmul.f32 %v4424, %v4432
        %vm4434 = vcmp.eq.f32.partialorder %v4424, inf
        %v4435 = vsel %vm4434, %v4424, %v4433
        %vm4436 = vcmp.eq.f32.partialorder %v4424, 0.0
        %v4437 = vand.u32 %v4424, 2147483648
        %v4438 = vsel %vm4436, %v4437, %v4435
        %v4439 = vmax.f32 %v4431, 1e-12
        %v4440 = vmax.f32 %v4438, 1e-12
        %v4441 = vrcp.pop %v4439
        %v4442 = vmul.f32 %v4414, %v4441
        %v4443 = vrcp.pop %v4440
        %v4444 = vmul.f32 %v4415, %v4443
        %v4445 = vmul.f32 %v4411, %v4411
        %v4446 = vsel %vm4412, %v4445, 0.0
        %4447 = vadd.xlane.f32.xlu0 %v4446
        %v4448 = vpop.xlane.xlu0 %4447
        %v4449 = vrsqrt.pop %v4448
        %v4450 = vmul.f32 %v4448, %v4449
        %vm4451 = vcmp.eq.f32.partialorder %v4448, inf
        %v4452 = vsel %vm4451, %v4448, %v4450
        %vm4453 = vcmp.eq.f32.partialorder %v4448, 0.0
        %v4454 = vand.u32 %v4448, 2147483648
        %v4455 = vsel %vm4453, %v4454, %v4452
        %v4457 = vsel %vm4215, %v4411, 0
        %v4460 = vsel %vm4215, %v4442, 0
        %v4463 = vsel %vm4215, %v4444, 0
        %4465 = vmatprep.subr.mxu0 0.0
        %4466 = vmatpush1.xpose.msra.mxu0 %v4460
        %4467 = vmatprep.subr.mxu0 0.0
        %4468 = vmatpush1.xpose.msra.mxu0 %v4463
        %4469 = vmatprep.subr.mxu0 0.0
        %4470 = vmatpush1.xpose.msra.mxu0 0.0
        %4471 = vmatprep.subr.mxu0 0.0
        %4472 = vmatpush1.xpose.msra.mxu0 0.0
        %4473 = vmatprep.subr.mxu0 0.0
        %4474 = vmatpush1.xpose.msra.mxu0 0.0
        %4475 = vmatprep.subr.mxu0 0.0
        %4476 = vmatpush1.xpose.msra.mxu0 0.0
        %4477 = vmatprep.subr.mxu0 0.0
        %4478 = vmatpush1.xpose.msra.mxu0 0.0
        %4479 = vmatprep.subr.mxu0 0.0
        %4480 = vmatpush1.xpose.msra.mxu0 0.0
        %4481 = vmatprep.subr.mxu0 0.0
        %4482 = vmatpush1.xpose.msra.mxu0 0.0
        %4483 = vmatprep.subr.mxu0 0.0
        %4484 = vmatpush1.xpose.msra.mxu0 0.0
        %4485 = vmatprep.subr.mxu0 0.0
        %4486 = vmatpush1.xpose.msra.mxu0 0.0
        %4487 = vmatprep.subr.mxu0 0.0
        %4488 = vmatpush1.xpose.msra.mxu0 0.0
        %4489 = vmatprep.subr.mxu0 0.0
        %4490 = vmatpush1.xpose.msra.mxu0 0.0
        %4491 = vmatprep.subr.mxu0 0.0
        %4492 = vmatpush1.xpose.msra.mxu0 0.0
        %4493 = vmatprep.subr.mxu0 0.0
        %4494 = vmatpush1.xpose.msra.mxu0 0.0
        %4495 = vmatprep.subr.mxu0 0.0
        %4496 = vmatpush1.xpose.msra.mxu0 0.0
        %4497 = vmatprep.subr.mxu0 0.0
        %4498 = vmatpush1.xpose.msra.mxu0 0.0
        %4499 = vmatprep.subr.mxu0 0.0
        %4500 = vmatpush1.xpose.msra.mxu0 0.0
        %4501 = vmatprep.subr.mxu0 0.0
        %4502 = vmatpush1.xpose.msra.mxu0 0.0
        %4503 = vmatprep.subr.mxu0 0.0
        %4504 = vmatpush1.xpose.msra.mxu0 0.0
        %4505 = vmatprep.subr.mxu0 0.0
        %4506 = vmatpush1.xpose.msra.mxu0 0.0
        %4507 = vmatprep.subr.mxu0 0.0
        %4508 = vmatpush1.xpose.msra.mxu0 0.0
        %4509 = vmatprep.subr.mxu0 0.0
        %4510 = vmatpush1.xpose.msra.mxu0 0.0
        %4511 = vmatprep.subr.mxu0 0.0
        %4512 = vmatpush1.xpose.msra.mxu0 0.0
        %4513 = vmatprep.subr.mxu0 0.0
        %4514 = vmatpush1.xpose.msra.mxu0 0.0
        %4515 = vmatprep.subr.mxu0 0.0
        %4516 = vmatpush1.xpose.msra.mxu0 0.0
        %4517 = vmatprep.subr.mxu0 0.0
        %4518 = vmatpush1.xpose.msra.mxu0 0.0
        %4519 = vmatprep.subr.mxu0 0.0
        %4520 = vmatpush1.xpose.msra.mxu0 0.0
        %4521 = vmatprep.subr.mxu0 0.0
        %4522 = vmatpush1.xpose.msra.mxu0 0.0
        %4523 = vmatprep.subr.mxu0 0.0
        %4524 = vmatpush1.xpose.msra.mxu0 0.0
        %4525 = vmatprep.subr.mxu0 0.0
        %4526 = vmatpush1.xpose.msra.mxu0 0.0
        %4527 = vmatprep.subr.mxu0 0.0
        %4528 = vmatpush1.xpose.msra.mxu0 0.0
        %4529 = vmatprep.mubr.f32.mxu0 0.0
        %4530 = vmatmul.mubr.f32.gmra.mrb[0].mxu0 %v4457
        %v4531 = vpop.f32.mrb[0].mxu0
        %v4532 = vadd.f32 0.0, %v4531
        %v4533 = vpop.f32.mrb[0].mxu0
        %4534 = vdwg.mxu0
        %v4535 = vmax.f32 %v4455, 1e-08
        %v4536 = vrcp.pop %v4535
        %v4537 = vmul.f32 %v4532, %v4536
        %v4538 = vsub.f32 1.0, %v4537
        %vm4539 = vcmask 81920
        %4540 = vst.msk [vmem:[%s314] sm:$0x1] %vm4539, %v4538
        %4541 = vmatprep.subr.mxu0 0.0
        %4542 = vmatpush1.xpose.msra.mxu0 %v4460
        %4543 = vmatprep.subr.mxu0 0.0
        %4544 = vmatpush1.xpose.msra.mxu0 %v4463
        %4545 = vmatprep.subr.mxu0 0.0
        %4546 = vmatpush1.xpose.msra.mxu0 0.0
        %4547 = vmatprep.subr.mxu0 0.0
        %4548 = vmatpush1.xpose.msra.mxu0 0.0
        %4549 = vmatprep.subr.mxu0 0.0
        %4550 = vmatpush1.xpose.msra.mxu0 0.0
        %4551 = vmatprep.subr.mxu0 0.0
        %4552 = vmatpush1.xpose.msra.mxu0 0.0
        %4553 = vmatprep.subr.mxu0 0.0
        %4554 = vmatpush1.xpose.msra.mxu0 0.0
        %4555 = vmatprep.subr.mxu0 0.0
        %4556 = vmatpush1.xpose.msra.mxu0 0.0
        %4557 = vmatprep.subr.mxu0 0.0
        %4558 = vmatpush1.xpose.msra.mxu0 0.0
        %4559 = vmatprep.subr.mxu0 0.0
        %4560 = vmatpush1.xpose.msra.mxu0 0.0
        %4561 = vmatprep.subr.mxu0 0.0
        %4562 = vmatpush1.xpose.msra.mxu0 0.0
        %4563 = vmatprep.subr.mxu0 0.0
        %4564 = vmatpush1.xpose.msra.mxu0 0.0
        %4565 = vmatprep.subr.mxu0 0.0
        %4566 = vmatpush1.xpose.msra.mxu0 0.0
        %4567 = vmatprep.subr.mxu0 0.0
        %4568 = vmatpush1.xpose.msra.mxu0 0.0
        %4569 = vmatprep.subr.mxu0 0.0
        %4570 = vmatpush1.xpose.msra.mxu0 0.0
        %4571 = vmatprep.subr.mxu0 0.0
        %4572 = vmatpush1.xpose.msra.mxu0 0.0
        %4573 = vmatprep.subr.mxu0 0.0
        %4574 = vmatpush1.xpose.msra.mxu0 0.0
        %4575 = vmatprep.subr.mxu0 0.0
        %4576 = vmatpush1.xpose.msra.mxu0 0.0
        %4577 = vmatprep.subr.mxu0 0.0
        %4578 = vmatpush1.xpose.msra.mxu0 0.0
        %4579 = vmatprep.subr.mxu0 0.0
        %4580 = vmatpush1.xpose.msra.mxu0 0.0
        %4581 = vmatprep.subr.mxu0 0.0
        %4582 = vmatpush1.xpose.msra.mxu0 0.0
        %4583 = vmatprep.subr.mxu0 0.0
        %4584 = vmatpush1.xpose.msra.mxu0 0.0
        %4585 = vmatprep.subr.mxu0 0.0
        %4586 = vmatpush1.xpose.msra.mxu0 0.0
        %4587 = vmatprep.subr.mxu0 0.0
        %4588 = vmatpush1.xpose.msra.mxu0 0.0
        %4589 = vmatprep.subr.mxu0 0.0
        %4590 = vmatpush1.xpose.msra.mxu0 0.0
        %4591 = vmatprep.subr.mxu0 0.0
        %4592 = vmatpush1.xpose.msra.mxu0 0.0
        %4593 = vmatprep.subr.mxu0 0.0
        %4594 = vmatpush1.xpose.msra.mxu0 0.0
        %4595 = vmatprep.subr.mxu0 0.0
        %4596 = vmatpush1.xpose.msra.mxu0 0.0
        %4597 = vmatprep.subr.mxu0 0.0
        %4598 = vmatpush1.xpose.msra.mxu0 0.0
        %4599 = vmatprep.subr.mxu0 0.0
        %4600 = vmatpush1.xpose.msra.mxu0 0.0
        %4601 = vmatprep.subr.mxu0 0.0
        %4602 = vmatpush1.xpose.msra.mxu0 0.0
        %4603 = vmatprep.subr.mxu0 0.0
        %4604 = vmatpush1.xpose.msra.mxu0 0.0
        %4605 = vmatprep.mubr.f32.mxu0 0.0
        %4606 = vmatmul.mubr.f32.gmra.mrb[0].mxu0 %v4460
        %v4607 = vpop.f32.mrb[0].mxu0
        %v4608 = vadd.f32 0.0, %v4607
        %v4609 = vpop.f32.mrb[0].mxu0
        %4610 = vmatprep.mubr.f32.mxu0 0.0
        %4611 = vmatmul.mubr.f32.gmra.mrb[0].mxu0 %v4463
        %v4612 = vpop.f32.mrb[0].mxu0
        %v4613 = vadd.f32 0.0, %v4612
        %v4614 = vpop.f32.mrb[0].mxu0
        %4615 = vdwg.mxu0
        %v4616 = vmul.f32 %v4608, 2.0
        %v4617 = vmul.f32 %v4613, 2.0
        %v4618 = vsub.f32 2.0, %v4616
        %v4619 = vsub.f32 2.0, %v4617
        %v4620 = vrcp.pop 32.0
        %v4621 = vmul.f32 %v4618, %v4620
        %v4622 = vmul.f32 %v4619, %v4620
        %vm4623 = vcmask 89088
        %4624 = vst.msk [vmem:[%s336] sm:$0xff] %vm4623, %v4621
        %vm4625 = vcmask 83968
        %4626 = vst.msk [vmem:[%s336 + $0x8] sm:$0x7] %vm4625, %v4622
        %p4627 = scmp.lt.s32.totalorder %s26, 1
        %s4628 = scalar_select %p4627, %s26, 1
        %s4629 = smul.addr %s4628, 36
        %s4630 = smul.addr %s4629, 8
        %s4631 = scalar_lea.vmem %s5, %s4630
        %s4632 = sand.u32 %s170, 1
        %s4633 = scalar_lea.sflag [#allocation3], %s4632
        %s4634 = sand.u32 %s170, 1
        %s4635 = scalar_lea.vmem [#allocation2], %s4634
        %s4636 = sand.u32 %s196, 1
        %s4637 = scalar_lea.sflag [#allocation5], %s4636
        %s4638 = sand.u32 %s196, 1
        %s4639 = scalar_lea.vmem [#allocation4], %s4638
        %p4640 = scmp.lt.s32.totalorder %s26, 1
        %s4641 = scalar_select %p4640, %s26, 1
        %s4642 = smul.addr %s4641, 2
        %s4643 = smul.addr %s4642, 8
        %s4644 = scalar_lea.vmem %s8, %s4643
        // Predicated region
        $region41: #{dfpnet_forward.1} parent=39 // pred_check
          %p4645 = pneg %p154
        $region42: #{dfpnet_forward.1} parent=39 // pred_check_branch
          %4647 = sbr.rel (%p4645) target = $region44
        $region43: #{dfpnet_forward.1} parent=39 // pred_region
          _
        $region44: #{dfpnet_forward.1} parent=39 // pred_fallthru
          _
        // Predicated region
        $region45: #{dfpnet_forward.1} parent=39 // pred_check
          %p4648 = pneg %p180
        $region46: #{dfpnet_forward.1} parent=39 // pred_check_branch
          %4650 = sbr.rel (%p4648) target = $region48
        $region47: #{dfpnet_forward.1} parent=39 // pred_region
          %s4652 = ssub.s32 16, 16
          %4653 = vsyncadd %s4633, %s4652
          %s4654 = smul.addr %s26, 16
          %s4655 = scalar_lea.hbm %s6, %s4654
          %s4657 = sshll.u32 %s4635, 4
          %s4658 = int_to_ptr.vmem [resolvable:$true] %s4657
          %4660 = dma.vmem_to_hbm [thread:$0]  %s4658, 16, %s4655, %s4633
        $region48: #{dfpnet_forward.1} parent=39 // pred_fallthru
          _
        // Predicated region
        $region49: #{dfpnet_forward.1} parent=39 // pred_check
          %p4661 = pneg %p206
        $region50: #{dfpnet_forward.1} parent=39 // pred_check_branch
          %4663 = sbr.rel (%p4661) target = $region52
        $region51: #{dfpnet_forward.1} parent=39 // pred_region
          %s4665 = ssub.s32 16, 16
          %4666 = vsyncadd %s4637, %s4665
          %s4667 = smul.addr %s26, 16
          %s4668 = scalar_lea.hbm %s7, %s4667
          %s4670 = sshll.u32 %s4639, 4
          %s4671 = int_to_ptr.vmem [resolvable:$true] %s4670
          %4673 = dma.vmem_to_hbm [thread:$0]  %s4671, 16, %s4668, %s4637
        $region52: #{dfpnet_forward.1} parent=39 // pred_fallthru
          _
        // Predicated region
        $region53: #{dfpnet_forward.1} parent=39 // pred_check
          %p4674 = pneg %p232
        $region54: #{dfpnet_forward.1} parent=39 // pred_check_branch
          %4676 = sbr.rel (%p4674) target = $region56
        $region55: #{dfpnet_forward.1} parent=39 // pred_region
          _
        $region56: #{dfpnet_forward.1} parent=39 // pred_fallthru
          _
      $region40: #{dfpnet_forward.1} parent=5 // pred_fallthru
        _
      %p4677 = scmp.le.s32.totalorder 2, %s21
      // Predicated region
      $region57: #{dfpnet_forward.1} parent=5 // pred_check
        %p4678 = pneg %p4677
      $region58: #{dfpnet_forward.1} parent=5 // pred_check_branch
        %4680 = sbr.rel (%p4678) target = $region60
      $region59: #{dfpnet_forward.1} parent=5 // pred_region
        %s4681 = ssub.s32 %s21, 2
        // Predicated region
        $region61: #{dfpnet_forward.1} parent=59 // pred_check
          %p4682 = pneg %p160
        $region62: #{dfpnet_forward.1} parent=59 // pred_check_branch
          %4684 = sbr.rel (%p4682) target = $region64
        $region63: #{dfpnet_forward.1} parent=59 // pred_region
          %p4685 = scmp.lt.s32.totalorder %s27, 1
          %s4686 = scalar_select %p4685, %s27, 1
          %s4687 = smul.addr %s4686, 36
          %s4688 = smul.addr %s4687, 8
          %s4689 = scalar_lea.vmem %s5, %s4688
        $region64: #{dfpnet_forward.1} parent=59 // pred_fallthru
          _
        // Predicated region
        $region65: #{dfpnet_forward.1} parent=59 // pred_check
          %p4690 = pneg %p186
        $region66: #{dfpnet_forward.1} parent=59 // pred_check_branch
          %4692 = sbr.rel (%p4690) target = $region68
        $region67: #{dfpnet_forward.1} parent=59 // pred_region
          %s4693 = sand.u32 %s171, 1
          %s4694 = scalar_lea.sflag [#allocation3], %s4693
          %s4695 = sand.u32 %s171, 1
          %s4696 = scalar_lea.vmem [#allocation2], %s4695
          %4697 = dma.done %s4694, 16
        $region68: #{dfpnet_forward.1} parent=59 // pred_fallthru
          _
        // Predicated region
        $region69: #{dfpnet_forward.1} parent=59 // pred_check
          %p4698 = pneg %p212
        $region70: #{dfpnet_forward.1} parent=59 // pred_check_branch
          %4700 = sbr.rel (%p4698) target = $region72
        $region71: #{dfpnet_forward.1} parent=59 // pred_region
          %s4701 = sand.u32 %s197, 1
          %s4702 = scalar_lea.sflag [#allocation5], %s4701
          %s4703 = sand.u32 %s197, 1
          %s4704 = scalar_lea.vmem [#allocation4], %s4703
          %4705 = dma.done %s4702, 16
        $region72: #{dfpnet_forward.1} parent=59 // pred_fallthru
          _
        // Predicated region
        $region73: #{dfpnet_forward.1} parent=59 // pred_check
          %p4706 = pneg %p238
        $region74: #{dfpnet_forward.1} parent=59 // pred_check_branch
          %4708 = sbr.rel (%p4706) target = $region76
        $region75: #{dfpnet_forward.1} parent=59 // pred_region
          %p4709 = scmp.lt.s32.totalorder %s27, 1
          %s4710 = scalar_select %p4709, %s27, 1
          %s4711 = smul.addr %s4710, 2
          %s4712 = smul.addr %s4711, 8
          %s4713 = scalar_lea.vmem %s8, %s4712
        $region76: #{dfpnet_forward.1} parent=59 // pred_fallthru
          _
      $region60: #{dfpnet_forward.1} parent=5 // pred_fallthru
        _
    $region6: #{dfpnet_forward.1} parent=1 // loop_footer
      %s25 = sadd.s32 1, %s21
    $region7: #{dfpnet_forward.1} parent=1 // loop_footer_branch
      %20 = sbr.rel target = $region3
    $region8: #{dfpnet_forward.1} parent=1 // loop_exit
      _
    %4714 = vsyncpa [#allocation3], 1
    %s4715 = scalar_lea.sflag [#allocation3], 1
    %4716 = vsyncpa %s4715, 1
    %4717 = vsyncpa [#allocation5], 1
    %s4718 = scalar_lea.sflag [#allocation5], 1
    %4719 = vsyncpa %s4718, 1

</llo_original>
